<compile_context>
chip_gen: v6e
topology: v6e:2x2x1
jax: 0.10.0
libtpu: 0.0.40
codegen_flags: <defaults>
</compile_context>

<pallas_src>
import functools

import jax
import jax.numpy as jnp
from jax.experimental import pallas as pl
from jax.experimental.pallas import tpu as pltpu

_D = 128        # padded lane width for every feature dimension
_N_ROWS = 16    # rows in the f32 constant stack (12 used, padded to a sublane multiple)


def _to_bf16(x):
    return x.astype(jnp.bfloat16)


def _flip_kernel(L, half):
    # [L[half:], L[:half]] as an XLU sublane rotation; half % 8 == 0 -> pure vreg shuffle.
    return pltpu.roll(L, shift=half, axis=0)


def _flip_ref(L, half):
    # Pure-JAX equivalent (identical values) used for out-of-kernel references.
    return jnp.concatenate([L[half:], L[:half]], axis=0)


def _gnn1_math(G, Gt, rows, cu_w0f, vs_w0f, cu_w1, lu_w0, lu_w1, vs_w1, cc_w0, cc_w1,
               n_hops, lit_dim, *, flip, cast, precision):
    """Forward math on the prepared (padded / split / fused) operands.

    Used inside the Pallas kernel (flip=_flip_kernel, cast=bf16) and as pure-JAX references
    (flip=_flip_ref; cast=bf16 for the bit-for-bit check, identity+HIGHEST for the f32 check).
    """
    n_clauses, n_lits = G.shape
    half = n_lits // 2
    D = rows.shape[1]
    inv_ld = 1.0 / float(lit_dim)

    def dot(a, b):
        return jnp.dot(a, b, preferred_element_type=jnp.float32, precision=precision)

    # f32 constant rows (biases / LayerNorm affine / lane mask / L_init).
    L0 = rows[0:1]
    cu_b0, cu_b1 = rows[1:2], rows[2:3]
    lu_b0, lu_b1 = rows[3:4], rows[4:5]
    vs_b0, vs_b1 = rows[5:6], rows[6:7]
    cc_b0, cc_b1 = rows[7:8], rows[8:9]
    ln_g, ln_b = rows[9:10], rows[10:11]
    mask = rows[11:12]                       # 1.0 in the real lit_dim lanes, 0.0 in pad lanes

    L = jnp.broadcast_to(L0, (n_lits, D))    # L_init.repeat(n_lits, 1)   (f32)
    C = jnp.zeros((n_clauses, D), jnp.float32)

    # n_hops is small & static -> Python unroll.
    for _ in range(n_hops):
        L_flip = flip(L, half)
        # [L | L_flip] as one lane-adjacent 256-wide operand -> single K=256 MXU pass.
        LLf = jnp.concatenate([cast(L), cast(L_flip)], axis=1)            # (n_lits, 2D)
        pre = dot(LLf, cu_w0f)                                            # (n_lits, D)
        h = jnp.maximum(dot(G, cast(pre)) + cu_b0, 0.0)                   # (n_clauses, D)
        C = dot(cast(h), cu_w1) + cu_b1                                   # (n_clauses, D)

        # normalize=True: per-column zero mean, unbiased std (ddof=1), eps added after sqrt.
        C = C - jnp.mean(C, axis=0, keepdims=True)
        std = jnp.sqrt(jnp.sum(C * C, axis=0, keepdims=True) * (1.0 / (n_clauses - 1)))
        C = C * (1.0 / (std + 1e-10))        # reciprocal of the (1,D) row, one VPU multiply

        # L_update on L_msg = G.T @ C, with pre-transposed Gt (no in-kernel transpose).
        L_msg = dot(Gt, cast(C))                                          # (n_lits, D)
        h2 = jnp.maximum(dot(cast(L_msg), lu_w0) + lu_b0, 0.0)
        L = dot(cast(h2), lu_w1) + lu_b1 + 0.1 * L                        # residual

        # nn.LayerNorm(lit_dim): stats over the real lit_dim lanes only (pads are exactly 0);
        # two-pass variance via the lane mask (no E[x^2]-E[x]^2 cancellation).
        mu = jnp.sum(L, axis=1, keepdims=True) * inv_ld
        d = (L - mu) * mask
        var = jnp.sum(d * d, axis=1, keepdims=True) * inv_ld
        L = d * jax.lax.rsqrt(var + 1e-5) * ln_g + ln_b

    # Epilogue: V = [L[:half] | L[half:]] as a 256-wide operand; drat & core heads fused
    # (vs_w1 col 0 = drat, col 1 = core).  Outputs stay lane-dense (full 128-lane rows).
    Vc = jnp.concatenate([cast(L[:half]), cast(L[half:])], axis=1)        # (n_vars, 2D)
    hv = jnp.maximum(dot(Vc, vs_w0f) + vs_b0, 0.0)                        # (n_vars, D)
    vsc = dot(cast(hv), vs_w1) + vs_b1                                    # lanes 0/1 = drat/core
    hc = jnp.maximum(dot(cast(C), cc_w0) + cc_b0, 0.0)                    # (n_clauses, D)
    csc = dot(cast(hc), cc_w1) + cc_b1                                    # lane 0 = clause score
    return vsc, csc


def gnn1_kernel(n_hops, lit_dim, G_ref, Gt_ref, w256_ref, w128_ref, rows_ref, out_ref):
    n_vars = G_ref.shape[1] // 2
    vsc, csc = _gnn1_math(
        G_ref[...], Gt_ref[...], rows_ref[...],
        w256_ref[0], w256_ref[1],
        w128_ref[0], w128_ref[1], w128_ref[2], w128_ref[3], w128_ref[4], w128_ref[5],
        n_hops, lit_dim,
        flip=_flip_kernel, cast=_to_bf16, precision=None)
    out_ref[0:n_vars, :] = vsc        # variable scores (lane 0 = drat, lane 1 = core)
    out_ref[n_vars:, :] = csc         # clause scores   (lane 0)


def _vmem_limit_bytes():
    # Generation-aware VMEM budget: ~3/4 of physical, capped (v7x: 64 MiB/TC), raised on
    # v5e/v6e (128 MiB physical).  Falls back safely if hardware info is unavailable.
    try:
        cap = int(pltpu.get_tpu_info().vmem_capacity_bytes)
    except Exception:
        cap = 64 * 1024 * 1024
    return int(max(32 * 1024 * 1024, min(cap * 3 // 4, 100 * 1024 * 1024)))


def gnn1_forward(G_w, Gt_w, w256, w128, rows, *, n_hops, lit_dim):
    assert n_hops >= 1
    n_clauses, n_lits = G_w.shape
    n_vars = n_lits // 2
    D = rows.shape[1]
    kernel = functools.partial(gnn1_kernel, n_hops, lit_dim)

    # Model is small: no grid — every operand is a single full-array VMEM block and the whole
    # multi-hop message-passing loop runs inside one kernel invocation (5 input DMAs, 1 output).
    out = pl.pallas_call(
        kernel,
        out_shape=jax.ShapeDtypeStruct((n_vars + n_clauses, D), jnp.float32),
        in_specs=[pl.BlockSpec(memory_space=pltpu.MemorySpace.VMEM)] * 5,
        out_specs=pl.BlockSpec(memory_space=pltpu.MemorySpace.VMEM),
        compiler_params=pltpu.CompilerParams(vmem_limit_bytes=_vmem_limit_bytes()),
    )(G_w, Gt_w, w256, w128, rows)

    drat = out[:n_vars, 0:1]
    core = out[:n_vars, 1:2]
    cscore = out[n_vars:, 0:1]
    return drat, core, cscore


# ----------------------------- parameter handling -----------------------------

def init_raw_params(key, lit_dim, clause_dim):
    """Raw (unpadded, unsplit, f32) parameters with the shapes of GNN1.__init__ (n_layers_*=1)."""
    ks = iter(jax.random.split(key, 32))

    def lin(d_in, d_out):
        w = jax.random.normal(next(ks), (d_in, d_out), jnp.float32) / jnp.sqrt(float(d_in))
        b = 0.1 * jax.random.normal(next(ks), (d_out,), jnp.float32)
        return w, b

    rp = {}
    rp['L_init'] = jax.random.normal(next(ks), (1, lit_dim), jnp.float32) * jnp.sqrt(
        2.0 / (1.0 + lit_dim))                                          # xavier_normal_
    rp['cu_w0'], rp['cu_b0'] = lin(2 * lit_dim, 2 * lit_dim)            # C_update
    rp['cu_w1'], rp['cu_b1'] = lin(2 * lit_dim, clause_dim)
    rp['lu_w0'], rp['lu_b0'] = lin(clause_dim, clause_dim)              # L_update
    rp['lu_w1'], rp['lu_b1'] = lin(clause_dim, lit_dim)
    rp['vd_w0'], rp['vd_b0'] = lin(2 * lit_dim, 2 * lit_dim)            # V_score_drat
    rp['vd_w1'], rp['vd_b1'] = lin(2 * lit_dim, 1)
    rp['vc_w0'], rp['vc_b0'] = lin(2 * lit_dim, 2 * lit_dim)            # V_score_core
    rp['vc_w1'], rp['vc_b1'] = lin(2 * lit_dim, 1)
    rp['cc_w0'], rp['cc_b0'] = lin(clause_dim, clause_dim)              # C_score_core
    rp['cc_w1'], rp['cc_b1'] = lin(clause_dim, 1)
    rp['ln_g'] = jnp.ones((lit_dim,), jnp.float32)                      # LayerNorm affine
    rp['ln_b'] = jnp.zeros((lit_dim,), jnp.float32)
    return rp


def prepare_inputs(G_f32, rp, lit_dim, clause_dim, D=_D, w_dtype=jnp.bfloat16):
    """Split / fuse / pad-to-128-lanes parameters and stack them into few operands."""
    n_clauses, n_lits = G_f32.shape
    Ld = lit_dim
    assert 4 * Ld <= D and clause_dim <= D
    assert n_lits % 2 == 0 and (n_lits // 2) % 8 == 0 and n_clauses >= 2

    def pad2(x, r, c):
        out = jnp.zeros((r, c), jnp.float32)
        return out.at[:x.shape[0], :x.shape[1]].set(x.astype(jnp.float32))

    def row(v):
        return pad2(jnp.reshape(v, (1, -1)), 1, D)

    # Fused K=256 first layers, acting on lane-adjacent [X_top | X_bot] operands.
    cu_w0f = jnp.zeros((2 * D, D), jnp.float32)
    cu_w0f = cu_w0f.at[0:Ld, 0:2 * Ld].set(rp['cu_w0'][:Ld])        # multiplies L
    cu_w0f = cu_w0f.at[D:D + Ld, 0:2 * Ld].set(rp['cu_w0'][Ld:])    # multiplies L_flip

    # V_score_drat | V_score_core fused first layer (drat -> cols 0:2Ld, core -> cols 2Ld:4Ld).
    vs_w0f = jnp.zeros((2 * D, D), jnp.float32)
    vs_w0f = vs_w0f.at[0:Ld, 0:2 * Ld].set(rp['vd_w0'][:Ld])
    vs_w0f = vs_w0f.at[0:Ld, 2 * Ld:4 * Ld].set(rp['vc_w0'][:Ld])
    vs_w0f = vs_w0f.at[D:D + Ld, 0:2 * Ld].set(rp['vd_w0'][Ld:])
    vs_w0f = vs_w0f.at[D:D + Ld, 2 * Ld:4 * Ld].set(rp['vc_w0'][Ld:])

    # Fused score second layer: col 0 = drat head, col 1 = core head.
    vs_w1 = jnp.zeros((D, D), jnp.float32)
    vs_w1 = vs_w1.at[0:2 * Ld, 0].set(rp['vd_w1'][:, 0])
    vs_w1 = vs_w1.at[2 * Ld:4 * Ld, 1].set(rp['vc_w1'][:, 0])

    w256 = jnp.stack([cu_w0f, vs_w0f])                                        # (2, 2D, D)
    w128 = jnp.stack([pad2(rp['cu_w1'], D, D), pad2(rp['lu_w0'], D, D),
                      pad2(rp['lu_w1'], D, D), vs_w1,
                      pad2(rp['cc_w0'], D, D), pad2(rp['cc_w1'], D, D)])      # (6, D, D)

    vs_b0 = jnp.concatenate([rp['vd_b0'], rp['vc_b0']])
    vs_b1 = jnp.concatenate([rp['vd_b1'], rp['vc_b1']])
    mask = jnp.zeros((1, D), jnp.float32).at[0, :Ld].set(1.0)

    rows = jnp.concatenate([
        row(rp['L_init']),                              # 0
        row(rp['cu_b0']), row(rp['cu_b1']),             # 1, 2
        row(rp['lu_b0']), row(rp['lu_b1']),             # 3, 4
        row(vs_b0), row(vs_b1),                         # 5, 6
        row(rp['cc_b0']), row(rp['cc_b1']),             # 7, 8
        row(rp['ln_g']), row(rp['ln_b']),               # 9, 10
        mask,                                           # 11
    ], axis=0)
    rows = jnp.concatenate(
        [rows, jnp.zeros((_N_ROWS - rows.shape[0], D), jnp.float32)], axis=0)  # (16, D)

    # Pad-zero invariants the padded LayerNorm / residual path relies on
    # (lanes >= lit_dim of L must stay exactly zero across hops).
    assert bool(jnp.all(w128[2][:, Ld:] == 0.0))          # lu_w1 pad output columns
    for r in (0, 4, 9, 10):                               # L_init, lu_b1, ln_g, ln_b
        assert bool(jnp.all(rows[r, Ld:] == 0.0))

    G_w = G_f32.astype(w_dtype)                    # 0/1 incidence: lossless in bf16
    Gt_w = jnp.transpose(G_f32).astype(w_dtype)    # pre-transposed once on the host
    return G_w, Gt_w, w256.astype(w_dtype), w128.astype(w_dtype), rows


def _run_prepared(G_w, Gt_w, w256, w128, rows, *, n_hops, lit_dim, cast, precision):
    """Pure-JAX execution of the prepared math (reference paths)."""
    return _gnn1_math(G_w, Gt_w, rows, w256[0], w256[1],
                      w128[0], w128[1], w128[2], w128[3], w128[4], w128[5],
                      n_hops, lit_dim, flip=_flip_ref, cast=cast, precision=precision)


# ------------------------------- f32 reference --------------------------------

def _reference_raw(G, rp, n_hops):
    """Direct f32 jnp transcription of the original torch forward (concats, G.t(), separate
    score MLPs).  Precision.HIGHEST so the structural comparison is not confounded by the
    TPU default-matmul precision."""
    P = jax.lax.Precision.HIGHEST

    def mlp(x, w0, b0, w1, b1):
        h = jnp.maximum(jnp.dot(x, w0, precision=P) + b0, 0.0)
        return jnp.dot(h, w1, precision=P) + b1

    n_clauses, n_lits = G.shape
    half = n_lits // 2
    lit_dim = rp['L_init'].shape[1]

    L = jnp.broadcast_to(rp['L_init'], (n_lits, lit_dim))
    C = None
    for _ in range(n_hops):
        L_flip = jnp.concatenate([L[half:], L[:half]], axis=0)
        C_msg = jnp.dot(G, jnp.concatenate([L, L_flip], axis=1), precision=P)
        C = mlp(C_msg, rp['cu_w0'], rp['cu_b0'], rp['cu_w1'], rp['cu_b1'])
        C = C - jnp.mean(C, axis=0, keepdims=True)
        C = C / (jnp.std(C, axis=0, ddof=1, keepdims=True) + 1e-10)
        L_msg = jnp.dot(G.T, C, precision=P)
        L = mlp(L_msg, rp['lu_w0'], rp['lu_b0'], rp['lu_w1'], rp['lu_b1']) + 0.1 * L
        mu = jnp.mean(L, axis=1, keepdims=True)
        var = jnp.mean((L - mu) ** 2, axis=1, keepdims=True)
        L = (L - mu) / jnp.sqrt(var + 1e-5) * rp['ln_g'] + rp['ln_b']
    V = jnp.concatenate([L[:half], L[half:]], axis=1)
    drat = mlp(V, rp['vd_w0'], rp['vd_b0'], rp['vd_w1'], rp['vd_b1'])
    core = mlp(V, rp['vc_w0'], rp['vc_b0'], rp['vc_w1'], rp['vc_b1'])
    cscore = mlp(C, rp['cc_w0'], rp['cc_b0'], rp['cc_w1'], rp['cc_b1'])
    return drat, core, cscore


# ---------------------------------- main --------------------------------------

if __name__ == "__main__":
    n_clauses, n_lits = 128, 128        # n_vars = 64; M = 128 rows fills an MXU pass
    lit_dim, clause_dim = 16, 16
    n_hops = 2

    key = jax.random.PRNGKey(0)
    k_graph, k_params = jax.random.split(key)

    # Random 0/1 clause-literal incidence matrix (dense stand-in for the sparse G).
    G = (jax.random.uniform(k_graph, (n_clauses, n_lits)) < 0.12).astype(jnp.float32)
    rp = init_raw_params(k_params, lit_dim, clause_dim)

    # Run the Pallas kernel on the bf16-prepared operands.
    ops_bf = prepare_inputs(G, rp, lit_dim, clause_dim, w_dtype=jnp.bfloat16)
    drat, core, cscore = gnn1_forward(*ops_bf, n_hops=n_hops, lit_dim=lit_dim)
    outs = jax.block_until_ready((drat, core, cscore))

    # Check 1 (tight): kernel vs. pure-JAX execution of the identical prepared bf16 math.
    vs1, cs1 = _run_prepared(*ops_bf, n_hops=n_hops, lit_dim=lit_dim,
                             cast=_to_bf16, precision=None)
    ref1 = (vs1[:, 0:1], vs1[:, 1:2], cs1[:, 0:1])

    # Check 2 (semantic/structural): the prepared math (split/fused/padded weights, roll-flip,
    # fused score heads, padded LayerNorm) in full f32 vs. the direct torch-structured f32 math.
    ops_f32 = prepare_inputs(G, rp, lit_dim, clause_dim, w_dtype=jnp.float32)
    vs2, cs2 = _run_prepared(*ops_f32, n_hops=n_hops, lit_dim=lit_dim,
                             cast=lambda x: x, precision=jax.lax.Precision.HIGHEST)
    prep_f32 = (vs2[:, 0:1], vs2[:, 1:2], cs2[:, 0:1])
    raw_f32 = _reference_raw(G, rp, n_hops)

    expected = [(n_lits // 2, 1), (n_lits // 2, 1), (n_clauses, 1)]
    for o, r1, p2, r2, s in zip(outs, ref1, prep_f32, raw_f32, expected):
        assert o.shape == s and r1.shape == s and p2.shape == s and r2.shape == s
        assert bool(jnp.all(jnp.isfinite(o)))
        assert float(jnp.max(jnp.abs(o - r1))) < 2e-2    # kernel == its own bf16 math
        assert float(jnp.max(jnp.abs(p2 - r2))) < 5e-3   # structural transform preserves semantics

    print("KERNEL_OK")
</pallas_src>

<mosaic_0001>
module attributes {stable_mosaic.version = 11 : i64} {
  func.func @gnn1_kernel(%arg0: memref<128x128xbf16, #tpu.memory_space<vmem>>, %arg1: memref<128x128xbf16, #tpu.memory_space<vmem>>, %arg2: memref<2x256x128xbf16, #tpu.memory_space<vmem>>, %arg3: memref<6x128x128xbf16, #tpu.memory_space<vmem>>, %arg4: memref<16x128xf32, #tpu.memory_space<vmem>>, %arg5: memref<192x128xf32, #tpu.memory_space<vmem>>) attributes {dimension_semantics = [], scalar_prefetch = 0 : i64, scratch_operands = 0 : i64, tpu.core_type = #tpu.core_type<tc>} {
    %c0 = arith.constant 0 : index
    %c0_0 = arith.constant 0 : index
    %0 = vector.load %arg0[%c0, %c0_0] : memref<128x128xbf16, #tpu.memory_space<vmem>>, vector<128x128xbf16>
    %c0_1 = arith.constant 0 : index
    %c0_2 = arith.constant 0 : index
    %1 = vector.load %arg1[%c0_1, %c0_2] : memref<128x128xbf16, #tpu.memory_space<vmem>>, vector<128x128xbf16>
    %c0_3 = arith.constant 0 : index
    %c0_4 = arith.constant 0 : index
    %2 = vector.load %arg4[%c0_3, %c0_4] : memref<16x128xf32, #tpu.memory_space<vmem>>, vector<16x128xf32>
    %c0_5 = arith.constant 0 : index
    %c0_6 = arith.constant 0 : index
    %c0_7 = arith.constant 0 : index
    %3 = vector.load %arg2[%c0_5, %c0_6, %c0_7] : memref<2x256x128xbf16, #tpu.memory_space<vmem>>, vector<1x256x128xbf16>
    %4 = vector.shape_cast %3 : vector<1x256x128xbf16> to vector<256x128xbf16>
    %c1 = arith.constant 1 : index
    %c0_8 = arith.constant 0 : index
    %c0_9 = arith.constant 0 : index
    %5 = vector.load %arg2[%c1, %c0_8, %c0_9] : memref<2x256x128xbf16, #tpu.memory_space<vmem>>, vector<1x256x128xbf16>
    %6 = vector.shape_cast %5 : vector<1x256x128xbf16> to vector<256x128xbf16>
    %c0_10 = arith.constant 0 : index
    %c0_11 = arith.constant 0 : index
    %c0_12 = arith.constant 0 : index
    %7 = vector.load %arg3[%c0_10, %c0_11, %c0_12] : memref<6x128x128xbf16, #tpu.memory_space<vmem>>, vector<1x128x128xbf16>
    %8 = vector.shape_cast %7 : vector<1x128x128xbf16> to vector<128x128xbf16>
    %c1_13 = arith.constant 1 : index
    %c0_14 = arith.constant 0 : index
    %c0_15 = arith.constant 0 : index
    %9 = vector.load %arg3[%c1_13, %c0_14, %c0_15] : memref<6x128x128xbf16, #tpu.memory_space<vmem>>, vector<1x128x128xbf16>
    %10 = vector.shape_cast %9 : vector<1x128x128xbf16> to vector<128x128xbf16>
    %c2 = arith.constant 2 : index
    %c0_16 = arith.constant 0 : index
    %c0_17 = arith.constant 0 : index
    %11 = vector.load %arg3[%c2, %c0_16, %c0_17] : memref<6x128x128xbf16, #tpu.memory_space<vmem>>, vector<1x128x128xbf16>
    %12 = vector.shape_cast %11 : vector<1x128x128xbf16> to vector<128x128xbf16>
    %c3 = arith.constant 3 : index
    %c0_18 = arith.constant 0 : index
    %c0_19 = arith.constant 0 : index
    %13 = vector.load %arg3[%c3, %c0_18, %c0_19] : memref<6x128x128xbf16, #tpu.memory_space<vmem>>, vector<1x128x128xbf16>
    %14 = vector.shape_cast %13 : vector<1x128x128xbf16> to vector<128x128xbf16>
    %c4 = arith.constant 4 : index
    %c0_20 = arith.constant 0 : index
    %c0_21 = arith.constant 0 : index
    %15 = vector.load %arg3[%c4, %c0_20, %c0_21] : memref<6x128x128xbf16, #tpu.memory_space<vmem>>, vector<1x128x128xbf16>
    %16 = vector.shape_cast %15 : vector<1x128x128xbf16> to vector<128x128xbf16>
    %c5 = arith.constant 5 : index
    %c0_22 = arith.constant 0 : index
    %c0_23 = arith.constant 0 : index
    %17 = vector.load %arg3[%c5, %c0_22, %c0_23] : memref<6x128x128xbf16, #tpu.memory_space<vmem>>, vector<1x128x128xbf16>
    %18 = vector.shape_cast %17 : vector<1x128x128xbf16> to vector<128x128xbf16>
    %19 = vector.extract_strided_slice %2 {offsets = [0, 0], sizes = [1, 128], strides = [1, 1]} : vector<16x128xf32> to vector<1x128xf32>
    %20 = vector.extract_strided_slice %2 {offsets = [1, 0], sizes = [1, 128], strides = [1, 1]} : vector<16x128xf32> to vector<1x128xf32>
    %21 = vector.extract_strided_slice %2 {offsets = [2, 0], sizes = [1, 128], strides = [1, 1]} : vector<16x128xf32> to vector<1x128xf32>
    %22 = vector.extract_strided_slice %2 {offsets = [3, 0], sizes = [1, 128], strides = [1, 1]} : vector<16x128xf32> to vector<1x128xf32>
    %23 = vector.extract_strided_slice %2 {offsets = [4, 0], sizes = [1, 128], strides = [1, 1]} : vector<16x128xf32> to vector<1x128xf32>
    %24 = vector.extract_strided_slice %2 {offsets = [5, 0], sizes = [1, 128], strides = [1, 1]} : vector<16x128xf32> to vector<1x128xf32>
    %25 = vector.extract_strided_slice %2 {offsets = [6, 0], sizes = [1, 128], strides = [1, 1]} : vector<16x128xf32> to vector<1x128xf32>
    %26 = vector.extract_strided_slice %2 {offsets = [7, 0], sizes = [1, 128], strides = [1, 1]} : vector<16x128xf32> to vector<1x128xf32>
    %27 = vector.extract_strided_slice %2 {offsets = [8, 0], sizes = [1, 128], strides = [1, 1]} : vector<16x128xf32> to vector<1x128xf32>
    %28 = vector.extract_strided_slice %2 {offsets = [9, 0], sizes = [1, 128], strides = [1, 1]} : vector<16x128xf32> to vector<1x128xf32>
    %29 = vector.extract_strided_slice %2 {offsets = [10, 0], sizes = [1, 128], strides = [1, 1]} : vector<16x128xf32> to vector<1x128xf32>
    %30 = vector.extract_strided_slice %2 {offsets = [11, 0], sizes = [1, 128], strides = [1, 1]} : vector<16x128xf32> to vector<1x128xf32>
    %31 = vector.shape_cast %19 : vector<1x128xf32> to vector<1x128xf32>
    %32 = vector.broadcast %31 : vector<1x128xf32> to vector<128x128xf32>
    %c64_i32 = arith.constant 64 : i32
    %33 = tpu.dynamic_rotate %32 by %c64_i32 dim 0 : vector<128x128xf32>, i32 -> vector<128x128xf32>
    %34 = arith.truncf %32 : vector<128x128xf32> to vector<128x128xbf16>
    %35 = arith.truncf %33 : vector<128x128xf32> to vector<128x128xbf16>
    %36 = tpu.concatenate %34, %35 in 1 : vector<128x128xbf16>, vector<128x128xbf16> -> vector<128x256xbf16>
    %cst = arith.constant dense<0.000000e+00> : vector<128x128xf32>
    %37 = tpu.matmul %36, %4, %cst {dimension_numbers = #tpu.dot_dimension_numbers<[1], [0], [0], [1], [0, 0, 1, 1], [], []>} : vector<128x256xbf16>, vector<256x128xbf16>, vector<128x128xf32> -> vector<128x128xf32>
    %38 = arith.truncf %37 : vector<128x128xf32> to vector<128x128xbf16>
    %cst_24 = arith.constant dense<0.000000e+00> : vector<128x128xf32>
    %39 = tpu.matmul %0, %38, %cst_24 {dimension_numbers = #tpu.dot_dimension_numbers<[1], [0], [0], [1], [0, 0, 1, 1], [], []>} : vector<128x128xbf16>, vector<128x128xbf16>, vector<128x128xf32> -> vector<128x128xf32>
    %40 = vector.broadcast %20 : vector<1x128xf32> to vector<128x128xf32>
    %41 = arith.addf %39, %40 : vector<128x128xf32>
    %cst_25 = arith.constant 0.000000e+00 : f32
    %42 = vector.broadcast %cst_25 : f32 to vector<128x128xf32>
    %43 = arith.maximumf %41, %42 : vector<128x128xf32>
    %44 = arith.truncf %43 : vector<128x128xf32> to vector<128x128xbf16>
    %cst_26 = arith.constant dense<0.000000e+00> : vector<128x128xf32>
    %45 = tpu.matmul %44, %8, %cst_26 {dimension_numbers = #tpu.dot_dimension_numbers<[1], [0], [0], [1], [0, 0, 1, 1], [], []>} : vector<128x128xbf16>, vector<128x128xbf16>, vector<128x128xf32> -> vector<128x128xf32>
    %46 = vector.broadcast %21 : vector<1x128xf32> to vector<128x128xf32>
    %47 = arith.addf %45, %46 : vector<128x128xf32>
    %cst_27 = arith.constant dense<0.000000e+00> : vector<128xf32>
    %48 = vector.multi_reduction <add>, %47, %cst_27 [0] : vector<128x128xf32> to vector<128xf32>
    %49 = vector.shape_cast %48 : vector<128xf32> to vector<1x128xf32>
    %cst_28 = arith.constant 1.280000e+02 : f32
    %50 = vector.broadcast %cst_28 : f32 to vector<1x128xf32>
    %51 = arith.divf %49, %50 : vector<1x128xf32>
    %52 = vector.broadcast %51 : vector<1x128xf32> to vector<128x128xf32>
    %53 = arith.subf %47, %52 : vector<128x128xf32>
    %54 = arith.mulf %53, %53 : vector<128x128xf32>
    %cst_29 = arith.constant dense<0.000000e+00> : vector<128xf32>
    %55 = vector.multi_reduction <add>, %54, %cst_29 [0] : vector<128x128xf32> to vector<128xf32>
    %56 = vector.shape_cast %55 : vector<128xf32> to vector<1x128xf32>
    %cst_30 = arith.constant 0.00787401571 : f32
    %57 = vector.broadcast %cst_30 : f32 to vector<1x128xf32>
    %58 = arith.mulf %56, %57 : vector<1x128xf32>
    %59 = math.sqrt %58 : vector<1x128xf32>
    %cst_31 = arith.constant 1.000000e-10 : f32
    %60 = vector.broadcast %cst_31 : f32 to vector<1x128xf32>
    %61 = arith.addf %59, %60 : vector<1x128xf32>
    %cst_32 = arith.constant 1.000000e+00 : f32
    %62 = vector.broadcast %cst_32 : f32 to vector<1x128xf32>
    %63 = arith.divf %62, %61 : vector<1x128xf32>
    %64 = vector.broadcast %63 : vector<1x128xf32> to vector<128x128xf32>
    %65 = arith.mulf %53, %64 : vector<128x128xf32>
    %66 = arith.truncf %65 : vector<128x128xf32> to vector<128x128xbf16>
    %cst_33 = arith.constant dense<0.000000e+00> : vector<128x128xf32>
    %67 = tpu.matmul %1, %66, %cst_33 {dimension_numbers = #tpu.dot_dimension_numbers<[1], [0], [0], [1], [0, 0, 1, 1], [], []>} : vector<128x128xbf16>, vector<128x128xbf16>, vector<128x128xf32> -> vector<128x128xf32>
    %68 = arith.truncf %67 : vector<128x128xf32> to vector<128x128xbf16>
    %cst_34 = arith.constant dense<0.000000e+00> : vector<128x128xf32>
    %69 = tpu.matmul %68, %10, %cst_34 {dimension_numbers = #tpu.dot_dimension_numbers<[1], [0], [0], [1], [0, 0, 1, 1], [], []>} : vector<128x128xbf16>, vector<128x128xbf16>, vector<128x128xf32> -> vector<128x128xf32>
    %70 = vector.broadcast %22 : vector<1x128xf32> to vector<128x128xf32>
    %71 = arith.addf %69, %70 : vector<128x128xf32>
    %cst_35 = arith.constant 0.000000e+00 : f32
    %72 = vector.broadcast %cst_35 : f32 to vector<128x128xf32>
    %73 = arith.maximumf %71, %72 : vector<128x128xf32>
    %74 = arith.truncf %73 : vector<128x128xf32> to vector<128x128xbf16>
    %cst_36 = arith.constant dense<0.000000e+00> : vector<128x128xf32>
    %75 = tpu.matmul %74, %12, %cst_36 {dimension_numbers = #tpu.dot_dimension_numbers<[1], [0], [0], [1], [0, 0, 1, 1], [], []>} : vector<128x128xbf16>, vector<128x128xbf16>, vector<128x128xf32> -> vector<128x128xf32>
    %76 = vector.broadcast %23 : vector<1x128xf32> to vector<128x128xf32>
    %77 = arith.addf %75, %76 : vector<128x128xf32>
    %cst_37 = arith.constant 1.000000e-01 : f32
    %78 = vector.broadcast %cst_37 : f32 to vector<128x128xf32>
    %79 = arith.mulf %78, %32 : vector<128x128xf32>
    %80 = arith.addf %77, %79 : vector<128x128xf32>
    %cst_38 = arith.constant dense<0.000000e+00> : vector<128xf32>
    %81 = vector.multi_reduction <add>, %80, %cst_38 [1] : vector<128x128xf32> to vector<128xf32>
    %82 = vector.shape_cast %81 : vector<128xf32> to vector<128x1xf32>
    %cst_39 = arith.constant 6.250000e-02 : f32
    %83 = vector.broadcast %cst_39 : f32 to vector<128x1xf32>
    %84 = arith.mulf %82, %83 : vector<128x1xf32>
    %85 = vector.broadcast %84 : vector<128x1xf32> to vector<128x128xf32>
    %86 = arith.subf %80, %85 : vector<128x128xf32>
    %87 = vector.broadcast %30 : vector<1x128xf32> to vector<128x128xf32>
    %88 = arith.mulf %86, %87 : vector<128x128xf32>
    %89 = arith.mulf %88, %88 : vector<128x128xf32>
    %cst_40 = arith.constant dense<0.000000e+00> : vector<128xf32>
    %90 = vector.multi_reduction <add>, %89, %cst_40 [1] : vector<128x128xf32> to vector<128xf32>
    %91 = vector.shape_cast %90 : vector<128xf32> to vector<128x1xf32>
    %cst_41 = arith.constant 6.250000e-02 : f32
    %92 = vector.broadcast %cst_41 : f32 to vector<128x1xf32>
    %93 = arith.mulf %91, %92 : vector<128x1xf32>
    %cst_42 = arith.constant 9.99999974E-6 : f32
    %94 = vector.broadcast %cst_42 : f32 to vector<128x1xf32>
    %95 = arith.addf %93, %94 : vector<128x1xf32>
    %96 = math.rsqrt %95 : vector<128x1xf32>
    %97 = vector.broadcast %96 : vector<128x1xf32> to vector<128x128xf32>
    %98 = arith.mulf %88, %97 : vector<128x128xf32>
    %99 = vector.broadcast %28 : vector<1x128xf32> to vector<128x128xf32>
    %100 = arith.mulf %98, %99 : vector<128x128xf32>
    %101 = vector.broadcast %29 : vector<1x128xf32> to vector<128x128xf32>
    %102 = arith.addf %100, %101 : vector<128x128xf32>
    %c64_i32_43 = arith.constant 64 : i32
    %103 = tpu.dynamic_rotate %102 by %c64_i32_43 dim 0 : vector<128x128xf32>, i32 -> vector<128x128xf32>
    %104 = arith.truncf %102 : vector<128x128xf32> to vector<128x128xbf16>
    %105 = arith.truncf %103 : vector<128x128xf32> to vector<128x128xbf16>
    %106 = tpu.concatenate %104, %105 in 1 : vector<128x128xbf16>, vector<128x128xbf16> -> vector<128x256xbf16>
    %cst_44 = arith.constant dense<0.000000e+00> : vector<128x128xf32>
    %107 = tpu.matmul %106, %4, %cst_44 {dimension_numbers = #tpu.dot_dimension_numbers<[1], [0], [0], [1], [0, 0, 1, 1], [], []>} : vector<128x256xbf16>, vector<256x128xbf16>, vector<128x128xf32> -> vector<128x128xf32>
    %108 = arith.truncf %107 : vector<128x128xf32> to vector<128x128xbf16>
    %cst_45 = arith.constant dense<0.000000e+00> : vector<128x128xf32>
    %109 = tpu.matmul %0, %108, %cst_45 {dimension_numbers = #tpu.dot_dimension_numbers<[1], [0], [0], [1], [0, 0, 1, 1], [], []>} : vector<128x128xbf16>, vector<128x128xbf16>, vector<128x128xf32> -> vector<128x128xf32>
    %110 = vector.broadcast %20 : vector<1x128xf32> to vector<128x128xf32>
    %111 = arith.addf %109, %110 : vector<128x128xf32>
    %cst_46 = arith.constant 0.000000e+00 : f32
    %112 = vector.broadcast %cst_46 : f32 to vector<128x128xf32>
    %113 = arith.maximumf %111, %112 : vector<128x128xf32>
    %114 = arith.truncf %113 : vector<128x128xf32> to vector<128x128xbf16>
    %cst_47 = arith.constant dense<0.000000e+00> : vector<128x128xf32>
    %115 = tpu.matmul %114, %8, %cst_47 {dimension_numbers = #tpu.dot_dimension_numbers<[1], [0], [0], [1], [0, 0, 1, 1], [], []>} : vector<128x128xbf16>, vector<128x128xbf16>, vector<128x128xf32> -> vector<128x128xf32>
    %116 = vector.broadcast %21 : vector<1x128xf32> to vector<128x128xf32>
    %117 = arith.addf %115, %116 : vector<128x128xf32>
    %cst_48 = arith.constant dense<0.000000e+00> : vector<128xf32>
    %118 = vector.multi_reduction <add>, %117, %cst_48 [0] : vector<128x128xf32> to vector<128xf32>
    %119 = vector.shape_cast %118 : vector<128xf32> to vector<1x128xf32>
    %cst_49 = arith.constant 1.280000e+02 : f32
    %120 = vector.broadcast %cst_49 : f32 to vector<1x128xf32>
    %121 = arith.divf %119, %120 : vector<1x128xf32>
    %122 = vector.broadcast %121 : vector<1x128xf32> to vector<128x128xf32>
    %123 = arith.subf %117, %122 : vector<128x128xf32>
    %124 = arith.mulf %123, %123 : vector<128x128xf32>
    %cst_50 = arith.constant dense<0.000000e+00> : vector<128xf32>
    %125 = vector.multi_reduction <add>, %124, %cst_50 [0] : vector<128x128xf32> to vector<128xf32>
    %126 = vector.shape_cast %125 : vector<128xf32> to vector<1x128xf32>
    %cst_51 = arith.constant 0.00787401571 : f32
    %127 = vector.broadcast %cst_51 : f32 to vector<1x128xf32>
    %128 = arith.mulf %126, %127 : vector<1x128xf32>
    %129 = math.sqrt %128 : vector<1x128xf32>
    %cst_52 = arith.constant 1.000000e-10 : f32
    %130 = vector.broadcast %cst_52 : f32 to vector<1x128xf32>
    %131 = arith.addf %129, %130 : vector<1x128xf32>
    %cst_53 = arith.constant 1.000000e+00 : f32
    %132 = vector.broadcast %cst_53 : f32 to vector<1x128xf32>
    %133 = arith.divf %132, %131 : vector<1x128xf32>
    %134 = vector.broadcast %133 : vector<1x128xf32> to vector<128x128xf32>
    %135 = arith.mulf %123, %134 : vector<128x128xf32>
    %136 = arith.truncf %135 : vector<128x128xf32> to vector<128x128xbf16>
    %cst_54 = arith.constant dense<0.000000e+00> : vector<128x128xf32>
    %137 = tpu.matmul %1, %136, %cst_54 {dimension_numbers = #tpu.dot_dimension_numbers<[1], [0], [0], [1], [0, 0, 1, 1], [], []>} : vector<128x128xbf16>, vector<128x128xbf16>, vector<128x128xf32> -> vector<128x128xf32>
    %138 = arith.truncf %137 : vector<128x128xf32> to vector<128x128xbf16>
    %cst_55 = arith.constant dense<0.000000e+00> : vector<128x128xf32>
    %139 = tpu.matmul %138, %10, %cst_55 {dimension_numbers = #tpu.dot_dimension_numbers<[1], [0], [0], [1], [0, 0, 1, 1], [], []>} : vector<128x128xbf16>, vector<128x128xbf16>, vector<128x128xf32> -> vector<128x128xf32>
    %140 = vector.broadcast %22 : vector<1x128xf32> to vector<128x128xf32>
    %141 = arith.addf %139, %140 : vector<128x128xf32>
    %cst_56 = arith.constant 0.000000e+00 : f32
    %142 = vector.broadcast %cst_56 : f32 to vector<128x128xf32>
    %143 = arith.maximumf %141, %142 : vector<128x128xf32>
    %144 = arith.truncf %143 : vector<128x128xf32> to vector<128x128xbf16>
    %cst_57 = arith.constant dense<0.000000e+00> : vector<128x128xf32>
    %145 = tpu.matmul %144, %12, %cst_57 {dimension_numbers = #tpu.dot_dimension_numbers<[1], [0], [0], [1], [0, 0, 1, 1], [], []>} : vector<128x128xbf16>, vector<128x128xbf16>, vector<128x128xf32> -> vector<128x128xf32>
    %146 = vector.broadcast %23 : vector<1x128xf32> to vector<128x128xf32>
    %147 = arith.addf %145, %146 : vector<128x128xf32>
    %cst_58 = arith.constant 1.000000e-01 : f32
    %148 = vector.broadcast %cst_58 : f32 to vector<128x128xf32>
    %149 = arith.mulf %148, %102 : vector<128x128xf32>
    %150 = arith.addf %147, %149 : vector<128x128xf32>
    %cst_59 = arith.constant dense<0.000000e+00> : vector<128xf32>
    %151 = vector.multi_reduction <add>, %150, %cst_59 [1] : vector<128x128xf32> to vector<128xf32>
    %152 = vector.shape_cast %151 : vector<128xf32> to vector<128x1xf32>
    %cst_60 = arith.constant 6.250000e-02 : f32
    %153 = vector.broadcast %cst_60 : f32 to vector<128x1xf32>
    %154 = arith.mulf %152, %153 : vector<128x1xf32>
    %155 = vector.broadcast %154 : vector<128x1xf32> to vector<128x128xf32>
    %156 = arith.subf %150, %155 : vector<128x128xf32>
    %157 = vector.broadcast %30 : vector<1x128xf32> to vector<128x128xf32>
    %158 = arith.mulf %156, %157 : vector<128x128xf32>
    %159 = arith.mulf %158, %158 : vector<128x128xf32>
    %cst_61 = arith.constant dense<0.000000e+00> : vector<128xf32>
    %160 = vector.multi_reduction <add>, %159, %cst_61 [1] : vector<128x128xf32> to vector<128xf32>
    %161 = vector.shape_cast %160 : vector<128xf32> to vector<128x1xf32>
    %cst_62 = arith.constant 6.250000e-02 : f32
    %162 = vector.broadcast %cst_62 : f32 to vector<128x1xf32>
    %163 = arith.mulf %161, %162 : vector<128x1xf32>
    %cst_63 = arith.constant 9.99999974E-6 : f32
    %164 = vector.broadcast %cst_63 : f32 to vector<128x1xf32>
    %165 = arith.addf %163, %164 : vector<128x1xf32>
    %166 = math.rsqrt %165 : vector<128x1xf32>
    %167 = vector.broadcast %166 : vector<128x1xf32> to vector<128x128xf32>
    %168 = arith.mulf %158, %167 : vector<128x128xf32>
    %169 = vector.broadcast %28 : vector<1x128xf32> to vector<128x128xf32>
    %170 = arith.mulf %168, %169 : vector<128x128xf32>
    %171 = vector.broadcast %29 : vector<1x128xf32> to vector<128x128xf32>
    %172 = arith.addf %170, %171 : vector<128x128xf32>
    %173 = vector.extract_strided_slice %172 {offsets = [0, 0], sizes = [64, 128], strides = [1, 1]} : vector<128x128xf32> to vector<64x128xf32>
    %174 = arith.truncf %173 : vector<64x128xf32> to vector<64x128xbf16>
    %175 = vector.extract_strided_slice %172 {offsets = [64, 0], sizes = [64, 128], strides = [1, 1]} : vector<128x128xf32> to vector<64x128xf32>
    %176 = arith.truncf %175 : vector<64x128xf32> to vector<64x128xbf16>
    %177 = tpu.concatenate %174, %176 in 1 : vector<64x128xbf16>, vector<64x128xbf16> -> vector<64x256xbf16>
    %cst_64 = arith.constant dense<0.000000e+00> : vector<64x128xf32>
    %178 = tpu.matmul %177, %6, %cst_64 {dimension_numbers = #tpu.dot_dimension_numbers<[1], [0], [0], [1], [0, 0, 1, 1], [], []>} : vector<64x256xbf16>, vector<256x128xbf16>, vector<64x128xf32> -> vector<64x128xf32>
    %179 = vector.broadcast %24 : vector<1x128xf32> to vector<64x128xf32>
    %180 = arith.addf %178, %179 : vector<64x128xf32>
    %cst_65 = arith.constant 0.000000e+00 : f32
    %181 = vector.broadcast %cst_65 : f32 to vector<64x128xf32>
    %182 = arith.maximumf %180, %181 : vector<64x128xf32>
    %183 = arith.truncf %182 : vector<64x128xf32> to vector<64x128xbf16>
    %cst_66 = arith.constant dense<0.000000e+00> : vector<64x128xf32>
    %184 = tpu.matmul %183, %14, %cst_66 {dimension_numbers = #tpu.dot_dimension_numbers<[1], [0], [0], [1], [0, 0, 1, 1], [], []>} : vector<64x128xbf16>, vector<128x128xbf16>, vector<64x128xf32> -> vector<64x128xf32>
    %185 = vector.broadcast %25 : vector<1x128xf32> to vector<64x128xf32>
    %186 = arith.addf %184, %185 : vector<64x128xf32>
    %187 = arith.truncf %135 : vector<128x128xf32> to vector<128x128xbf16>
    %cst_67 = arith.constant dense<0.000000e+00> : vector<128x128xf32>
    %188 = tpu.matmul %187, %16, %cst_67 {dimension_numbers = #tpu.dot_dimension_numbers<[1], [0], [0], [1], [0, 0, 1, 1], [], []>} : vector<128x128xbf16>, vector<128x128xbf16>, vector<128x128xf32> -> vector<128x128xf32>
    %189 = vector.broadcast %26 : vector<1x128xf32> to vector<128x128xf32>
    %190 = arith.addf %188, %189 : vector<128x128xf32>
    %cst_68 = arith.constant 0.000000e+00 : f32
    %191 = vector.broadcast %cst_68 : f32 to vector<128x128xf32>
    %192 = arith.maximumf %190, %191 : vector<128x128xf32>
    %193 = arith.truncf %192 : vector<128x128xf32> to vector<128x128xbf16>
    %cst_69 = arith.constant dense<0.000000e+00> : vector<128x128xf32>
    %194 = tpu.matmul %193, %18, %cst_69 {dimension_numbers = #tpu.dot_dimension_numbers<[1], [0], [0], [1], [0, 0, 1, 1], [], []>} : vector<128x128xbf16>, vector<128x128xbf16>, vector<128x128xf32> -> vector<128x128xf32>
    %195 = vector.broadcast %27 : vector<1x128xf32> to vector<128x128xf32>
    %196 = arith.addf %194, %195 : vector<128x128xf32>
    %c0_70 = arith.constant 0 : index
    %c0_71 = arith.constant 0 : index
    %197 = vector.load %arg5[%c0_70, %c0_71] : memref<192x128xf32, #tpu.memory_space<vmem>>, vector<64x128xf32>
    tpu.vector_store %arg5[%c0_70, %c0_71], %186 {strides = array<i32>} : memref<192x128xf32, #tpu.memory_space<vmem>>, vector<64x128xf32>,
    %c64 = arith.constant 64 : index
    %c0_72 = arith.constant 0 : index
    %198 = vector.load %arg5[%c64, %c0_72] : memref<192x128xf32, #tpu.memory_space<vmem>>, vector<128x128xf32>
    tpu.vector_store %arg5[%c64, %c0_72], %196 {strides = array<i32>} : memref<192x128xf32, #tpu.memory_space<vmem>>, vector<128x128xf32>,
    return
  }
}

</mosaic_0001>

<llo_original>
// kernel: tpu_custom_call.1
$region0: #{tpu_custom_call.1}
  #allocation0 [shape = 'u32[]', space=smem, size = 0x4, offset = 0x4, fixed_abs, tag = 'smem constant byte address 0x4 - core index']
  #allocation1 [shape = 'u32[144,128]{1,0:T(1,128)}', space=vmem, size = 0x12000, scoped, tag = 'internal scratch']
  %s0 = inlined_call_operand.hbm [shape: bf16[128,128], index: 0, kind: input, shape index: {}]
  %s1 = inlined_call_operand.hbm [shape: bf16[128,128], index: 1, kind: input, shape index: {}]
  %s2 = inlined_call_operand.hbm [shape: bf16[2,256,128], index: 2, kind: input, shape index: {}]
  %s3 = inlined_call_operand.hbm [shape: bf16[6,128,128], index: 3, kind: input, shape index: {}]
  %s4 = inlined_call_operand.hbm [shape: f32[16,128], index: 4, kind: input, shape index: {}]
  %s5 = inlined_call_operand.hbm [shape: f32[192,128], index: 5, kind: output, shape index: {}]
  %s6 = sld [smem:[#allocation0]]
  $region50: #{tpu_custom_call.1} parent=0
    _
  %s8 = ssub.s32 1, %s6
  %s9 = scalar_select 0, %s8, %s6
  $region1: #{tpu_custom_call.1} parent=0
    #allocation2 [shape = 'u8[32768]{0}', space=vmem, size = 0x8000, scoped, tag = 'input window, operand 0, single buffered']
    #allocation3 [shape = 's32[1]{0}', space=sflag, size = 0x4, scoped, tag = 'scoped memory for tpu_custom_call.1']
    #allocation4 [shape = 's32[1]{0}', space=sflag, size = 0x4, scoped, tag = 'scoped memory for tpu_custom_call.1']
    #allocation5 [shape = 'u8[32768]{0}', space=vmem, size = 0x8000, scoped, tag = 'input window, operand 1, single buffered']
    #allocation6 [shape = 's32[1]{0}', space=sflag, size = 0x4, scoped, tag = 'scoped memory for tpu_custom_call.1']
    #allocation7 [shape = 'u8[131072]{0}', space=vmem, size = 0x20000, scoped, tag = 'input window, operand 2, single buffered']
    #allocation8 [shape = 'u8[196608]{0}', space=vmem, size = 0x30000, scoped, tag = 'input window, operand 3, single buffered']
    #allocation9 [shape = 's32[1]{0}', space=sflag, size = 0x4, scoped, tag = 'scoped memory for tpu_custom_call.1']
    #allocation10 [shape = 'u8[8192]{0}', space=vmem, size = 0x2000, scoped, tag = 'input window, operand 4, single buffered']
    #allocation11 [shape = 'u8[98304]{0}', space=vmem, size = 0x18000, scoped, tag = 'output window, operand 0, single buffered']
    %10 = vsyncpa [#allocation3], 0
    %11 = vsyncpa [#allocation6], 0
    %12 = vsyncpa [#allocation9], 0
    %13 = vsyncpa [#allocation4], 0
    // Predicated region
    $region2: #{tpu_custom_call.1} parent=1 // pred_check
      _
    $region3: #{tpu_custom_call.1} parent=1 // pred_check_branch
      %15 = sbr.rel (0) target = $region5
    $region4: #{tpu_custom_call.1} parent=1 // pred_region
      %s17 = ssub.s32 1024, 1024
      %18 = vsyncadd [#allocation3], %s17
      %s19 = sshll.u32 [#allocation2], 4
      %s20 = int_to_ptr.vmem [resolvable:$true] %s19
      %25 = dma.hbm_to_vmem [thread:$0]  %s0, 1024, %s20, [#allocation3], 64, 64, 4
    $region5: #{tpu_custom_call.1} parent=1 // pred_fallthru
      _
    // Predicated region
    $region6: #{tpu_custom_call.1} parent=1 // pred_check
      _
    $region7: #{tpu_custom_call.1} parent=1 // pred_check_branch
      %27 = sbr.rel (0) target = $region9
    $region8: #{tpu_custom_call.1} parent=1 // pred_region
      %s29 = ssub.s32 1024, 1024
      %30 = vsyncadd [#allocation6], %s29
      %s31 = sshll.u32 [#allocation5], 4
      %s32 = int_to_ptr.vmem [resolvable:$true] %s31
      %37 = dma.hbm_to_vmem [thread:$0]  %s1, 1024, %s32, [#allocation6], 64, 64, 4
    $region9: #{tpu_custom_call.1} parent=1 // pred_fallthru
      _
    // Predicated region
    $region10: #{tpu_custom_call.1} parent=1 // pred_check
      _
    $region11: #{tpu_custom_call.1} parent=1 // pred_check_branch
      %39 = sbr.rel (0) target = $region13
    $region12: #{tpu_custom_call.1} parent=1 // pred_region
      %s41 = ssub.s32 4096, 4096
      %42 = vsyncadd [#allocation6], %s41
      %s43 = sshll.u32 [#allocation7], 4
      %s44 = int_to_ptr.vmem [resolvable:$true] %s43
      %49 = dma.hbm_to_vmem [thread:$0]  %s2, 4096, %s44, [#allocation6], 64, 64, 4
    $region13: #{tpu_custom_call.1} parent=1 // pred_fallthru
      _
    // Predicated region
    $region14: #{tpu_custom_call.1} parent=1 // pred_check
      _
    $region15: #{tpu_custom_call.1} parent=1 // pred_check_branch
      %51 = sbr.rel (0) target = $region17
    $region16: #{tpu_custom_call.1} parent=1 // pred_region
      %s53 = ssub.s32 6144, 6144
      %54 = vsyncadd [#allocation9], %s53
      %s55 = sshll.u32 [#allocation8], 4
      %s56 = int_to_ptr.vmem [resolvable:$true] %s55
      %61 = dma.hbm_to_vmem [thread:$0]  %s3, 6144, %s56, [#allocation9], 64, 64, 4
    $region17: #{tpu_custom_call.1} parent=1 // pred_fallthru
      _
    // Predicated region
    $region18: #{tpu_custom_call.1} parent=1 // pred_check
      _
    $region19: #{tpu_custom_call.1} parent=1 // pred_check_branch
      %63 = sbr.rel (0) target = $region21
    $region20: #{tpu_custom_call.1} parent=1 // pred_region
      %s65 = ssub.s32 256, 256
      %66 = vsyncadd [#allocation9], %s65
      %s67 = sshll.u32 [#allocation10], 4
      %s68 = int_to_ptr.vmem [resolvable:$true] %s67
      %73 = dma.hbm_to_vmem [thread:$0]  %s4, 256, %s68, [#allocation9], 128, 128, 8
    $region21: #{tpu_custom_call.1} parent=1 // pred_fallthru
      _
    // Predicated region
    $region22: #{tpu_custom_call.1} parent=1 // pred_check
      _
    $region23: #{tpu_custom_call.1} parent=1 // pred_check_branch
      %75 = sbr.rel (0) target = $region25
    $region24: #{tpu_custom_call.1} parent=1 // pred_region
      %76 = dma.done [#allocation3], 1024
    $region25: #{tpu_custom_call.1} parent=1 // pred_fallthru
      _
    // Predicated region
    $region26: #{tpu_custom_call.1} parent=1 // pred_check
      _
    $region27: #{tpu_custom_call.1} parent=1 // pred_check_branch
      %78 = sbr.rel (0) target = $region29
    $region28: #{tpu_custom_call.1} parent=1 // pred_region
      %79 = dma.done [#allocation6], 1024
    $region29: #{tpu_custom_call.1} parent=1 // pred_fallthru
      _
    // Predicated region
    $region30: #{tpu_custom_call.1} parent=1 // pred_check
      _
    $region31: #{tpu_custom_call.1} parent=1 // pred_check_branch
      %81 = sbr.rel (0) target = $region33
    $region32: #{tpu_custom_call.1} parent=1 // pred_region
      %82 = dma.done [#allocation6], 4096
    $region33: #{tpu_custom_call.1} parent=1 // pred_fallthru
      _
    // Predicated region
    $region34: #{tpu_custom_call.1} parent=1 // pred_check
      _
    $region35: #{tpu_custom_call.1} parent=1 // pred_check_branch
      %84 = sbr.rel (0) target = $region37
    $region36: #{tpu_custom_call.1} parent=1 // pred_region
      %85 = dma.done [#allocation9], 6144
    $region37: #{tpu_custom_call.1} parent=1 // pred_fallthru
      _
    // Predicated region
    $region38: #{tpu_custom_call.1} parent=1 // pred_check
      _
    $region39: #{tpu_custom_call.1} parent=1 // pred_check_branch
      %87 = sbr.rel (0) target = $region41
    $region40: #{tpu_custom_call.1} parent=1 // pred_region
      %88 = dma.done [#allocation9], 256
    $region41: #{tpu_custom_call.1} parent=1 // pred_fallthru
      _
    %v90 = vld [vmem:[#allocation2] sm:$0xf]
    %v91 = vld [vmem:[#allocation2 + $0x4] sm:$0xf]
    %v92 = vld [vmem:[#allocation2 + $0x8] sm:$0xf]
    %v93 = vld [vmem:[#allocation2 + $0xc] sm:$0xf]
    %v94 = vld [vmem:[#allocation2 + $0x10] sm:$0xf]
    %v95 = vld [vmem:[#allocation2 + $0x14] sm:$0xf]
    %v96 = vld [vmem:[#allocation2 + $0x18] sm:$0xf]
    %v97 = vld [vmem:[#allocation2 + $0x1c] sm:$0xf]
    %v98 = vld [vmem:[#allocation2 + $0x20] sm:$0xf]
    %v99 = vld [vmem:[#allocation2 + $0x24] sm:$0xf]
    %v100 = vld [vmem:[#allocation2 + $0x28] sm:$0xf]
    %v101 = vld [vmem:[#allocation2 + $0x2c] sm:$0xf]
    %v102 = vld [vmem:[#allocation2 + $0x30] sm:$0xf]
    %v103 = vld [vmem:[#allocation2 + $0x34] sm:$0xf]
    %v104 = vld [vmem:[#allocation2 + $0x38] sm:$0xf]
    %v105 = vld [vmem:[#allocation2 + $0x3c] sm:$0xf]
    %v106 = vld [vmem:[#allocation5] sm:$0xf]
    %v107 = vld [vmem:[#allocation5 + $0x4] sm:$0xf]
    %v108 = vld [vmem:[#allocation5 + $0x8] sm:$0xf]
    %v109 = vld [vmem:[#allocation5 + $0xc] sm:$0xf]
    %v110 = vld [vmem:[#allocation5 + $0x10] sm:$0xf]
    %v111 = vld [vmem:[#allocation5 + $0x14] sm:$0xf]
    %v112 = vld [vmem:[#allocation5 + $0x18] sm:$0xf]
    %v113 = vld [vmem:[#allocation5 + $0x1c] sm:$0xf]
    %v114 = vld [vmem:[#allocation5 + $0x20] sm:$0xf]
    %v115 = vld [vmem:[#allocation5 + $0x24] sm:$0xf]
    %v116 = vld [vmem:[#allocation5 + $0x28] sm:$0xf]
    %v117 = vld [vmem:[#allocation5 + $0x2c] sm:$0xf]
    %v118 = vld [vmem:[#allocation5 + $0x30] sm:$0xf]
    %v119 = vld [vmem:[#allocation5 + $0x34] sm:$0xf]
    %v120 = vld [vmem:[#allocation5 + $0x38] sm:$0xf]
    %v121 = vld [vmem:[#allocation5 + $0x3c] sm:$0xf]
    %v122 = vld [vmem:[#allocation10] sm:$0xff]
    %v123 = vld [vmem:[#allocation10 + $0x8] sm:$0xff]
    %v124 = vld [vmem:[#allocation7] sm:$0xf]
    %v125 = vld [vmem:[#allocation7 + $0x4] sm:$0xf]
    %v126 = vld [vmem:[#allocation7 + $0x8] sm:$0xf]
    %v127 = vld [vmem:[#allocation7 + $0xc] sm:$0xf]
    %v128 = vld [vmem:[#allocation7 + $0x10] sm:$0xf]
    %v129 = vld [vmem:[#allocation7 + $0x14] sm:$0xf]
    %v130 = vld [vmem:[#allocation7 + $0x18] sm:$0xf]
    %v131 = vld [vmem:[#allocation7 + $0x1c] sm:$0xf]
    %v132 = vld [vmem:[#allocation7 + $0x20] sm:$0xf]
    %v133 = vld [vmem:[#allocation7 + $0x24] sm:$0xf]
    %v134 = vld [vmem:[#allocation7 + $0x28] sm:$0xf]
    %v135 = vld [vmem:[#allocation7 + $0x2c] sm:$0xf]
    %v136 = vld [vmem:[#allocation7 + $0x30] sm:$0xf]
    %v137 = vld [vmem:[#allocation7 + $0x34] sm:$0xf]
    %v138 = vld [vmem:[#allocation7 + $0x38] sm:$0xf]
    %v139 = vld [vmem:[#allocation7 + $0x3c] sm:$0xf]
    %v140 = vld [vmem:[#allocation7 + $0x40] sm:$0xf]
    %v141 = vld [vmem:[#allocation7 + $0x44] sm:$0xf]
    %v142 = vld [vmem:[#allocation7 + $0x48] sm:$0xf]
    %v143 = vld [vmem:[#allocation7 + $0x4c] sm:$0xf]
    %v144 = vld [vmem:[#allocation7 + $0x50] sm:$0xf]
    %v145 = vld [vmem:[#allocation7 + $0x54] sm:$0xf]
    %v146 = vld [vmem:[#allocation7 + $0x58] sm:$0xf]
    %v147 = vld [vmem:[#allocation7 + $0x5c] sm:$0xf]
    %v148 = vld [vmem:[#allocation7 + $0x60] sm:$0xf]
    %v149 = vld [vmem:[#allocation7 + $0x64] sm:$0xf]
    %v150 = vld [vmem:[#allocation7 + $0x68] sm:$0xf]
    %v151 = vld [vmem:[#allocation7 + $0x6c] sm:$0xf]
    %v152 = vld [vmem:[#allocation7 + $0x70] sm:$0xf]
    %v153 = vld [vmem:[#allocation7 + $0x74] sm:$0xf]
    %v154 = vld [vmem:[#allocation7 + $0x78] sm:$0xf]
    %v155 = vld [vmem:[#allocation7 + $0x7c] sm:$0xf]
    %s156 = scalar_lea.vmem [#allocation7], 128
    %v157 = vld [vmem:[%s156] sm:$0xf]
    %v158 = vld [vmem:[%s156 + $0x4] sm:$0xf]
    %v159 = vld [vmem:[%s156 + $0x8] sm:$0xf]
    %v160 = vld [vmem:[%s156 + $0xc] sm:$0xf]
    %v161 = vld [vmem:[%s156 + $0x10] sm:$0xf]
    %v162 = vld [vmem:[%s156 + $0x14] sm:$0xf]
    %v163 = vld [vmem:[%s156 + $0x18] sm:$0xf]
    %v164 = vld [vmem:[%s156 + $0x1c] sm:$0xf]
    %v165 = vld [vmem:[%s156 + $0x20] sm:$0xf]
    %v166 = vld [vmem:[%s156 + $0x24] sm:$0xf]
    %v167 = vld [vmem:[%s156 + $0x28] sm:$0xf]
    %v168 = vld [vmem:[%s156 + $0x2c] sm:$0xf]
    %v169 = vld [vmem:[%s156 + $0x30] sm:$0xf]
    %v170 = vld [vmem:[%s156 + $0x34] sm:$0xf]
    %v171 = vld [vmem:[%s156 + $0x38] sm:$0xf]
    %v172 = vld [vmem:[%s156 + $0x3c] sm:$0xf]
    %v173 = vld [vmem:[%s156 + $0x40] sm:$0xf]
    %v174 = vld [vmem:[%s156 + $0x44] sm:$0xf]
    %v175 = vld [vmem:[%s156 + $0x48] sm:$0xf]
    %v176 = vld [vmem:[%s156 + $0x4c] sm:$0xf]
    %v177 = vld [vmem:[%s156 + $0x50] sm:$0xf]
    %v178 = vld [vmem:[%s156 + $0x54] sm:$0xf]
    %v179 = vld [vmem:[%s156 + $0x58] sm:$0xf]
    %v180 = vld [vmem:[%s156 + $0x5c] sm:$0xf]
    %v181 = vld [vmem:[%s156 + $0x60] sm:$0xf]
    %v182 = vld [vmem:[%s156 + $0x64] sm:$0xf]
    %v183 = vld [vmem:[%s156 + $0x68] sm:$0xf]
    %v184 = vld [vmem:[%s156 + $0x6c] sm:$0xf]
    %v185 = vld [vmem:[%s156 + $0x70] sm:$0xf]
    %v186 = vld [vmem:[%s156 + $0x74] sm:$0xf]
    %v187 = vld [vmem:[%s156 + $0x78] sm:$0xf]
    %v188 = vld [vmem:[%s156 + $0x7c] sm:$0xf]
    %v189 = vld [vmem:[#allocation8] sm:$0xf]
    %v190 = vld [vmem:[#allocation8 + $0x4] sm:$0xf]
    %v191 = vld [vmem:[#allocation8 + $0x8] sm:$0xf]
    %v192 = vld [vmem:[#allocation8 + $0xc] sm:$0xf]
    %v193 = vld [vmem:[#allocation8 + $0x10] sm:$0xf]
    %v194 = vld [vmem:[#allocation8 + $0x14] sm:$0xf]
    %v195 = vld [vmem:[#allocation8 + $0x18] sm:$0xf]
    %v196 = vld [vmem:[#allocation8 + $0x1c] sm:$0xf]
    %v197 = vld [vmem:[#allocation8 + $0x20] sm:$0xf]
    %v198 = vld [vmem:[#allocation8 + $0x24] sm:$0xf]
    %v199 = vld [vmem:[#allocation8 + $0x28] sm:$0xf]
    %v200 = vld [vmem:[#allocation8 + $0x2c] sm:$0xf]
    %v201 = vld [vmem:[#allocation8 + $0x30] sm:$0xf]
    %v202 = vld [vmem:[#allocation8 + $0x34] sm:$0xf]
    %v203 = vld [vmem:[#allocation8 + $0x38] sm:$0xf]
    %v204 = vld [vmem:[#allocation8 + $0x3c] sm:$0xf]
    %s205 = scalar_lea.vmem [#allocation8], 64
    %v206 = vld [vmem:[%s205] sm:$0xf]
    %v207 = vld [vmem:[%s205 + $0x4] sm:$0xf]
    %v208 = vld [vmem:[%s205 + $0x8] sm:$0xf]
    %v209 = vld [vmem:[%s205 + $0xc] sm:$0xf]
    %v210 = vld [vmem:[%s205 + $0x10] sm:$0xf]
    %v211 = vld [vmem:[%s205 + $0x14] sm:$0xf]
    %v212 = vld [vmem:[%s205 + $0x18] sm:$0xf]
    %v213 = vld [vmem:[%s205 + $0x1c] sm:$0xf]
    %v214 = vld [vmem:[%s205 + $0x20] sm:$0xf]
    %v215 = vld [vmem:[%s205 + $0x24] sm:$0xf]
    %v216 = vld [vmem:[%s205 + $0x28] sm:$0xf]
    %v217 = vld [vmem:[%s205 + $0x2c] sm:$0xf]
    %v218 = vld [vmem:[%s205 + $0x30] sm:$0xf]
    %v219 = vld [vmem:[%s205 + $0x34] sm:$0xf]
    %v220 = vld [vmem:[%s205 + $0x38] sm:$0xf]
    %v221 = vld [vmem:[%s205 + $0x3c] sm:$0xf]
    %s222 = scalar_lea.vmem [#allocation8], 128
    %v223 = vld [vmem:[%s222] sm:$0xf]
    %v224 = vld [vmem:[%s222 + $0x4] sm:$0xf]
    %v225 = vld [vmem:[%s222 + $0x8] sm:$0xf]
    %v226 = vld [vmem:[%s222 + $0xc] sm:$0xf]
    %v227 = vld [vmem:[%s222 + $0x10] sm:$0xf]
    %v228 = vld [vmem:[%s222 + $0x14] sm:$0xf]
    %v229 = vld [vmem:[%s222 + $0x18] sm:$0xf]
    %v230 = vld [vmem:[%s222 + $0x1c] sm:$0xf]
    %v231 = vld [vmem:[%s222 + $0x20] sm:$0xf]
    %v232 = vld [vmem:[%s222 + $0x24] sm:$0xf]
    %v233 = vld [vmem:[%s222 + $0x28] sm:$0xf]
    %v234 = vld [vmem:[%s222 + $0x2c] sm:$0xf]
    %v235 = vld [vmem:[%s222 + $0x30] sm:$0xf]
    %v236 = vld [vmem:[%s222 + $0x34] sm:$0xf]
    %v237 = vld [vmem:[%s222 + $0x38] sm:$0xf]
    %v238 = vld [vmem:[%s222 + $0x3c] sm:$0xf]
    %s239 = scalar_lea.vmem [#allocation8], 192
    %v240 = vld [vmem:[%s239] sm:$0xf]
    %v241 = vld [vmem:[%s239 + $0x4] sm:$0xf]
    %v242 = vld [vmem:[%s239 + $0x8] sm:$0xf]
    %v243 = vld [vmem:[%s239 + $0xc] sm:$0xf]
    %v244 = vld [vmem:[%s239 + $0x10] sm:$0xf]
    %v245 = vld [vmem:[%s239 + $0x14] sm:$0xf]
    %v246 = vld [vmem:[%s239 + $0x18] sm:$0xf]
    %v247 = vld [vmem:[%s239 + $0x1c] sm:$0xf]
    %v248 = vld [vmem:[%s239 + $0x20] sm:$0xf]
    %v249 = vld [vmem:[%s239 + $0x24] sm:$0xf]
    %v250 = vld [vmem:[%s239 + $0x28] sm:$0xf]
    %v251 = vld [vmem:[%s239 + $0x2c] sm:$0xf]
    %v252 = vld [vmem:[%s239 + $0x30] sm:$0xf]
    %v253 = vld [vmem:[%s239 + $0x34] sm:$0xf]
    %v254 = vld [vmem:[%s239 + $0x38] sm:$0xf]
    %v255 = vld [vmem:[%s239 + $0x3c] sm:$0xf]
    %s256 = scalar_lea.vmem [#allocation8], 256
    %v257 = vld [vmem:[%s256] sm:$0xf]
    %v258 = vld [vmem:[%s256 + $0x4] sm:$0xf]
    %v259 = vld [vmem:[%s256 + $0x8] sm:$0xf]
    %v260 = vld [vmem:[%s256 + $0xc] sm:$0xf]
    %v261 = vld [vmem:[%s256 + $0x10] sm:$0xf]
    %v262 = vld [vmem:[%s256 + $0x14] sm:$0xf]
    %v263 = vld [vmem:[%s256 + $0x18] sm:$0xf]
    %v264 = vld [vmem:[%s256 + $0x1c] sm:$0xf]
    %v265 = vld [vmem:[%s256 + $0x20] sm:$0xf]
    %v266 = vld [vmem:[%s256 + $0x24] sm:$0xf]
    %v267 = vld [vmem:[%s256 + $0x28] sm:$0xf]
    %v268 = vld [vmem:[%s256 + $0x2c] sm:$0xf]
    %v269 = vld [vmem:[%s256 + $0x30] sm:$0xf]
    %v270 = vld [vmem:[%s256 + $0x34] sm:$0xf]
    %v271 = vld [vmem:[%s256 + $0x38] sm:$0xf]
    %v272 = vld [vmem:[%s256 + $0x3c] sm:$0xf]
    %s273 = scalar_lea.vmem [#allocation8], 320
    %v274 = vld [vmem:[%s273] sm:$0xf]
    %v275 = vld [vmem:[%s273 + $0x4] sm:$0xf]
    %v276 = vld [vmem:[%s273 + $0x8] sm:$0xf]
    %v277 = vld [vmem:[%s273 + $0xc] sm:$0xf]
    %v278 = vld [vmem:[%s273 + $0x10] sm:$0xf]
    %v279 = vld [vmem:[%s273 + $0x14] sm:$0xf]
    %v280 = vld [vmem:[%s273 + $0x18] sm:$0xf]
    %v281 = vld [vmem:[%s273 + $0x1c] sm:$0xf]
    %v282 = vld [vmem:[%s273 + $0x20] sm:$0xf]
    %v283 = vld [vmem:[%s273 + $0x24] sm:$0xf]
    %v284 = vld [vmem:[%s273 + $0x28] sm:$0xf]
    %v285 = vld [vmem:[%s273 + $0x2c] sm:$0xf]
    %v286 = vld [vmem:[%s273 + $0x30] sm:$0xf]
    %v287 = vld [vmem:[%s273 + $0x34] sm:$0xf]
    %v288 = vld [vmem:[%s273 + $0x38] sm:$0xf]
    %v289 = vld [vmem:[%s273 + $0x3c] sm:$0xf]
    %v290 = vlaneseq
    %v291 = vshrl.u32 %v290, 7
    %v292 = vsub.s32 0, %v291
    %v293 = vrot.slane %v122, %v292
    %v294 = vpack.c.bf16 %v293, %v293
    %v327 = vunpack.c.l.b16 %v124
    %v328 = vunpack.c.l.b16 %v125
    %v329 = vunpack.c.l.b16 %v126
    %v330 = vunpack.c.l.b16 %v127
    %v331 = vunpack.c.l.b16 %v128
    %v332 = vunpack.c.l.b16 %v129
    %v333 = vunpack.c.l.b16 %v130
    %v334 = vunpack.c.l.b16 %v131
    %v335 = vunpack.c.l.b16 %v132
    %v336 = vunpack.c.l.b16 %v133
    %v337 = vunpack.c.l.b16 %v134
    %v338 = vunpack.c.l.b16 %v135
    %v339 = vunpack.c.l.b16 %v136
    %v340 = vunpack.c.l.b16 %v137
    %v341 = vunpack.c.l.b16 %v138
    %v342 = vunpack.c.l.b16 %v139
    %v343 = vunpack.c.l.b16 %v140
    %v344 = vunpack.c.l.b16 %v141
    %v345 = vunpack.c.l.b16 %v142
    %v346 = vunpack.c.l.b16 %v143
    %v347 = vunpack.c.l.b16 %v144
    %v348 = vunpack.c.l.b16 %v145
    %v349 = vunpack.c.l.b16 %v146
    %v350 = vunpack.c.l.b16 %v147
    %v351 = vunpack.c.l.b16 %v148
    %v352 = vunpack.c.l.b16 %v149
    %v353 = vunpack.c.l.b16 %v150
    %v354 = vunpack.c.l.b16 %v151
    %v355 = vunpack.c.l.b16 %v152
    %v356 = vunpack.c.l.b16 %v153
    %v357 = vunpack.c.l.b16 %v154
    %v358 = vunpack.c.l.b16 %v155
    %v359 = vpack.c.b16 %v328, %v327
    %v360 = vpack.c.b16 %v330, %v329
    %v361 = vpack.c.b16 %v332, %v331
    %v362 = vpack.c.b16 %v334, %v333
    %v363 = vpack.c.b16 %v336, %v335
    %v364 = vpack.c.b16 %v338, %v337
    %v365 = vpack.c.b16 %v340, %v339
    %v366 = vpack.c.b16 %v342, %v341
    %v367 = vpack.c.b16 %v344, %v343
    %v368 = vpack.c.b16 %v346, %v345
    %v369 = vpack.c.b16 %v348, %v347
    %v370 = vpack.c.b16 %v350, %v349
    %v371 = vpack.c.b16 %v352, %v351
    %v372 = vpack.c.b16 %v354, %v353
    %v373 = vpack.c.b16 %v356, %v355
    %v374 = vpack.c.b16 %v358, %v357
    %391 = vmatprep.subr.bf16.mxu0 0
    %392 = vmatpush1.bf16.msra.mxu0 %v366
    %393 = vmatprep.subr.bf16.mxu0 0
    %394 = vmatpush1.bf16.msra.mxu0 %v365
    %395 = vmatprep.subr.bf16.mxu0 0
    %396 = vmatpush1.bf16.msra.mxu0 %v364
    %397 = vmatprep.subr.bf16.mxu0 0
    %398 = vmatpush1.bf16.msra.mxu0 %v363
    %399 = vmatprep.subr.bf16.mxu0 0
    %400 = vmatpush1.bf16.msra.mxu0 %v362
    %401 = vmatprep.subr.bf16.mxu0 0
    %402 = vmatpush1.bf16.msra.mxu0 %v361
    %403 = vmatprep.subr.bf16.mxu0 0
    %404 = vmatpush1.bf16.msra.mxu0 %v360
    %405 = vmatprep.subr.bf16.mxu0 0
    %406 = vmatpush1.bf16.msra.mxu0 %v359
    %407 = vmatprep.subr.bf16.mxu0 0
    %408 = vmatpush2.bf16.msra.mxu0 %v374
    %409 = vmatprep.subr.bf16.mxu0 0
    %410 = vmatpush2.bf16.msra.mxu0 %v373
    %411 = vmatprep.subr.bf16.mxu0 0
    %412 = vmatpush2.bf16.msra.mxu0 %v372
    %413 = vmatprep.subr.bf16.mxu0 0
    %414 = vmatpush2.bf16.msra.mxu0 %v371
    %415 = vmatprep.subr.bf16.mxu0 0
    %416 = vmatpush2.bf16.msra.mxu0 %v370
    %417 = vmatprep.subr.bf16.mxu0 0
    %418 = vmatpush2.bf16.msra.mxu0 %v369
    %419 = vmatprep.subr.bf16.mxu0 0
    %420 = vmatpush2.bf16.msra.mxu0 %v368
    %421 = vmatprep.subr.bf16.mxu0 0
    %422 = vmatpush2.bf16.msra.mxu0 %v367
    %423 = vmatprep.mubr.bf16.mxu0 %v294
    %424 = vmatmul.mubr.bf16.gmra.mxu0 %v294
    %v425 = vpop.f32.mrf.mxu0
    %v426 = vadd.f32 0.0, %v425
    %v427 = vpop.f32.mrf.mxu0
    %v428 = vpop.f32.mrf.mxu0
    %v429 = vadd.f32 0.0, %v428
    %v430 = vpop.f32.mrf.mxu0
    %431 = vmatprep.mubr.bf16.mxu0 %v294
    %432 = vmatmul.mubr.bf16.gmra.mxu0 %v294
    %v433 = vpop.f32.mrf.mxu0
    %v434 = vadd.f32 0.0, %v433
    %v435 = vpop.f32.mrf.mxu0
    %v436 = vpop.f32.mrf.mxu0
    %v437 = vadd.f32 0.0, %v436
    %v438 = vpop.f32.mrf.mxu0
    %439 = vmatprep.mubr.bf16.mxu0 %v294
    %440 = vmatmul.mubr.bf16.gmra.mxu0 %v294
    %v441 = vpop.f32.mrf.mxu0
    %v442 = vadd.f32 0.0, %v441
    %v443 = vpop.f32.mrf.mxu0
    %v444 = vpop.f32.mrf.mxu0
    %v445 = vadd.f32 0.0, %v444
    %v446 = vpop.f32.mrf.mxu0
    %447 = vmatprep.mubr.bf16.mxu0 %v294
    %448 = vmatmul.mubr.bf16.gmra.mxu0 %v294
    %v449 = vpop.f32.mrf.mxu0
    %v450 = vadd.f32 0.0, %v449
    %v451 = vpop.f32.mrf.mxu0
    %v452 = vpop.f32.mrf.mxu0
    %v453 = vadd.f32 0.0, %v452
    %v454 = vpop.f32.mrf.mxu0
    %455 = vmatprep.mubr.bf16.mxu0 %v294
    %456 = vmatmul.mubr.bf16.gmra.mxu0 %v294
    %v457 = vpop.f32.mrf.mxu0
    %v458 = vadd.f32 0.0, %v457
    %v459 = vpop.f32.mrf.mxu0
    %v460 = vpop.f32.mrf.mxu0
    %v461 = vadd.f32 0.0, %v460
    %v462 = vpop.f32.mrf.mxu0
    %463 = vmatprep.mubr.bf16.mxu0 %v294
    %464 = vmatmul.mubr.bf16.gmra.mxu0 %v294
    %v465 = vpop.f32.mrf.mxu0
    %v466 = vadd.f32 0.0, %v465
    %v467 = vpop.f32.mrf.mxu0
    %v468 = vpop.f32.mrf.mxu0
    %v469 = vadd.f32 0.0, %v468
    %v470 = vpop.f32.mrf.mxu0
    %471 = vmatprep.mubr.bf16.mxu0 %v294
    %472 = vmatmul.mubr.bf16.gmra.mxu0 %v294
    %v473 = vpop.f32.mrf.mxu0
    %v474 = vadd.f32 0.0, %v473
    %v475 = vpop.f32.mrf.mxu0
    %v476 = vpop.f32.mrf.mxu0
    %v477 = vadd.f32 0.0, %v476
    %v478 = vpop.f32.mrf.mxu0
    %479 = vmatprep.mubr.bf16.mxu0 %v294
    %480 = vmatmul.mubr.bf16.gmra.mxu0 %v294
    %v481 = vpop.f32.mrf.mxu0
    %v482 = vadd.f32 0.0, %v481
    %v483 = vpop.f32.mrf.mxu0
    %v484 = vpop.f32.mrf.mxu0
    %v485 = vadd.f32 0.0, %v484
    %v486 = vpop.f32.mrf.mxu0
    %487 = vdwg.mxu0
    %v488 = vpack.c.bf16 %v429, %v426
    %v489 = vpack.c.bf16 %v437, %v434
    %v490 = vpack.c.bf16 %v445, %v442
    %v491 = vpack.c.bf16 %v453, %v450
    %v492 = vpack.c.bf16 %v461, %v458
    %v493 = vpack.c.bf16 %v469, %v466
    %v494 = vpack.c.bf16 %v477, %v474
    %v495 = vpack.c.bf16 %v485, %v482
    %v496 = vlaneseq
    %v497 = vshrl.u32 %v496, 7
    %v498 = vsub.s32 1, %v497
    %v499 = vrot.slane %v122, %v498
    %v516 = vunpack.c.l.b16 %v90
    %v517 = vunpack.c.l.b16 %v91
    %v518 = vunpack.c.l.b16 %v92
    %v519 = vunpack.c.l.b16 %v93
    %v520 = vunpack.c.l.b16 %v94
    %v521 = vunpack.c.l.b16 %v95
    %v522 = vunpack.c.l.b16 %v96
    %v523 = vunpack.c.l.b16 %v97
    %v524 = vunpack.c.l.b16 %v98
    %v525 = vunpack.c.l.b16 %v99
    %v526 = vunpack.c.l.b16 %v100
    %v527 = vunpack.c.l.b16 %v101
    %v528 = vunpack.c.l.b16 %v102
    %v529 = vunpack.c.l.b16 %v103
    %v530 = vunpack.c.l.b16 %v104
    %v531 = vunpack.c.l.b16 %v105
    %v532 = vpack.c.b16 %v517, %v516
    %v533 = vpack.c.b16 %v519, %v518
    %v534 = vpack.c.b16 %v521, %v520
    %v535 = vpack.c.b16 %v523, %v522
    %v536 = vpack.c.b16 %v525, %v524
    %v537 = vpack.c.b16 %v527, %v526
    %v538 = vpack.c.b16 %v529, %v528
    %v539 = vpack.c.b16 %v531, %v530
    %548 = vmatprep.subr.bf16.mxu0 0
    %549 = vmatpush1.bf16.msra.mxu0 %v495
    %550 = vmatprep.subr.bf16.mxu0 0
    %551 = vmatpush1.bf16.msra.mxu0 %v494
    %552 = vmatprep.subr.bf16.mxu0 0
    %553 = vmatpush1.bf16.msra.mxu0 %v493
    %554 = vmatprep.subr.bf16.mxu0 0
    %555 = vmatpush1.bf16.msra.mxu0 %v492
    %556 = vmatprep.subr.bf16.mxu0 0
    %557 = vmatpush1.bf16.msra.mxu0 %v491
    %558 = vmatprep.subr.bf16.mxu0 0
    %559 = vmatpush1.bf16.msra.mxu0 %v490
    %560 = vmatprep.subr.bf16.mxu0 0
    %561 = vmatpush1.bf16.msra.mxu0 %v489
    %562 = vmatprep.subr.bf16.mxu0 0
    %563 = vmatpush1.bf16.msra.mxu0 %v488
    %564 = vmatprep.subr.bf16.mxu0 0
    %565 = vmatpush2.bf16.msra.mxu0 0
    %566 = vmatprep.subr.bf16.mxu0 0
    %567 = vmatpush2.bf16.msra.mxu0 0
    %568 = vmatprep.subr.bf16.mxu0 0
    %569 = vmatpush2.bf16.msra.mxu0 0
    %570 = vmatprep.subr.bf16.mxu0 0
    %571 = vmatpush2.bf16.msra.mxu0 0
    %572 = vmatprep.subr.bf16.mxu0 0
    %573 = vmatpush2.bf16.msra.mxu0 0
    %574 = vmatprep.subr.bf16.mxu0 0
    %575 = vmatpush2.bf16.msra.mxu0 0
    %576 = vmatprep.subr.bf16.mxu0 0
    %577 = vmatpush2.bf16.msra.mxu0 0
    %578 = vmatprep.subr.bf16.mxu0 0
    %579 = vmatpush2.bf16.msra.mxu0 0
    %580 = vmatprep.mubr.bf16.mxu0 0
    %581 = vmatmul.mubr.bf16.gmra.mxu0 %v532
    %v582 = vpop.f32.mrf.mxu0
    %v583 = vadd.f32 %v499, %v582
    %v584 = vpop.f32.mrf.mxu0
    %v585 = vpop.f32.mrf.mxu0
    %v586 = vadd.f32 %v499, %v585
    %v587 = vpop.f32.mrf.mxu0
    %588 = vmatprep.mubr.bf16.mxu0 0
    %589 = vmatmul.mubr.bf16.gmra.mxu0 %v533
    %v590 = vpop.f32.mrf.mxu0
    %v591 = vadd.f32 %v499, %v590
    %v592 = vpop.f32.mrf.mxu0
    %v593 = vpop.f32.mrf.mxu0
    %v594 = vadd.f32 %v499, %v593
    %v595 = vpop.f32.mrf.mxu0
    %596 = vmatprep.mubr.bf16.mxu0 0
    %597 = vmatmul.mubr.bf16.gmra.mxu0 %v534
    %v598 = vpop.f32.mrf.mxu0
    %v599 = vadd.f32 %v499, %v598
    %v600 = vpop.f32.mrf.mxu0
    %v601 = vpop.f32.mrf.mxu0
    %v602 = vadd.f32 %v499, %v601
    %v603 = vpop.f32.mrf.mxu0
    %604 = vmatprep.mubr.bf16.mxu0 0
    %605 = vmatmul.mubr.bf16.gmra.mxu0 %v535
    %v606 = vpop.f32.mrf.mxu0
    %v607 = vadd.f32 %v499, %v606
    %v608 = vpop.f32.mrf.mxu0
    %v609 = vpop.f32.mrf.mxu0
    %v610 = vadd.f32 %v499, %v609
    %v611 = vpop.f32.mrf.mxu0
    %612 = vmatprep.mubr.bf16.mxu0 0
    %613 = vmatmul.mubr.bf16.gmra.mxu0 %v536
    %v614 = vpop.f32.mrf.mxu0
    %v615 = vadd.f32 %v499, %v614
    %v616 = vpop.f32.mrf.mxu0
    %v617 = vpop.f32.mrf.mxu0
    %v618 = vadd.f32 %v499, %v617
    %v619 = vpop.f32.mrf.mxu0
    %620 = vmatprep.mubr.bf16.mxu0 0
    %621 = vmatmul.mubr.bf16.gmra.mxu0 %v537
    %v622 = vpop.f32.mrf.mxu0
    %v623 = vadd.f32 %v499, %v622
    %v624 = vpop.f32.mrf.mxu0
    %v625 = vpop.f32.mrf.mxu0
    %v626 = vadd.f32 %v499, %v625
    %v627 = vpop.f32.mrf.mxu0
    %628 = vmatprep.mubr.bf16.mxu0 0
    %629 = vmatmul.mubr.bf16.gmra.mxu0 %v538
    %v630 = vpop.f32.mrf.mxu0
    %v631 = vadd.f32 %v499, %v630
    %v632 = vpop.f32.mrf.mxu0
    %v633 = vpop.f32.mrf.mxu0
    %v634 = vadd.f32 %v499, %v633
    %v635 = vpop.f32.mrf.mxu0
    %636 = vmatprep.mubr.bf16.mxu0 0
    %637 = vmatmul.mubr.bf16.gmra.mxu0 %v539
    %v638 = vpop.f32.mrf.mxu0
    %v639 = vadd.f32 %v499, %v638
    %v640 = vpop.f32.mrf.mxu0
    %v641 = vpop.f32.mrf.mxu0
    %v642 = vadd.f32 %v499, %v641
    %v643 = vpop.f32.mrf.mxu0
    %644 = vdwg.mxu0
    %v645 = vmax.f32 %v583, 0.0
    %v646 = vmax.f32 %v586, 0.0
    %v647 = vmax.f32 %v591, 0.0
    %v648 = vmax.f32 %v594, 0.0
    %v649 = vmax.f32 %v599, 0.0
    %v650 = vmax.f32 %v602, 0.0
    %v651 = vmax.f32 %v607, 0.0
    %v652 = vmax.f32 %v610, 0.0
    %v653 = vmax.f32 %v615, 0.0
    %v654 = vmax.f32 %v618, 0.0
    %v655 = vmax.f32 %v623, 0.0
    %v656 = vmax.f32 %v626, 0.0
    %v657 = vmax.f32 %v631, 0.0
    %v658 = vmax.f32 %v634, 0.0
    %v659 = vmax.f32 %v639, 0.0
    %v660 = vmax.f32 %v642, 0.0
    %v661 = vpack.c.bf16 %v646, %v645
    %v662 = vpack.c.bf16 %v648, %v647
    %v663 = vpack.c.bf16 %v650, %v649
    %v664 = vpack.c.bf16 %v652, %v651
    %v665 = vpack.c.bf16 %v654, %v653
    %v666 = vpack.c.bf16 %v656, %v655
    %v667 = vpack.c.bf16 %v658, %v657
    %v668 = vpack.c.bf16 %v660, %v659
    %v669 = vlaneseq
    %v670 = vshrl.u32 %v669, 7
    %v671 = vsub.s32 2, %v670
    %v672 = vrot.slane %v122, %v671
    %v689 = vunpack.c.l.b16 %v189
    %v690 = vunpack.c.l.b16 %v190
    %v691 = vunpack.c.l.b16 %v191
    %v692 = vunpack.c.l.b16 %v192
    %v693 = vunpack.c.l.b16 %v193
    %v694 = vunpack.c.l.b16 %v194
    %v695 = vunpack.c.l.b16 %v195
    %v696 = vunpack.c.l.b16 %v196
    %v697 = vunpack.c.l.b16 %v197
    %v698 = vunpack.c.l.b16 %v198
    %v699 = vunpack.c.l.b16 %v199
    %v700 = vunpack.c.l.b16 %v200
    %v701 = vunpack.c.l.b16 %v201
    %v702 = vunpack.c.l.b16 %v202
    %v703 = vunpack.c.l.b16 %v203
    %v704 = vunpack.c.l.b16 %v204
    %v705 = vpack.c.b16 %v690, %v689
    %v706 = vpack.c.b16 %v692, %v691
    %v707 = vpack.c.b16 %v694, %v693
    %v708 = vpack.c.b16 %v696, %v695
    %v709 = vpack.c.b16 %v698, %v697
    %v710 = vpack.c.b16 %v700, %v699
    %v711 = vpack.c.b16 %v702, %v701
    %v712 = vpack.c.b16 %v704, %v703
    %721 = vmatprep.subr.bf16.mxu0 0
    %722 = vmatpush1.bf16.msra.mxu0 %v712
    %723 = vmatprep.subr.bf16.mxu0 0
    %724 = vmatpush1.bf16.msra.mxu0 %v711
    %725 = vmatprep.subr.bf16.mxu0 0
    %726 = vmatpush1.bf16.msra.mxu0 %v710
    %727 = vmatprep.subr.bf16.mxu0 0
    %728 = vmatpush1.bf16.msra.mxu0 %v709
    %729 = vmatprep.subr.bf16.mxu0 0
    %730 = vmatpush1.bf16.msra.mxu0 %v708
    %731 = vmatprep.subr.bf16.mxu0 0
    %732 = vmatpush1.bf16.msra.mxu0 %v707
    %733 = vmatprep.subr.bf16.mxu0 0
    %734 = vmatpush1.bf16.msra.mxu0 %v706
    %735 = vmatprep.subr.bf16.mxu0 0
    %736 = vmatpush1.bf16.msra.mxu0 %v705
    %737 = vmatprep.subr.bf16.mxu0 0
    %738 = vmatpush2.bf16.msra.mxu0 0
    %739 = vmatprep.subr.bf16.mxu0 0
    %740 = vmatpush2.bf16.msra.mxu0 0
    %741 = vmatprep.subr.bf16.mxu0 0
    %742 = vmatpush2.bf16.msra.mxu0 0
    %743 = vmatprep.subr.bf16.mxu0 0
    %744 = vmatpush2.bf16.msra.mxu0 0
    %745 = vmatprep.subr.bf16.mxu0 0
    %746 = vmatpush2.bf16.msra.mxu0 0
    %747 = vmatprep.subr.bf16.mxu0 0
    %748 = vmatpush2.bf16.msra.mxu0 0
    %749 = vmatprep.subr.bf16.mxu0 0
    %750 = vmatpush2.bf16.msra.mxu0 0
    %751 = vmatprep.subr.bf16.mxu0 0
    %752 = vmatpush2.bf16.msra.mxu0 0
    %753 = vmatprep.mubr.bf16.mxu0 0
    %754 = vmatmul.mubr.bf16.gmra.mxu0 %v661
    %v755 = vpop.f32.mrf.mxu0
    %v756 = vadd.f32 %v672, %v755
    %v757 = vpop.f32.mrf.mxu0
    %v758 = vpop.f32.mrf.mxu0
    %v759 = vadd.f32 %v672, %v758
    %v760 = vpop.f32.mrf.mxu0
    %761 = vmatprep.mubr.bf16.mxu0 0
    %762 = vmatmul.mubr.bf16.gmra.mxu0 %v662
    %v763 = vpop.f32.mrf.mxu0
    %v764 = vadd.f32 %v672, %v763
    %v765 = vpop.f32.mrf.mxu0
    %v766 = vpop.f32.mrf.mxu0
    %v767 = vadd.f32 %v672, %v766
    %v768 = vpop.f32.mrf.mxu0
    %769 = vmatprep.mubr.bf16.mxu0 0
    %770 = vmatmul.mubr.bf16.gmra.mxu0 %v663
    %v771 = vpop.f32.mrf.mxu0
    %v772 = vadd.f32 %v672, %v771
    %v773 = vpop.f32.mrf.mxu0
    %v774 = vpop.f32.mrf.mxu0
    %v775 = vadd.f32 %v672, %v774
    %v776 = vpop.f32.mrf.mxu0
    %777 = vmatprep.mubr.bf16.mxu0 0
    %778 = vmatmul.mubr.bf16.gmra.mxu0 %v664
    %v779 = vpop.f32.mrf.mxu0
    %v780 = vadd.f32 %v672, %v779
    %v781 = vpop.f32.mrf.mxu0
    %v782 = vpop.f32.mrf.mxu0
    %v783 = vadd.f32 %v672, %v782
    %v784 = vpop.f32.mrf.mxu0
    %785 = vmatprep.mubr.bf16.mxu0 0
    %786 = vmatmul.mubr.bf16.gmra.mxu0 %v665
    %v787 = vpop.f32.mrf.mxu0
    %v788 = vadd.f32 %v672, %v787
    %v789 = vpop.f32.mrf.mxu0
    %v790 = vpop.f32.mrf.mxu0
    %v791 = vadd.f32 %v672, %v790
    %v792 = vpop.f32.mrf.mxu0
    %793 = vmatprep.mubr.bf16.mxu0 0
    %794 = vmatmul.mubr.bf16.gmra.mxu0 %v666
    %v795 = vpop.f32.mrf.mxu0
    %v796 = vadd.f32 %v672, %v795
    %v797 = vpop.f32.mrf.mxu0
    %v798 = vpop.f32.mrf.mxu0
    %v799 = vadd.f32 %v672, %v798
    %v800 = vpop.f32.mrf.mxu0
    %801 = vmatprep.mubr.bf16.mxu0 0
    %802 = vmatmul.mubr.bf16.gmra.mxu0 %v667
    %v803 = vpop.f32.mrf.mxu0
    %v804 = vadd.f32 %v672, %v803
    %v805 = vpop.f32.mrf.mxu0
    %v806 = vpop.f32.mrf.mxu0
    %v807 = vadd.f32 %v672, %v806
    %v808 = vpop.f32.mrf.mxu0
    %809 = vmatprep.mubr.bf16.mxu0 0
    %810 = vmatmul.mubr.bf16.gmra.mxu0 %v668
    %v811 = vpop.f32.mrf.mxu0
    %v812 = vadd.f32 %v672, %v811
    %v813 = vpop.f32.mrf.mxu0
    %v814 = vpop.f32.mrf.mxu0
    %v815 = vadd.f32 %v672, %v814
    %v816 = vpop.f32.mrf.mxu0
    %817 = vdwg.mxu0
    %v818 = vadd.f32 %v756, %v759
    %v819 = vadd.f32 %v818, %v764
    %v820 = vadd.f32 %v819, %v767
    %v821 = vadd.f32 %v820, %v772
    %v822 = vadd.f32 %v821, %v775
    %v823 = vadd.f32 %v822, %v780
    %v824 = vadd.f32 %v823, %v783
    %v825 = vadd.f32 %v824, %v788
    %v826 = vadd.f32 %v825, %v791
    %v827 = vadd.f32 %v826, %v796
    %v828 = vadd.f32 %v827, %v799
    %v829 = vadd.f32 %v828, %v804
    %v830 = vadd.f32 %v829, %v807
    %v831 = vadd.f32 %v830, %v812
    %v832 = vadd.f32 %v831, %v815
    %v833 = vrot.slane %v832, 4
    %v834 = vadd.f32 %v832, %v833
    %v835 = vrot.slane %v834, 2
    %v836 = vadd.f32 %v834, %v835
    %v837 = vrot.slane %v836, 1
    %v838 = vadd.f32 %v836, %v837
    %v839 = vrcp.pop 128.0
    %v840 = vmul.f32 %v838, %v839
    %v841 = vsub.f32 %v756, %v840
    %v842 = vsub.f32 %v759, %v840
    %v843 = vsub.f32 %v764, %v840
    %v844 = vsub.f32 %v767, %v840
    %v845 = vsub.f32 %v772, %v840
    %v846 = vsub.f32 %v775, %v840
    %v847 = vsub.f32 %v780, %v840
    %v848 = vsub.f32 %v783, %v840
    %v849 = vsub.f32 %v788, %v840
    %v850 = vsub.f32 %v791, %v840
    %v851 = vsub.f32 %v796, %v840
    %v852 = vsub.f32 %v799, %v840
    %v853 = vsub.f32 %v804, %v840
    %v854 = vsub.f32 %v807, %v840
    %v855 = vsub.f32 %v812, %v840
    %v856 = vsub.f32 %v815, %v840
    %v857 = vmul.f32 %v841, %v841
    %v858 = vmul.f32 %v842, %v842
    %v859 = vmul.f32 %v843, %v843
    %v860 = vmul.f32 %v844, %v844
    %v861 = vmul.f32 %v845, %v845
    %v862 = vmul.f32 %v846, %v846
    %v863 = vmul.f32 %v847, %v847
    %v864 = vmul.f32 %v848, %v848
    %v865 = vmul.f32 %v849, %v849
    %v866 = vmul.f32 %v850, %v850
    %v867 = vmul.f32 %v851, %v851
    %v868 = vmul.f32 %v852, %v852
    %v869 = vmul.f32 %v853, %v853
    %v870 = vmul.f32 %v854, %v854
    %v871 = vmul.f32 %v855, %v855
    %v872 = vmul.f32 %v856, %v856
    %v873 = vadd.f32 %v857, %v858
    %v874 = vadd.f32 %v873, %v859
    %v875 = vadd.f32 %v874, %v860
    %v876 = vadd.f32 %v875, %v861
    %v877 = vadd.f32 %v876, %v862
    %v878 = vadd.f32 %v877, %v863
    %v879 = vadd.f32 %v878, %v864
    %v880 = vadd.f32 %v879, %v865
    %v881 = vadd.f32 %v880, %v866
    %v882 = vadd.f32 %v881, %v867
    %v883 = vadd.f32 %v882, %v868
    %v884 = vadd.f32 %v883, %v869
    %v885 = vadd.f32 %v884, %v870
    %v886 = vadd.f32 %v885, %v871
    %v887 = vadd.f32 %v886, %v872
    %v888 = vrot.slane %v887, 4
    %v889 = vadd.f32 %v887, %v888
    %v890 = vrot.slane %v889, 2
    %v891 = vadd.f32 %v889, %v890
    %v892 = vrot.slane %v891, 1
    %v893 = vadd.f32 %v891, %v892
    %v894 = vmul.f32 %v893, 0.007874016
    %v895 = vrsqrt.pop %v894
    %v896 = vmul.f32 %v894, %v895
    %vm897 = vcmp.eq.f32.partialorder %v894, inf
    %v898 = vsel %vm897, %v894, %v896
    %vm899 = vcmp.eq.f32.partialorder %v894, 0.0
    %v900 = vand.u32 %v894, 2147483648
    %v901 = vsel %vm899, %v900, %v898
    %v902 = vadd.f32 %v901, 1e-10
    %v903 = vrcp.pop %v902
    %v904 = vmul.f32 1.0, %v903
    %v905 = vmul.f32 %v841, %v904
    %v906 = vmul.f32 %v842, %v904
    %v907 = vmul.f32 %v843, %v904
    %v908 = vmul.f32 %v844, %v904
    %v909 = vmul.f32 %v845, %v904
    %v910 = vmul.f32 %v846, %v904
    %v911 = vmul.f32 %v847, %v904
    %v912 = vmul.f32 %v848, %v904
    %v913 = vmul.f32 %v849, %v904
    %v914 = vmul.f32 %v850, %v904
    %v915 = vmul.f32 %v851, %v904
    %v916 = vmul.f32 %v852, %v904
    %v917 = vmul.f32 %v853, %v904
    %v918 = vmul.f32 %v854, %v904
    %v919 = vmul.f32 %v855, %v904
    %v920 = vmul.f32 %v856, %v904
    %v921 = vpack.c.bf16 %v906, %v905
    %v922 = vpack.c.bf16 %v908, %v907
    %v923 = vpack.c.bf16 %v910, %v909
    %v924 = vpack.c.bf16 %v912, %v911
    %v925 = vpack.c.bf16 %v914, %v913
    %v926 = vpack.c.bf16 %v916, %v915
    %v927 = vpack.c.bf16 %v918, %v917
    %v928 = vpack.c.bf16 %v920, %v919
    %v945 = vunpack.c.l.b16 %v106
    %v946 = vunpack.c.l.b16 %v107
    %v947 = vunpack.c.l.b16 %v108
    %v948 = vunpack.c.l.b16 %v109
    %v949 = vunpack.c.l.b16 %v110
    %v950 = vunpack.c.l.b16 %v111
    %v951 = vunpack.c.l.b16 %v112
    %v952 = vunpack.c.l.b16 %v113
    %v953 = vunpack.c.l.b16 %v114
    %v954 = vunpack.c.l.b16 %v115
    %v955 = vunpack.c.l.b16 %v116
    %v956 = vunpack.c.l.b16 %v117
    %v957 = vunpack.c.l.b16 %v118
    %v958 = vunpack.c.l.b16 %v119
    %v959 = vunpack.c.l.b16 %v120
    %v960 = vunpack.c.l.b16 %v121
    %v961 = vpack.c.b16 %v946, %v945
    %v962 = vpack.c.b16 %v948, %v947
    %v963 = vpack.c.b16 %v950, %v949
    %v964 = vpack.c.b16 %v952, %v951
    %v965 = vpack.c.b16 %v954, %v953
    %v966 = vpack.c.b16 %v956, %v955
    %v967 = vpack.c.b16 %v958, %v957
    %v968 = vpack.c.b16 %v960, %v959
    %977 = vmatprep.subr.bf16.mxu0 0
    %978 = vmatpush1.bf16.msra.mxu0 %v928
    %979 = vmatprep.subr.bf16.mxu0 0
    %980 = vmatpush1.bf16.msra.mxu0 %v927
    %981 = vmatprep.subr.bf16.mxu0 0
    %982 = vmatpush1.bf16.msra.mxu0 %v926
    %983 = vmatprep.subr.bf16.mxu0 0
    %984 = vmatpush1.bf16.msra.mxu0 %v925
    %985 = vmatprep.subr.bf16.mxu0 0
    %986 = vmatpush1.bf16.msra.mxu0 %v924
    %987 = vmatprep.subr.bf16.mxu0 0
    %988 = vmatpush1.bf16.msra.mxu0 %v923
    %989 = vmatprep.subr.bf16.mxu0 0
    %990 = vmatpush1.bf16.msra.mxu0 %v922
    %991 = vmatprep.subr.bf16.mxu0 0
    %992 = vmatpush1.bf16.msra.mxu0 %v921
    %993 = vmatprep.subr.bf16.mxu0 0
    %994 = vmatpush2.bf16.msra.mxu0 0
    %995 = vmatprep.subr.bf16.mxu0 0
    %996 = vmatpush2.bf16.msra.mxu0 0
    %997 = vmatprep.subr.bf16.mxu0 0
    %998 = vmatpush2.bf16.msra.mxu0 0
    %999 = vmatprep.subr.bf16.mxu0 0
    %1000 = vmatpush2.bf16.msra.mxu0 0
    %1001 = vmatprep.subr.bf16.mxu0 0
    %1002 = vmatpush2.bf16.msra.mxu0 0
    %1003 = vmatprep.subr.bf16.mxu0 0
    %1004 = vmatpush2.bf16.msra.mxu0 0
    %1005 = vmatprep.subr.bf16.mxu0 0
    %1006 = vmatpush2.bf16.msra.mxu0 0
    %1007 = vmatprep.subr.bf16.mxu0 0
    %1008 = vmatpush2.bf16.msra.mxu0 0
    %1009 = vmatprep.mubr.bf16.mxu0 0
    %1010 = vmatmul.mubr.bf16.gmra.mxu0 %v961
    %v1011 = vpop.f32.mrf.mxu0
    %v1012 = vadd.f32 0.0, %v1011
    %v1013 = vpop.f32.mrf.mxu0
    %v1014 = vpop.f32.mrf.mxu0
    %v1015 = vadd.f32 0.0, %v1014
    %v1016 = vpop.f32.mrf.mxu0
    %1017 = vmatprep.mubr.bf16.mxu0 0
    %1018 = vmatmul.mubr.bf16.gmra.mxu0 %v962
    %v1019 = vpop.f32.mrf.mxu0
    %v1020 = vadd.f32 0.0, %v1019
    %v1021 = vpop.f32.mrf.mxu0
    %v1022 = vpop.f32.mrf.mxu0
    %v1023 = vadd.f32 0.0, %v1022
    %v1024 = vpop.f32.mrf.mxu0
    %1025 = vmatprep.mubr.bf16.mxu0 0
    %1026 = vmatmul.mubr.bf16.gmra.mxu0 %v963
    %v1027 = vpop.f32.mrf.mxu0
    %v1028 = vadd.f32 0.0, %v1027
    %v1029 = vpop.f32.mrf.mxu0
    %v1030 = vpop.f32.mrf.mxu0
    %v1031 = vadd.f32 0.0, %v1030
    %v1032 = vpop.f32.mrf.mxu0
    %1033 = vmatprep.mubr.bf16.mxu0 0
    %1034 = vmatmul.mubr.bf16.gmra.mxu0 %v964
    %v1035 = vpop.f32.mrf.mxu0
    %v1036 = vadd.f32 0.0, %v1035
    %v1037 = vpop.f32.mrf.mxu0
    %v1038 = vpop.f32.mrf.mxu0
    %v1039 = vadd.f32 0.0, %v1038
    %v1040 = vpop.f32.mrf.mxu0
    %1041 = vmatprep.mubr.bf16.mxu0 0
    %1042 = vmatmul.mubr.bf16.gmra.mxu0 %v965
    %v1043 = vpop.f32.mrf.mxu0
    %v1044 = vadd.f32 0.0, %v1043
    %v1045 = vpop.f32.mrf.mxu0
    %v1046 = vpop.f32.mrf.mxu0
    %v1047 = vadd.f32 0.0, %v1046
    %v1048 = vpop.f32.mrf.mxu0
    %1049 = vmatprep.mubr.bf16.mxu0 0
    %1050 = vmatmul.mubr.bf16.gmra.mxu0 %v966
    %v1051 = vpop.f32.mrf.mxu0
    %v1052 = vadd.f32 0.0, %v1051
    %v1053 = vpop.f32.mrf.mxu0
    %v1054 = vpop.f32.mrf.mxu0
    %v1055 = vadd.f32 0.0, %v1054
    %v1056 = vpop.f32.mrf.mxu0
    %1057 = vmatprep.mubr.bf16.mxu0 0
    %1058 = vmatmul.mubr.bf16.gmra.mxu0 %v967
    %v1059 = vpop.f32.mrf.mxu0
    %v1060 = vadd.f32 0.0, %v1059
    %v1061 = vpop.f32.mrf.mxu0
    %v1062 = vpop.f32.mrf.mxu0
    %v1063 = vadd.f32 0.0, %v1062
    %v1064 = vpop.f32.mrf.mxu0
    %1065 = vmatprep.mubr.bf16.mxu0 0
    %1066 = vmatmul.mubr.bf16.gmra.mxu0 %v968
    %v1067 = vpop.f32.mrf.mxu0
    %v1068 = vadd.f32 0.0, %v1067
    %v1069 = vpop.f32.mrf.mxu0
    %v1070 = vpop.f32.mrf.mxu0
    %v1071 = vadd.f32 0.0, %v1070
    %v1072 = vpop.f32.mrf.mxu0
    %1073 = vdwg.mxu0
    %v1074 = vpack.c.bf16 %v1015, %v1012
    %v1075 = vpack.c.bf16 %v1023, %v1020
    %v1076 = vpack.c.bf16 %v1031, %v1028
    %v1077 = vpack.c.bf16 %v1039, %v1036
    %v1078 = vpack.c.bf16 %v1047, %v1044
    %v1079 = vpack.c.bf16 %v1055, %v1052
    %v1080 = vpack.c.bf16 %v1063, %v1060
    %v1081 = vpack.c.bf16 %v1071, %v1068
    %v1082 = vlaneseq
    %v1083 = vshrl.u32 %v1082, 7
    %v1084 = vsub.s32 3, %v1083
    %v1085 = vrot.slane %v122, %v1084
    %v1102 = vunpack.c.l.b16 %v206
    %v1103 = vunpack.c.l.b16 %v207
    %v1104 = vunpack.c.l.b16 %v208
    %v1105 = vunpack.c.l.b16 %v209
    %v1106 = vunpack.c.l.b16 %v210
    %v1107 = vunpack.c.l.b16 %v211
    %v1108 = vunpack.c.l.b16 %v212
    %v1109 = vunpack.c.l.b16 %v213
    %v1110 = vunpack.c.l.b16 %v214
    %v1111 = vunpack.c.l.b16 %v215
    %v1112 = vunpack.c.l.b16 %v216
    %v1113 = vunpack.c.l.b16 %v217
    %v1114 = vunpack.c.l.b16 %v218
    %v1115 = vunpack.c.l.b16 %v219
    %v1116 = vunpack.c.l.b16 %v220
    %v1117 = vunpack.c.l.b16 %v221
    %v1118 = vpack.c.b16 %v1103, %v1102
    %v1119 = vpack.c.b16 %v1105, %v1104
    %v1120 = vpack.c.b16 %v1107, %v1106
    %v1121 = vpack.c.b16 %v1109, %v1108
    %v1122 = vpack.c.b16 %v1111, %v1110
    %v1123 = vpack.c.b16 %v1113, %v1112
    %v1124 = vpack.c.b16 %v1115, %v1114
    %v1125 = vpack.c.b16 %v1117, %v1116
    %1134 = vmatprep.subr.bf16.mxu0 0
    %1135 = vmatpush1.bf16.msra.mxu0 %v1125
    %1136 = vmatprep.subr.bf16.mxu0 0
    %1137 = vmatpush1.bf16.msra.mxu0 %v1124
    %1138 = vmatprep.subr.bf16.mxu0 0
    %1139 = vmatpush1.bf16.msra.mxu0 %v1123
    %1140 = vmatprep.subr.bf16.mxu0 0
    %1141 = vmatpush1.bf16.msra.mxu0 %v1122
    %1142 = vmatprep.subr.bf16.mxu0 0
    %1143 = vmatpush1.bf16.msra.mxu0 %v1121
    %1144 = vmatprep.subr.bf16.mxu0 0
    %1145 = vmatpush1.bf16.msra.mxu0 %v1120
    %1146 = vmatprep.subr.bf16.mxu0 0
    %1147 = vmatpush1.bf16.msra.mxu0 %v1119
    %1148 = vmatprep.subr.bf16.mxu0 0
    %1149 = vmatpush1.bf16.msra.mxu0 %v1118
    %1150 = vmatprep.subr.bf16.mxu0 0
    %1151 = vmatpush2.bf16.msra.mxu0 0
    %1152 = vmatprep.subr.bf16.mxu0 0
    %1153 = vmatpush2.bf16.msra.mxu0 0
    %1154 = vmatprep.subr.bf16.mxu0 0
    %1155 = vmatpush2.bf16.msra.mxu0 0
    %1156 = vmatprep.subr.bf16.mxu0 0
    %1157 = vmatpush2.bf16.msra.mxu0 0
    %1158 = vmatprep.subr.bf16.mxu0 0
    %1159 = vmatpush2.bf16.msra.mxu0 0
    %1160 = vmatprep.subr.bf16.mxu0 0
    %1161 = vmatpush2.bf16.msra.mxu0 0
    %1162 = vmatprep.subr.bf16.mxu0 0
    %1163 = vmatpush2.bf16.msra.mxu0 0
    %1164 = vmatprep.subr.bf16.mxu0 0
    %1165 = vmatpush2.bf16.msra.mxu0 0
    %1166 = vmatprep.mubr.bf16.mxu0 0
    %1167 = vmatmul.mubr.bf16.gmra.mxu0 %v1074
    %v1168 = vpop.f32.mrf.mxu0
    %v1169 = vadd.f32 %v1085, %v1168
    %v1170 = vpop.f32.mrf.mxu0
    %v1171 = vpop.f32.mrf.mxu0
    %v1172 = vadd.f32 %v1085, %v1171
    %v1173 = vpop.f32.mrf.mxu0
    %1174 = vmatprep.mubr.bf16.mxu0 0
    %1175 = vmatmul.mubr.bf16.gmra.mxu0 %v1075
    %v1176 = vpop.f32.mrf.mxu0
    %v1177 = vadd.f32 %v1085, %v1176
    %v1178 = vpop.f32.mrf.mxu0
    %v1179 = vpop.f32.mrf.mxu0
    %v1180 = vadd.f32 %v1085, %v1179
    %v1181 = vpop.f32.mrf.mxu0
    %1182 = vmatprep.mubr.bf16.mxu0 0
    %1183 = vmatmul.mubr.bf16.gmra.mxu0 %v1076
    %v1184 = vpop.f32.mrf.mxu0
    %v1185 = vadd.f32 %v1085, %v1184
    %v1186 = vpop.f32.mrf.mxu0
    %v1187 = vpop.f32.mrf.mxu0
    %v1188 = vadd.f32 %v1085, %v1187
    %v1189 = vpop.f32.mrf.mxu0
    %1190 = vmatprep.mubr.bf16.mxu0 0
    %1191 = vmatmul.mubr.bf16.gmra.mxu0 %v1077
    %v1192 = vpop.f32.mrf.mxu0
    %v1193 = vadd.f32 %v1085, %v1192
    %v1194 = vpop.f32.mrf.mxu0
    %v1195 = vpop.f32.mrf.mxu0
    %v1196 = vadd.f32 %v1085, %v1195
    %v1197 = vpop.f32.mrf.mxu0
    %1198 = vmatprep.mubr.bf16.mxu0 0
    %1199 = vmatmul.mubr.bf16.gmra.mxu0 %v1078
    %v1200 = vpop.f32.mrf.mxu0
    %v1201 = vadd.f32 %v1085, %v1200
    %v1202 = vpop.f32.mrf.mxu0
    %v1203 = vpop.f32.mrf.mxu0
    %v1204 = vadd.f32 %v1085, %v1203
    %v1205 = vpop.f32.mrf.mxu0
    %1206 = vmatprep.mubr.bf16.mxu0 0
    %1207 = vmatmul.mubr.bf16.gmra.mxu0 %v1079
    %v1208 = vpop.f32.mrf.mxu0
    %v1209 = vadd.f32 %v1085, %v1208
    %v1210 = vpop.f32.mrf.mxu0
    %v1211 = vpop.f32.mrf.mxu0
    %v1212 = vadd.f32 %v1085, %v1211
    %v1213 = vpop.f32.mrf.mxu0
    %1214 = vmatprep.mubr.bf16.mxu0 0
    %1215 = vmatmul.mubr.bf16.gmra.mxu0 %v1080
    %v1216 = vpop.f32.mrf.mxu0
    %v1217 = vadd.f32 %v1085, %v1216
    %v1218 = vpop.f32.mrf.mxu0
    %v1219 = vpop.f32.mrf.mxu0
    %v1220 = vadd.f32 %v1085, %v1219
    %v1221 = vpop.f32.mrf.mxu0
    %1222 = vmatprep.mubr.bf16.mxu0 0
    %1223 = vmatmul.mubr.bf16.gmra.mxu0 %v1081
    %v1224 = vpop.f32.mrf.mxu0
    %v1225 = vadd.f32 %v1085, %v1224
    %v1226 = vpop.f32.mrf.mxu0
    %v1227 = vpop.f32.mrf.mxu0
    %v1228 = vadd.f32 %v1085, %v1227
    %v1229 = vpop.f32.mrf.mxu0
    %1230 = vdwg.mxu0
    %v1231 = vmax.f32 %v1169, 0.0
    %v1232 = vmax.f32 %v1172, 0.0
    %v1233 = vmax.f32 %v1177, 0.0
    %v1234 = vmax.f32 %v1180, 0.0
    %v1235 = vmax.f32 %v1185, 0.0
    %v1236 = vmax.f32 %v1188, 0.0
    %v1237 = vmax.f32 %v1193, 0.0
    %v1238 = vmax.f32 %v1196, 0.0
    %v1239 = vmax.f32 %v1201, 0.0
    %v1240 = vmax.f32 %v1204, 0.0
    %v1241 = vmax.f32 %v1209, 0.0
    %v1242 = vmax.f32 %v1212, 0.0
    %v1243 = vmax.f32 %v1217, 0.0
    %v1244 = vmax.f32 %v1220, 0.0
    %v1245 = vmax.f32 %v1225, 0.0
    %v1246 = vmax.f32 %v1228, 0.0
    %v1247 = vpack.c.bf16 %v1232, %v1231
    %v1248 = vpack.c.bf16 %v1234, %v1233
    %v1249 = vpack.c.bf16 %v1236, %v1235
    %v1250 = vpack.c.bf16 %v1238, %v1237
    %v1251 = vpack.c.bf16 %v1240, %v1239
    %v1252 = vpack.c.bf16 %v1242, %v1241
    %v1253 = vpack.c.bf16 %v1244, %v1243
    %v1254 = vpack.c.bf16 %v1246, %v1245
    %v1255 = vlaneseq
    %v1256 = vshrl.u32 %v1255, 7
    %v1257 = vsub.s32 4, %v1256
    %v1258 = vrot.slane %v122, %v1257
    %v1275 = vunpack.c.l.b16 %v223
    %v1276 = vunpack.c.l.b16 %v224
    %v1277 = vunpack.c.l.b16 %v225
    %v1278 = vunpack.c.l.b16 %v226
    %v1279 = vunpack.c.l.b16 %v227
    %v1280 = vunpack.c.l.b16 %v228
    %v1281 = vunpack.c.l.b16 %v229
    %v1282 = vunpack.c.l.b16 %v230
    %v1283 = vunpack.c.l.b16 %v231
    %v1284 = vunpack.c.l.b16 %v232
    %v1285 = vunpack.c.l.b16 %v233
    %v1286 = vunpack.c.l.b16 %v234
    %v1287 = vunpack.c.l.b16 %v235
    %v1288 = vunpack.c.l.b16 %v236
    %v1289 = vunpack.c.l.b16 %v237
    %v1290 = vunpack.c.l.b16 %v238
    %v1291 = vpack.c.b16 %v1276, %v1275
    %v1292 = vpack.c.b16 %v1278, %v1277
    %v1293 = vpack.c.b16 %v1280, %v1279
    %v1294 = vpack.c.b16 %v1282, %v1281
    %v1295 = vpack.c.b16 %v1284, %v1283
    %v1296 = vpack.c.b16 %v1286, %v1285
    %v1297 = vpack.c.b16 %v1288, %v1287
    %v1298 = vpack.c.b16 %v1290, %v1289
    %1307 = vmatprep.subr.bf16.mxu0 0
    %1308 = vmatpush1.bf16.msra.mxu0 %v1298
    %1309 = vmatprep.subr.bf16.mxu0 0
    %1310 = vmatpush1.bf16.msra.mxu0 %v1297
    %1311 = vmatprep.subr.bf16.mxu0 0
    %1312 = vmatpush1.bf16.msra.mxu0 %v1296
    %1313 = vmatprep.subr.bf16.mxu0 0
    %1314 = vmatpush1.bf16.msra.mxu0 %v1295
    %1315 = vmatprep.subr.bf16.mxu0 0
    %1316 = vmatpush1.bf16.msra.mxu0 %v1294
    %1317 = vmatprep.subr.bf16.mxu0 0
    %1318 = vmatpush1.bf16.msra.mxu0 %v1293
    %1319 = vmatprep.subr.bf16.mxu0 0
    %1320 = vmatpush1.bf16.msra.mxu0 %v1292
    %1321 = vmatprep.subr.bf16.mxu0 0
    %1322 = vmatpush1.bf16.msra.mxu0 %v1291
    %1323 = vmatprep.subr.bf16.mxu0 0
    %1324 = vmatpush2.bf16.msra.mxu0 0
    %1325 = vmatprep.subr.bf16.mxu0 0
    %1326 = vmatpush2.bf16.msra.mxu0 0
    %1327 = vmatprep.subr.bf16.mxu0 0
    %1328 = vmatpush2.bf16.msra.mxu0 0
    %1329 = vmatprep.subr.bf16.mxu0 0
    %1330 = vmatpush2.bf16.msra.mxu0 0
    %1331 = vmatprep.subr.bf16.mxu0 0
    %1332 = vmatpush2.bf16.msra.mxu0 0
    %1333 = vmatprep.subr.bf16.mxu0 0
    %1334 = vmatpush2.bf16.msra.mxu0 0
    %1335 = vmatprep.subr.bf16.mxu0 0
    %1336 = vmatpush2.bf16.msra.mxu0 0
    %1337 = vmatprep.subr.bf16.mxu0 0
    %1338 = vmatpush2.bf16.msra.mxu0 0
    %1339 = vmatprep.mubr.bf16.mxu0 0
    %1340 = vmatmul.mubr.bf16.gmra.mxu0 %v1247
    %v1341 = vpop.f32.mrf.mxu0
    %v1342 = vadd.f32 %v1258, %v1341
    %v1343 = vpop.f32.mrf.mxu0
    %v1344 = vpop.f32.mrf.mxu0
    %v1345 = vadd.f32 %v1258, %v1344
    %v1346 = vpop.f32.mrf.mxu0
    %1347 = vmatprep.mubr.bf16.mxu0 0
    %1348 = vmatmul.mubr.bf16.gmra.mxu0 %v1248
    %v1349 = vpop.f32.mrf.mxu0
    %v1350 = vadd.f32 %v1258, %v1349
    %v1351 = vpop.f32.mrf.mxu0
    %v1352 = vpop.f32.mrf.mxu0
    %v1353 = vadd.f32 %v1258, %v1352
    %v1354 = vpop.f32.mrf.mxu0
    %1355 = vmatprep.mubr.bf16.mxu0 0
    %1356 = vmatmul.mubr.bf16.gmra.mxu0 %v1249
    %v1357 = vpop.f32.mrf.mxu0
    %v1358 = vadd.f32 %v1258, %v1357
    %v1359 = vpop.f32.mrf.mxu0
    %v1360 = vpop.f32.mrf.mxu0
    %v1361 = vadd.f32 %v1258, %v1360
    %v1362 = vpop.f32.mrf.mxu0
    %1363 = vmatprep.mubr.bf16.mxu0 0
    %1364 = vmatmul.mubr.bf16.gmra.mxu0 %v1250
    %v1365 = vpop.f32.mrf.mxu0
    %v1366 = vadd.f32 %v1258, %v1365
    %v1367 = vpop.f32.mrf.mxu0
    %v1368 = vpop.f32.mrf.mxu0
    %v1369 = vadd.f32 %v1258, %v1368
    %v1370 = vpop.f32.mrf.mxu0
    %1371 = vmatprep.mubr.bf16.mxu0 0
    %1372 = vmatmul.mubr.bf16.gmra.mxu0 %v1251
    %v1373 = vpop.f32.mrf.mxu0
    %v1374 = vadd.f32 %v1258, %v1373
    %v1375 = vpop.f32.mrf.mxu0
    %v1376 = vpop.f32.mrf.mxu0
    %v1377 = vadd.f32 %v1258, %v1376
    %v1378 = vpop.f32.mrf.mxu0
    %1379 = vmatprep.mubr.bf16.mxu0 0
    %1380 = vmatmul.mubr.bf16.gmra.mxu0 %v1252
    %v1381 = vpop.f32.mrf.mxu0
    %v1382 = vadd.f32 %v1258, %v1381
    %v1383 = vpop.f32.mrf.mxu0
    %v1384 = vpop.f32.mrf.mxu0
    %v1385 = vadd.f32 %v1258, %v1384
    %v1386 = vpop.f32.mrf.mxu0
    %1387 = vmatprep.mubr.bf16.mxu0 0
    %1388 = vmatmul.mubr.bf16.gmra.mxu0 %v1253
    %v1389 = vpop.f32.mrf.mxu0
    %v1390 = vadd.f32 %v1258, %v1389
    %v1391 = vpop.f32.mrf.mxu0
    %v1392 = vpop.f32.mrf.mxu0
    %v1393 = vadd.f32 %v1258, %v1392
    %v1394 = vpop.f32.mrf.mxu0
    %1395 = vmatprep.mubr.bf16.mxu0 0
    %1396 = vmatmul.mubr.bf16.gmra.mxu0 %v1254
    %v1397 = vpop.f32.mrf.mxu0
    %v1398 = vadd.f32 %v1258, %v1397
    %v1399 = vpop.f32.mrf.mxu0
    %v1400 = vpop.f32.mrf.mxu0
    %v1401 = vadd.f32 %v1258, %v1400
    %v1402 = vpop.f32.mrf.mxu0
    %1403 = vdwg.mxu0
    %v1404 = vmul.f32 %v293, 0.1
    %v1405 = vadd.f32 %v1342, %v1404
    %v1406 = vadd.f32 %v1345, %v1404
    %v1407 = vadd.f32 %v1350, %v1404
    %v1408 = vadd.f32 %v1353, %v1404
    %v1409 = vadd.f32 %v1358, %v1404
    %v1410 = vadd.f32 %v1361, %v1404
    %v1411 = vadd.f32 %v1366, %v1404
    %v1412 = vadd.f32 %v1369, %v1404
    %v1413 = vadd.f32 %v1374, %v1404
    %v1414 = vadd.f32 %v1377, %v1404
    %v1415 = vadd.f32 %v1382, %v1404
    %v1416 = vadd.f32 %v1385, %v1404
    %v1417 = vadd.f32 %v1390, %v1404
    %v1418 = vadd.f32 %v1393, %v1404
    %v1419 = vadd.f32 %v1398, %v1404
    %v1420 = vadd.f32 %v1401, %v1404
    %1421 = vadd.xlane.f32.xlu0 %v1405
    %v1422 = vpop.xlane.xlu0 %1421
    %1423 = vadd.xlane.f32.xlu0 %v1406
    %v1424 = vpop.xlane.xlu0 %1423
    %1425 = vadd.xlane.f32.xlu0 %v1407
    %v1426 = vpop.xlane.xlu0 %1425
    %1427 = vadd.xlane.f32.xlu0 %v1408
    %v1428 = vpop.xlane.xlu0 %1427
    %1429 = vadd.xlane.f32.xlu0 %v1409
    %v1430 = vpop.xlane.xlu0 %1429
    %1431 = vadd.xlane.f32.xlu0 %v1410
    %v1432 = vpop.xlane.xlu0 %1431
    %1433 = vadd.xlane.f32.xlu0 %v1411
    %v1434 = vpop.xlane.xlu0 %1433
    %1435 = vadd.xlane.f32.xlu0 %v1412
    %v1436 = vpop.xlane.xlu0 %1435
    %1437 = vadd.xlane.f32.xlu0 %v1413
    %v1438 = vpop.xlane.xlu0 %1437
    %1439 = vadd.xlane.f32.xlu0 %v1414
    %v1440 = vpop.xlane.xlu0 %1439
    %1441 = vadd.xlane.f32.xlu0 %v1415
    %v1442 = vpop.xlane.xlu0 %1441
    %1443 = vadd.xlane.f32.xlu0 %v1416
    %v1444 = vpop.xlane.xlu0 %1443
    %1445 = vadd.xlane.f32.xlu0 %v1417
    %v1446 = vpop.xlane.xlu0 %1445
    %1447 = vadd.xlane.f32.xlu0 %v1418
    %v1448 = vpop.xlane.xlu0 %1447
    %1449 = vadd.xlane.f32.xlu0 %v1419
    %v1450 = vpop.xlane.xlu0 %1449
    %1451 = vadd.xlane.f32.xlu0 %v1420
    %v1452 = vpop.xlane.xlu0 %1451
    %v1453 = vmul.f32 %v1422, 0.0625
    %v1454 = vmul.f32 %v1424, 0.0625
    %v1455 = vmul.f32 %v1426, 0.0625
    %v1456 = vmul.f32 %v1428, 0.0625
    %v1457 = vmul.f32 %v1430, 0.0625
    %v1458 = vmul.f32 %v1432, 0.0625
    %v1459 = vmul.f32 %v1434, 0.0625
    %v1460 = vmul.f32 %v1436, 0.0625
    %v1461 = vmul.f32 %v1438, 0.0625
    %v1462 = vmul.f32 %v1440, 0.0625
    %v1463 = vmul.f32 %v1442, 0.0625
    %v1464 = vmul.f32 %v1444, 0.0625
    %v1465 = vmul.f32 %v1446, 0.0625
    %v1466 = vmul.f32 %v1448, 0.0625
    %v1467 = vmul.f32 %v1450, 0.0625
    %v1468 = vmul.f32 %v1452, 0.0625
    %v1469 = vsub.f32 %v1405, %v1453
    %v1470 = vsub.f32 %v1406, %v1454
    %v1471 = vsub.f32 %v1407, %v1455
    %v1472 = vsub.f32 %v1408, %v1456
    %v1473 = vsub.f32 %v1409, %v1457
    %v1474 = vsub.f32 %v1410, %v1458
    %v1475 = vsub.f32 %v1411, %v1459
    %v1476 = vsub.f32 %v1412, %v1460
    %v1477 = vsub.f32 %v1413, %v1461
    %v1478 = vsub.f32 %v1414, %v1462
    %v1479 = vsub.f32 %v1415, %v1463
    %v1480 = vsub.f32 %v1416, %v1464
    %v1481 = vsub.f32 %v1417, %v1465
    %v1482 = vsub.f32 %v1418, %v1466
    %v1483 = vsub.f32 %v1419, %v1467
    %v1484 = vsub.f32 %v1420, %v1468
    %v1485 = vlaneseq
    %v1486 = vshrl.u32 %v1485, 7
    %v1487 = vsub.s32 3, %v1486
    %v1488 = vrot.slane %v123, %v1487
    %v1489 = vmul.f32 %v1469, %v1488
    %v1490 = vmul.f32 %v1470, %v1488
    %v1491 = vmul.f32 %v1471, %v1488
    %v1492 = vmul.f32 %v1472, %v1488
    %v1493 = vmul.f32 %v1473, %v1488
    %v1494 = vmul.f32 %v1474, %v1488
    %v1495 = vmul.f32 %v1475, %v1488
    %v1496 = vmul.f32 %v1476, %v1488
    %v1497 = vmul.f32 %v1477, %v1488
    %v1498 = vmul.f32 %v1478, %v1488
    %v1499 = vmul.f32 %v1479, %v1488
    %v1500 = vmul.f32 %v1480, %v1488
    %v1501 = vmul.f32 %v1481, %v1488
    %v1502 = vmul.f32 %v1482, %v1488
    %v1503 = vmul.f32 %v1483, %v1488
    %v1504 = vmul.f32 %v1484, %v1488
    %v1505 = vmul.f32 %v1489, %v1489
    %v1506 = vmul.f32 %v1490, %v1490
    %v1507 = vmul.f32 %v1491, %v1491
    %v1508 = vmul.f32 %v1492, %v1492
    %v1509 = vmul.f32 %v1493, %v1493
    %v1510 = vmul.f32 %v1494, %v1494
    %v1511 = vmul.f32 %v1495, %v1495
    %v1512 = vmul.f32 %v1496, %v1496
    %v1513 = vmul.f32 %v1497, %v1497
    %v1514 = vmul.f32 %v1498, %v1498
    %v1515 = vmul.f32 %v1499, %v1499
    %v1516 = vmul.f32 %v1500, %v1500
    %v1517 = vmul.f32 %v1501, %v1501
    %v1518 = vmul.f32 %v1502, %v1502
    %v1519 = vmul.f32 %v1503, %v1503
    %v1520 = vmul.f32 %v1504, %v1504
    %1521 = vadd.xlane.f32.xlu0 %v1505
    %v1522 = vpop.xlane.xlu0 %1521
    %1523 = vadd.xlane.f32.xlu0 %v1506
    %v1524 = vpop.xlane.xlu0 %1523
    %1525 = vadd.xlane.f32.xlu0 %v1507
    %v1526 = vpop.xlane.xlu0 %1525
    %1527 = vadd.xlane.f32.xlu0 %v1508
    %v1528 = vpop.xlane.xlu0 %1527
    %1529 = vadd.xlane.f32.xlu0 %v1509
    %v1530 = vpop.xlane.xlu0 %1529
    %1531 = vadd.xlane.f32.xlu0 %v1510
    %v1532 = vpop.xlane.xlu0 %1531
    %1533 = vadd.xlane.f32.xlu0 %v1511
    %v1534 = vpop.xlane.xlu0 %1533
    %1535 = vadd.xlane.f32.xlu0 %v1512
    %v1536 = vpop.xlane.xlu0 %1535
    %1537 = vadd.xlane.f32.xlu0 %v1513
    %v1538 = vpop.xlane.xlu0 %1537
    %1539 = vadd.xlane.f32.xlu0 %v1514
    %v1540 = vpop.xlane.xlu0 %1539
    %1541 = vadd.xlane.f32.xlu0 %v1515
    %v1542 = vpop.xlane.xlu0 %1541
    %1543 = vadd.xlane.f32.xlu0 %v1516
    %v1544 = vpop.xlane.xlu0 %1543
    %1545 = vadd.xlane.f32.xlu0 %v1517
    %v1546 = vpop.xlane.xlu0 %1545
    %1547 = vadd.xlane.f32.xlu0 %v1518
    %v1548 = vpop.xlane.xlu0 %1547
    %1549 = vadd.xlane.f32.xlu0 %v1519
    %v1550 = vpop.xlane.xlu0 %1549
    %1551 = vadd.xlane.f32.xlu0 %v1520
    %v1552 = vpop.xlane.xlu0 %1551
    %v1553 = vmul.f32 %v1522, 0.0625
    %v1554 = vmul.f32 %v1524, 0.0625
    %v1555 = vmul.f32 %v1526, 0.0625
    %v1556 = vmul.f32 %v1528, 0.0625
    %v1557 = vmul.f32 %v1530, 0.0625
    %v1558 = vmul.f32 %v1532, 0.0625
    %v1559 = vmul.f32 %v1534, 0.0625
    %v1560 = vmul.f32 %v1536, 0.0625
    %v1561 = vmul.f32 %v1538, 0.0625
    %v1562 = vmul.f32 %v1540, 0.0625
    %v1563 = vmul.f32 %v1542, 0.0625
    %v1564 = vmul.f32 %v1544, 0.0625
    %v1565 = vmul.f32 %v1546, 0.0625
    %v1566 = vmul.f32 %v1548, 0.0625
    %v1567 = vmul.f32 %v1550, 0.0625
    %v1568 = vmul.f32 %v1552, 0.0625
    %v1569 = vadd.f32 %v1553, 1e-05
    %v1570 = vadd.f32 %v1554, 1e-05
    %v1571 = vadd.f32 %v1555, 1e-05
    %v1572 = vadd.f32 %v1556, 1e-05
    %v1573 = vadd.f32 %v1557, 1e-05
    %v1574 = vadd.f32 %v1558, 1e-05
    %v1575 = vadd.f32 %v1559, 1e-05
    %v1576 = vadd.f32 %v1560, 1e-05
    %v1577 = vadd.f32 %v1561, 1e-05
    %v1578 = vadd.f32 %v1562, 1e-05
    %v1579 = vadd.f32 %v1563, 1e-05
    %v1580 = vadd.f32 %v1564, 1e-05
    %v1581 = vadd.f32 %v1565, 1e-05
    %v1582 = vadd.f32 %v1566, 1e-05
    %v1583 = vadd.f32 %v1567, 1e-05
    %v1584 = vadd.f32 %v1568, 1e-05
    %v1585 = vrsqrt.pop %v1569
    %v1586 = vrsqrt.pop %v1570
    %v1587 = vrsqrt.pop %v1571
    %v1588 = vrsqrt.pop %v1572
    %v1589 = vrsqrt.pop %v1573
    %v1590 = vrsqrt.pop %v1574
    %v1591 = vrsqrt.pop %v1575
    %v1592 = vrsqrt.pop %v1576
    %v1593 = vrsqrt.pop %v1577
    %v1594 = vrsqrt.pop %v1578
    %v1595 = vrsqrt.pop %v1579
    %v1596 = vrsqrt.pop %v1580
    %v1597 = vrsqrt.pop %v1581
    %v1598 = vrsqrt.pop %v1582
    %v1599 = vrsqrt.pop %v1583
    %v1600 = vrsqrt.pop %v1584
    %v1601 = vmul.f32 %v1489, %v1585
    %v1602 = vmul.f32 %v1490, %v1586
    %v1603 = vmul.f32 %v1491, %v1587
    %v1604 = vmul.f32 %v1492, %v1588
    %v1605 = vmul.f32 %v1493, %v1589
    %v1606 = vmul.f32 %v1494, %v1590
    %v1607 = vmul.f32 %v1495, %v1591
    %v1608 = vmul.f32 %v1496, %v1592
    %v1609 = vmul.f32 %v1497, %v1593
    %v1610 = vmul.f32 %v1498, %v1594
    %v1611 = vmul.f32 %v1499, %v1595
    %v1612 = vmul.f32 %v1500, %v1596
    %v1613 = vmul.f32 %v1501, %v1597
    %v1614 = vmul.f32 %v1502, %v1598
    %v1615 = vmul.f32 %v1503, %v1599
    %v1616 = vmul.f32 %v1504, %v1600
    %v1617 = vlaneseq
    %v1618 = vshrl.u32 %v1617, 7
    %v1619 = vsub.s32 1, %v1618
    %v1620 = vrot.slane %v123, %v1619
    %v1621 = vmul.f32 %v1601, %v1620
    %v1622 = vmul.f32 %v1602, %v1620
    %v1623 = vmul.f32 %v1603, %v1620
    %v1624 = vmul.f32 %v1604, %v1620
    %v1625 = vmul.f32 %v1605, %v1620
    %v1626 = vmul.f32 %v1606, %v1620
    %v1627 = vmul.f32 %v1607, %v1620
    %v1628 = vmul.f32 %v1608, %v1620
    %v1629 = vmul.f32 %v1609, %v1620
    %v1630 = vmul.f32 %v1610, %v1620
    %v1631 = vmul.f32 %v1611, %v1620
    %v1632 = vmul.f32 %v1612, %v1620
    %v1633 = vmul.f32 %v1613, %v1620
    %v1634 = vmul.f32 %v1614, %v1620
    %v1635 = vmul.f32 %v1615, %v1620
    %v1636 = vmul.f32 %v1616, %v1620
    %v1637 = vlaneseq
    %v1638 = vshrl.u32 %v1637, 7
    %v1639 = vsub.s32 2, %v1638
    %v1640 = vrot.slane %v123, %v1639
    %v1641 = vadd.f32 %v1621, %v1640
    %v1642 = vadd.f32 %v1622, %v1640
    %v1643 = vadd.f32 %v1623, %v1640
    %v1644 = vadd.f32 %v1624, %v1640
    %v1645 = vadd.f32 %v1625, %v1640
    %v1646 = vadd.f32 %v1626, %v1640
    %v1647 = vadd.f32 %v1627, %v1640
    %v1648 = vadd.f32 %v1628, %v1640
    %v1649 = vadd.f32 %v1629, %v1640
    %v1650 = vadd.f32 %v1630, %v1640
    %v1651 = vadd.f32 %v1631, %v1640
    %v1652 = vadd.f32 %v1632, %v1640
    %v1653 = vadd.f32 %v1633, %v1640
    %v1654 = vadd.f32 %v1634, %v1640
    %v1655 = vadd.f32 %v1635, %v1640
    %v1656 = vadd.f32 %v1636, %v1640
    %v1657 = vpack.c.bf16 %v1642, %v1641
    %v1658 = vpack.c.bf16 %v1644, %v1643
    %v1659 = vpack.c.bf16 %v1646, %v1645
    %v1660 = vpack.c.bf16 %v1648, %v1647
    %v1661 = vpack.c.bf16 %v1650, %v1649
    %v1662 = vpack.c.bf16 %v1652, %v1651
    %v1663 = vpack.c.bf16 %v1654, %v1653
    %v1664 = vpack.c.bf16 %v1656, %v1655
    %1665 = vmatprep.subr.bf16.mxu0 0
    %1666 = vmatpush1.bf16.msra.mxu0 %v366
    %1667 = vmatprep.subr.bf16.mxu0 0
    %1668 = vmatpush1.bf16.msra.mxu0 %v365
    %1669 = vmatprep.subr.bf16.mxu0 0
    %1670 = vmatpush1.bf16.msra.mxu0 %v364
    %1671 = vmatprep.subr.bf16.mxu0 0
    %1672 = vmatpush1.bf16.msra.mxu0 %v363
    %1673 = vmatprep.subr.bf16.mxu0 0
    %1674 = vmatpush1.bf16.msra.mxu0 %v362
    %1675 = vmatprep.subr.bf16.mxu0 0
    %1676 = vmatpush1.bf16.msra.mxu0 %v361
    %1677 = vmatprep.subr.bf16.mxu0 0
    %1678 = vmatpush1.bf16.msra.mxu0 %v360
    %1679 = vmatprep.subr.bf16.mxu0 0
    %1680 = vmatpush1.bf16.msra.mxu0 %v359
    %1681 = vmatprep.subr.bf16.mxu0 0
    %1682 = vmatpush2.bf16.msra.mxu0 %v374
    %1683 = vmatprep.subr.bf16.mxu0 0
    %1684 = vmatpush2.bf16.msra.mxu0 %v373
    %1685 = vmatprep.subr.bf16.mxu0 0
    %1686 = vmatpush2.bf16.msra.mxu0 %v372
    %1687 = vmatprep.subr.bf16.mxu0 0
    %1688 = vmatpush2.bf16.msra.mxu0 %v371
    %1689 = vmatprep.subr.bf16.mxu0 0
    %1690 = vmatpush2.bf16.msra.mxu0 %v370
    %1691 = vmatprep.subr.bf16.mxu0 0
    %1692 = vmatpush2.bf16.msra.mxu0 %v369
    %1693 = vmatprep.subr.bf16.mxu0 0
    %1694 = vmatpush2.bf16.msra.mxu0 %v368
    %1695 = vmatprep.subr.bf16.mxu0 0
    %1696 = vmatpush2.bf16.msra.mxu0 %v367
    %1697 = vmatprep.mubr.bf16.mxu0 %v1661
    %1698 = vmatmul.mubr.bf16.gmra.mxu0 %v1657
    %v1699 = vpop.f32.mrf.mxu0
    %v1700 = vadd.f32 0.0, %v1699
    %v1701 = vpop.f32.mrf.mxu0
    %v1702 = vpop.f32.mrf.mxu0
    %v1703 = vadd.f32 0.0, %v1702
    %v1704 = vpop.f32.mrf.mxu0
    %1705 = vmatprep.mubr.bf16.mxu0 %v1662
    %1706 = vmatmul.mubr.bf16.gmra.mxu0 %v1658
    %v1707 = vpop.f32.mrf.mxu0
    %v1708 = vadd.f32 0.0, %v1707
    %v1709 = vpop.f32.mrf.mxu0
    %v1710 = vpop.f32.mrf.mxu0
    %v1711 = vadd.f32 0.0, %v1710
    %v1712 = vpop.f32.mrf.mxu0
    %1713 = vmatprep.mubr.bf16.mxu0 %v1663
    %1714 = vmatmul.mubr.bf16.gmra.mxu0 %v1659
    %v1715 = vpop.f32.mrf.mxu0
    %v1716 = vadd.f32 0.0, %v1715
    %v1717 = vpop.f32.mrf.mxu0
    %v1718 = vpop.f32.mrf.mxu0
    %v1719 = vadd.f32 0.0, %v1718
    %v1720 = vpop.f32.mrf.mxu0
    %1721 = vmatprep.mubr.bf16.mxu0 %v1664
    %1722 = vmatmul.mubr.bf16.gmra.mxu0 %v1660
    %v1723 = vpop.f32.mrf.mxu0
    %v1724 = vadd.f32 0.0, %v1723
    %v1725 = vpop.f32.mrf.mxu0
    %v1726 = vpop.f32.mrf.mxu0
    %v1727 = vadd.f32 0.0, %v1726
    %v1728 = vpop.f32.mrf.mxu0
    %1729 = vmatprep.mubr.bf16.mxu0 %v1657
    %1730 = vmatmul.mubr.bf16.gmra.mxu0 %v1661
    %v1731 = vpop.f32.mrf.mxu0
    %v1732 = vadd.f32 0.0, %v1731
    %v1733 = vpop.f32.mrf.mxu0
    %v1734 = vpop.f32.mrf.mxu0
    %v1735 = vadd.f32 0.0, %v1734
    %v1736 = vpop.f32.mrf.mxu0
    %1737 = vmatprep.mubr.bf16.mxu0 %v1658
    %1738 = vmatmul.mubr.bf16.gmra.mxu0 %v1662
    %v1739 = vpop.f32.mrf.mxu0
    %v1740 = vadd.f32 0.0, %v1739
    %v1741 = vpop.f32.mrf.mxu0
    %v1742 = vpop.f32.mrf.mxu0
    %v1743 = vadd.f32 0.0, %v1742
    %v1744 = vpop.f32.mrf.mxu0
    %1745 = vmatprep.mubr.bf16.mxu0 %v1659
    %1746 = vmatmul.mubr.bf16.gmra.mxu0 %v1663
    %v1747 = vpop.f32.mrf.mxu0
    %v1748 = vadd.f32 0.0, %v1747
    %v1749 = vpop.f32.mrf.mxu0
    %v1750 = vpop.f32.mrf.mxu0
    %v1751 = vadd.f32 0.0, %v1750
    %v1752 = vpop.f32.mrf.mxu0
    %1753 = vmatprep.mubr.bf16.mxu0 %v1660
    %1754 = vmatmul.mubr.bf16.gmra.mxu0 %v1664
    %v1755 = vpop.f32.mrf.mxu0
    %v1756 = vadd.f32 0.0, %v1755
    %v1757 = vpop.f32.mrf.mxu0
    %v1758 = vpop.f32.mrf.mxu0
    %v1759 = vadd.f32 0.0, %v1758
    %v1760 = vpop.f32.mrf.mxu0
    %1761 = vdwg.mxu0
    %v1762 = vpack.c.bf16 %v1703, %v1700
    %v1763 = vpack.c.bf16 %v1711, %v1708
    %v1764 = vpack.c.bf16 %v1719, %v1716
    %v1765 = vpack.c.bf16 %v1727, %v1724
    %v1766 = vpack.c.bf16 %v1735, %v1732
    %v1767 = vpack.c.bf16 %v1743, %v1740
    %v1768 = vpack.c.bf16 %v1751, %v1748
    %v1769 = vpack.c.bf16 %v1759, %v1756
    %1770 = vmatprep.subr.bf16.mxu0 0
    %1771 = vmatpush1.bf16.msra.mxu0 %v1769
    %1772 = vmatprep.subr.bf16.mxu0 0
    %1773 = vmatpush1.bf16.msra.mxu0 %v1768
    %1774 = vmatprep.subr.bf16.mxu0 0
    %1775 = vmatpush1.bf16.msra.mxu0 %v1767
    %1776 = vmatprep.subr.bf16.mxu0 0
    %1777 = vmatpush1.bf16.msra.mxu0 %v1766
    %1778 = vmatprep.subr.bf16.mxu0 0
    %1779 = vmatpush1.bf16.msra.mxu0 %v1765
    %1780 = vmatprep.subr.bf16.mxu0 0
    %1781 = vmatpush1.bf16.msra.mxu0 %v1764
    %1782 = vmatprep.subr.bf16.mxu0 0
    %1783 = vmatpush1.bf16.msra.mxu0 %v1763
    %1784 = vmatprep.subr.bf16.mxu0 0
    %1785 = vmatpush1.bf16.msra.mxu0 %v1762
    %1786 = vmatprep.subr.bf16.mxu0 0
    %1787 = vmatpush2.bf16.msra.mxu0 0
    %1788 = vmatprep.subr.bf16.mxu0 0
    %1789 = vmatpush2.bf16.msra.mxu0 0
    %1790 = vmatprep.subr.bf16.mxu0 0
    %1791 = vmatpush2.bf16.msra.mxu0 0
    %1792 = vmatprep.subr.bf16.mxu0 0
    %1793 = vmatpush2.bf16.msra.mxu0 0
    %1794 = vmatprep.subr.bf16.mxu0 0
    %1795 = vmatpush2.bf16.msra.mxu0 0
    %1796 = vmatprep.subr.bf16.mxu0 0
    %1797 = vmatpush2.bf16.msra.mxu0 0
    %1798 = vmatprep.subr.bf16.mxu0 0
    %1799 = vmatpush2.bf16.msra.mxu0 0
    %1800 = vmatprep.subr.bf16.mxu0 0
    %1801 = vmatpush2.bf16.msra.mxu0 0
    %1802 = vmatprep.mubr.bf16.mxu0 0
    %1803 = vmatmul.mubr.bf16.gmra.mxu0 %v532
    %v1804 = vpop.f32.mrf.mxu0
    %v1805 = vadd.f32 %v499, %v1804
    %v1806 = vpop.f32.mrf.mxu0
    %v1807 = vpop.f32.mrf.mxu0
    %v1808 = vadd.f32 %v499, %v1807
    %v1809 = vpop.f32.mrf.mxu0
    %1810 = vmatprep.mubr.bf16.mxu0 0
    %1811 = vmatmul.mubr.bf16.gmra.mxu0 %v533
    %v1812 = vpop.f32.mrf.mxu0
    %v1813 = vadd.f32 %v499, %v1812
    %v1814 = vpop.f32.mrf.mxu0
    %v1815 = vpop.f32.mrf.mxu0
    %v1816 = vadd.f32 %v499, %v1815
    %v1817 = vpop.f32.mrf.mxu0
    %1818 = vmatprep.mubr.bf16.mxu0 0
    %1819 = vmatmul.mubr.bf16.gmra.mxu0 %v534
    %v1820 = vpop.f32.mrf.mxu0
    %v1821 = vadd.f32 %v499, %v1820
    %v1822 = vpop.f32.mrf.mxu0
    %v1823 = vpop.f32.mrf.mxu0
    %v1824 = vadd.f32 %v499, %v1823
    %v1825 = vpop.f32.mrf.mxu0
    %1826 = vmatprep.mubr.bf16.mxu0 0
    %1827 = vmatmul.mubr.bf16.gmra.mxu0 %v535
    %v1828 = vpop.f32.mrf.mxu0
    %v1829 = vadd.f32 %v499, %v1828
    %v1830 = vpop.f32.mrf.mxu0
    %v1831 = vpop.f32.mrf.mxu0
    %v1832 = vadd.f32 %v499, %v1831
    %v1833 = vpop.f32.mrf.mxu0
    %1834 = vmatprep.mubr.bf16.mxu0 0
    %1835 = vmatmul.mubr.bf16.gmra.mxu0 %v536
    %v1836 = vpop.f32.mrf.mxu0
    %v1837 = vadd.f32 %v499, %v1836
    %v1838 = vpop.f32.mrf.mxu0
    %v1839 = vpop.f32.mrf.mxu0
    %v1840 = vadd.f32 %v499, %v1839
    %v1841 = vpop.f32.mrf.mxu0
    %1842 = vmatprep.mubr.bf16.mxu0 0
    %1843 = vmatmul.mubr.bf16.gmra.mxu0 %v537
    %v1844 = vpop.f32.mrf.mxu0
    %v1845 = vadd.f32 %v499, %v1844
    %v1846 = vpop.f32.mrf.mxu0
    %v1847 = vpop.f32.mrf.mxu0
    %v1848 = vadd.f32 %v499, %v1847
    %v1849 = vpop.f32.mrf.mxu0
    %1850 = vmatprep.mubr.bf16.mxu0 0
    %1851 = vmatmul.mubr.bf16.gmra.mxu0 %v538
    %v1852 = vpop.f32.mrf.mxu0
    %v1853 = vadd.f32 %v499, %v1852
    %v1854 = vpop.f32.mrf.mxu0
    %v1855 = vpop.f32.mrf.mxu0
    %v1856 = vadd.f32 %v499, %v1855
    %v1857 = vpop.f32.mrf.mxu0
    %1858 = vmatprep.mubr.bf16.mxu0 0
    %1859 = vmatmul.mubr.bf16.gmra.mxu0 %v539
    %v1860 = vpop.f32.mrf.mxu0
    %v1861 = vadd.f32 %v499, %v1860
    %v1862 = vpop.f32.mrf.mxu0
    %v1863 = vpop.f32.mrf.mxu0
    %v1864 = vadd.f32 %v499, %v1863
    %v1865 = vpop.f32.mrf.mxu0
    %1866 = vdwg.mxu0
    %v1867 = vmax.f32 %v1805, 0.0
    %v1868 = vmax.f32 %v1808, 0.0
    %v1869 = vmax.f32 %v1813, 0.0
    %v1870 = vmax.f32 %v1816, 0.0
    %v1871 = vmax.f32 %v1821, 0.0
    %v1872 = vmax.f32 %v1824, 0.0
    %v1873 = vmax.f32 %v1829, 0.0
    %v1874 = vmax.f32 %v1832, 0.0
    %v1875 = vmax.f32 %v1837, 0.0
    %v1876 = vmax.f32 %v1840, 0.0
    %v1877 = vmax.f32 %v1845, 0.0
    %v1878 = vmax.f32 %v1848, 0.0
    %v1879 = vmax.f32 %v1853, 0.0
    %v1880 = vmax.f32 %v1856, 0.0
    %v1881 = vmax.f32 %v1861, 0.0
    %v1882 = vmax.f32 %v1864, 0.0
    %v1883 = vpack.c.bf16 %v1868, %v1867
    %v1884 = vpack.c.bf16 %v1870, %v1869
    %v1885 = vpack.c.bf16 %v1872, %v1871
    %v1886 = vpack.c.bf16 %v1874, %v1873
    %v1887 = vpack.c.bf16 %v1876, %v1875
    %v1888 = vpack.c.bf16 %v1878, %v1877
    %v1889 = vpack.c.bf16 %v1880, %v1879
    %v1890 = vpack.c.bf16 %v1882, %v1881
    %1891 = vmatprep.subr.bf16.mxu0 0
    %1892 = vmatpush1.bf16.msra.mxu0 %v712
    %1893 = vmatprep.subr.bf16.mxu0 0
    %1894 = vmatpush1.bf16.msra.mxu0 %v711
    %1895 = vmatprep.subr.bf16.mxu0 0
    %1896 = vmatpush1.bf16.msra.mxu0 %v710
    %1897 = vmatprep.subr.bf16.mxu0 0
    %1898 = vmatpush1.bf16.msra.mxu0 %v709
    %1899 = vmatprep.subr.bf16.mxu0 0
    %1900 = vmatpush1.bf16.msra.mxu0 %v708
    %1901 = vmatprep.subr.bf16.mxu0 0
    %1902 = vmatpush1.bf16.msra.mxu0 %v707
    %1903 = vmatprep.subr.bf16.mxu0 0
    %1904 = vmatpush1.bf16.msra.mxu0 %v706
    %1905 = vmatprep.subr.bf16.mxu0 0
    %1906 = vmatpush1.bf16.msra.mxu0 %v705
    %1907 = vmatprep.subr.bf16.mxu0 0
    %1908 = vmatpush2.bf16.msra.mxu0 0
    %1909 = vmatprep.subr.bf16.mxu0 0
    %1910 = vmatpush2.bf16.msra.mxu0 0
    %1911 = vmatprep.subr.bf16.mxu0 0
    %1912 = vmatpush2.bf16.msra.mxu0 0
    %1913 = vmatprep.subr.bf16.mxu0 0
    %1914 = vmatpush2.bf16.msra.mxu0 0
    %1915 = vmatprep.subr.bf16.mxu0 0
    %1916 = vmatpush2.bf16.msra.mxu0 0
    %1917 = vmatprep.subr.bf16.mxu0 0
    %1918 = vmatpush2.bf16.msra.mxu0 0
    %1919 = vmatprep.subr.bf16.mxu0 0
    %1920 = vmatpush2.bf16.msra.mxu0 0
    %1921 = vmatprep.subr.bf16.mxu0 0
    %1922 = vmatpush2.bf16.msra.mxu0 0
    %1923 = vmatprep.mubr.bf16.mxu0 0
    %1924 = vmatmul.mubr.bf16.gmra.mxu0 %v1883
    %v1925 = vpop.f32.mrf.mxu0
    %v1926 = vadd.f32 %v672, %v1925
    %v1927 = vpop.f32.mrf.mxu0
    %v1928 = vpop.f32.mrf.mxu0
    %v1929 = vadd.f32 %v672, %v1928
    %v1930 = vpop.f32.mrf.mxu0
    %1931 = vmatprep.mubr.bf16.mxu0 0
    %1932 = vmatmul.mubr.bf16.gmra.mxu0 %v1884
    %v1933 = vpop.f32.mrf.mxu0
    %v1934 = vadd.f32 %v672, %v1933
    %v1935 = vpop.f32.mrf.mxu0
    %v1936 = vpop.f32.mrf.mxu0
    %v1937 = vadd.f32 %v672, %v1936
    %v1938 = vpop.f32.mrf.mxu0
    %1939 = vmatprep.mubr.bf16.mxu0 0
    %1940 = vmatmul.mubr.bf16.gmra.mxu0 %v1885
    %v1941 = vpop.f32.mrf.mxu0
    %v1942 = vadd.f32 %v672, %v1941
    %v1943 = vpop.f32.mrf.mxu0
    %v1944 = vpop.f32.mrf.mxu0
    %v1945 = vadd.f32 %v672, %v1944
    %v1946 = vpop.f32.mrf.mxu0
    %1947 = vmatprep.mubr.bf16.mxu0 0
    %1948 = vmatmul.mubr.bf16.gmra.mxu0 %v1886
    %v1949 = vpop.f32.mrf.mxu0
    %v1950 = vadd.f32 %v672, %v1949
    %v1951 = vpop.f32.mrf.mxu0
    %v1952 = vpop.f32.mrf.mxu0
    %v1953 = vadd.f32 %v672, %v1952
    %v1954 = vpop.f32.mrf.mxu0
    %1955 = vmatprep.mubr.bf16.mxu0 0
    %1956 = vmatmul.mubr.bf16.gmra.mxu0 %v1887
    %v1957 = vpop.f32.mrf.mxu0
    %v1958 = vadd.f32 %v672, %v1957
    %v1959 = vpop.f32.mrf.mxu0
    %v1960 = vpop.f32.mrf.mxu0
    %v1961 = vadd.f32 %v672, %v1960
    %v1962 = vpop.f32.mrf.mxu0
    %1963 = vmatprep.mubr.bf16.mxu0 0
    %1964 = vmatmul.mubr.bf16.gmra.mxu0 %v1888
    %v1965 = vpop.f32.mrf.mxu0
    %v1966 = vadd.f32 %v672, %v1965
    %v1967 = vpop.f32.mrf.mxu0
    %v1968 = vpop.f32.mrf.mxu0
    %v1969 = vadd.f32 %v672, %v1968
    %v1970 = vpop.f32.mrf.mxu0
    %1971 = vmatprep.mubr.bf16.mxu0 0
    %1972 = vmatmul.mubr.bf16.gmra.mxu0 %v1889
    %v1973 = vpop.f32.mrf.mxu0
    %v1974 = vadd.f32 %v672, %v1973
    %v1975 = vpop.f32.mrf.mxu0
    %v1976 = vpop.f32.mrf.mxu0
    %v1977 = vadd.f32 %v672, %v1976
    %v1978 = vpop.f32.mrf.mxu0
    %1979 = vmatprep.mubr.bf16.mxu0 0
    %1980 = vmatmul.mubr.bf16.gmra.mxu0 %v1890
    %v1981 = vpop.f32.mrf.mxu0
    %v1982 = vadd.f32 %v672, %v1981
    %v1983 = vpop.f32.mrf.mxu0
    %v1984 = vpop.f32.mrf.mxu0
    %v1985 = vadd.f32 %v672, %v1984
    %v1986 = vpop.f32.mrf.mxu0
    %1987 = vdwg.mxu0
    %v1988 = vadd.f32 %v1926, %v1929
    %v1989 = vadd.f32 %v1988, %v1934
    %v1990 = vadd.f32 %v1989, %v1937
    %v1991 = vadd.f32 %v1990, %v1942
    %v1992 = vadd.f32 %v1991, %v1945
    %v1993 = vadd.f32 %v1992, %v1950
    %v1994 = vadd.f32 %v1993, %v1953
    %v1995 = vadd.f32 %v1994, %v1958
    %v1996 = vadd.f32 %v1995, %v1961
    %v1997 = vadd.f32 %v1996, %v1966
    %v1998 = vadd.f32 %v1997, %v1969
    %v1999 = vadd.f32 %v1998, %v1974
    %v2000 = vadd.f32 %v1999, %v1977
    %v2001 = vadd.f32 %v2000, %v1982
    %v2002 = vadd.f32 %v2001, %v1985
    %v2003 = vrot.slane %v2002, 4
    %v2004 = vadd.f32 %v2002, %v2003
    %v2005 = vrot.slane %v2004, 2
    %v2006 = vadd.f32 %v2004, %v2005
    %v2007 = vrot.slane %v2006, 1
    %v2008 = vadd.f32 %v2006, %v2007
    %v2009 = vmul.f32 %v2008, %v839
    %v2010 = vsub.f32 %v1926, %v2009
    %v2011 = vsub.f32 %v1929, %v2009
    %v2012 = vsub.f32 %v1934, %v2009
    %v2013 = vsub.f32 %v1937, %v2009
    %v2014 = vsub.f32 %v1942, %v2009
    %v2015 = vsub.f32 %v1945, %v2009
    %v2016 = vsub.f32 %v1950, %v2009
    %v2017 = vsub.f32 %v1953, %v2009
    %v2018 = vsub.f32 %v1958, %v2009
    %v2019 = vsub.f32 %v1961, %v2009
    %v2020 = vsub.f32 %v1966, %v2009
    %v2021 = vsub.f32 %v1969, %v2009
    %v2022 = vsub.f32 %v1974, %v2009
    %v2023 = vsub.f32 %v1977, %v2009
    %v2024 = vsub.f32 %v1982, %v2009
    %v2025 = vsub.f32 %v1985, %v2009
    %v2026 = vmul.f32 %v2010, %v2010
    %v2027 = vmul.f32 %v2011, %v2011
    %v2028 = vmul.f32 %v2012, %v2012
    %v2029 = vmul.f32 %v2013, %v2013
    %v2030 = vmul.f32 %v2014, %v2014
    %v2031 = vmul.f32 %v2015, %v2015
    %v2032 = vmul.f32 %v2016, %v2016
    %v2033 = vmul.f32 %v2017, %v2017
    %v2034 = vmul.f32 %v2018, %v2018
    %v2035 = vmul.f32 %v2019, %v2019
    %v2036 = vmul.f32 %v2020, %v2020
    %v2037 = vmul.f32 %v2021, %v2021
    %v2038 = vmul.f32 %v2022, %v2022
    %v2039 = vmul.f32 %v2023, %v2023
    %v2040 = vmul.f32 %v2024, %v2024
    %v2041 = vmul.f32 %v2025, %v2025
    %v2042 = vadd.f32 %v2026, %v2027
    %v2043 = vadd.f32 %v2042, %v2028
    %v2044 = vadd.f32 %v2043, %v2029
    %v2045 = vadd.f32 %v2044, %v2030
    %v2046 = vadd.f32 %v2045, %v2031
    %v2047 = vadd.f32 %v2046, %v2032
    %v2048 = vadd.f32 %v2047, %v2033
    %v2049 = vadd.f32 %v2048, %v2034
    %v2050 = vadd.f32 %v2049, %v2035
    %v2051 = vadd.f32 %v2050, %v2036
    %v2052 = vadd.f32 %v2051, %v2037
    %v2053 = vadd.f32 %v2052, %v2038
    %v2054 = vadd.f32 %v2053, %v2039
    %v2055 = vadd.f32 %v2054, %v2040
    %v2056 = vadd.f32 %v2055, %v2041
    %v2057 = vrot.slane %v2056, 4
    %v2058 = vadd.f32 %v2056, %v2057
    %v2059 = vrot.slane %v2058, 2
    %v2060 = vadd.f32 %v2058, %v2059
    %v2061 = vrot.slane %v2060, 1
    %v2062 = vadd.f32 %v2060, %v2061
    %v2063 = vmul.f32 %v2062, 0.007874016
    %v2064 = vrsqrt.pop %v2063
    %v2065 = vmul.f32 %v2063, %v2064
    %vm2066 = vcmp.eq.f32.partialorder %v2063, inf
    %v2067 = vsel %vm2066, %v2063, %v2065
    %vm2068 = vcmp.eq.f32.partialorder %v2063, 0.0
    %v2069 = vand.u32 %v2063, 2147483648
    %v2070 = vsel %vm2068, %v2069, %v2067
    %v2071 = vadd.f32 %v2070, 1e-10
    %v2072 = vrcp.pop %v2071
    %v2073 = vmul.f32 1.0, %v2072
    %v2074 = vmul.f32 %v2010, %v2073
    %v2075 = vmul.f32 %v2011, %v2073
    %v2076 = vmul.f32 %v2012, %v2073
    %v2077 = vmul.f32 %v2013, %v2073
    %v2078 = vmul.f32 %v2014, %v2073
    %v2079 = vmul.f32 %v2015, %v2073
    %v2080 = vmul.f32 %v2016, %v2073
    %v2081 = vmul.f32 %v2017, %v2073
    %v2082 = vmul.f32 %v2018, %v2073
    %v2083 = vmul.f32 %v2019, %v2073
    %v2084 = vmul.f32 %v2020, %v2073
    %v2085 = vmul.f32 %v2021, %v2073
    %v2086 = vmul.f32 %v2022, %v2073
    %v2087 = vmul.f32 %v2023, %v2073
    %v2088 = vmul.f32 %v2024, %v2073
    %v2089 = vmul.f32 %v2025, %v2073
    %v2090 = vpack.c.bf16 %v2075, %v2074
    %v2091 = vpack.c.bf16 %v2077, %v2076
    %v2092 = vpack.c.bf16 %v2079, %v2078
    %v2093 = vpack.c.bf16 %v2081, %v2080
    %v2094 = vpack.c.bf16 %v2083, %v2082
    %v2095 = vpack.c.bf16 %v2085, %v2084
    %v2096 = vpack.c.bf16 %v2087, %v2086
    %v2097 = vpack.c.bf16 %v2089, %v2088
    %2098 = vmatprep.subr.bf16.mxu0 0
    %2099 = vmatpush1.bf16.msra.mxu0 %v2097
    %2100 = vmatprep.subr.bf16.mxu0 0
    %2101 = vmatpush1.bf16.msra.mxu0 %v2096
    %2102 = vmatprep.subr.bf16.mxu0 0
    %2103 = vmatpush1.bf16.msra.mxu0 %v2095
    %2104 = vmatprep.subr.bf16.mxu0 0
    %2105 = vmatpush1.bf16.msra.mxu0 %v2094
    %2106 = vmatprep.subr.bf16.mxu0 0
    %2107 = vmatpush1.bf16.msra.mxu0 %v2093
    %2108 = vmatprep.subr.bf16.mxu0 0
    %2109 = vmatpush1.bf16.msra.mxu0 %v2092
    %2110 = vmatprep.subr.bf16.mxu0 0
    %2111 = vmatpush1.bf16.msra.mxu0 %v2091
    %2112 = vmatprep.subr.bf16.mxu0 0
    %2113 = vmatpush1.bf16.msra.mxu0 %v2090
    %2114 = vmatprep.subr.bf16.mxu0 0
    %2115 = vmatpush2.bf16.msra.mxu0 0
    %2116 = vmatprep.subr.bf16.mxu0 0
    %2117 = vmatpush2.bf16.msra.mxu0 0
    %2118 = vmatprep.subr.bf16.mxu0 0
    %2119 = vmatpush2.bf16.msra.mxu0 0
    %2120 = vmatprep.subr.bf16.mxu0 0
    %2121 = vmatpush2.bf16.msra.mxu0 0
    %2122 = vmatprep.subr.bf16.mxu0 0
    %2123 = vmatpush2.bf16.msra.mxu0 0
    %2124 = vmatprep.subr.bf16.mxu0 0
    %2125 = vmatpush2.bf16.msra.mxu0 0
    %2126 = vmatprep.subr.bf16.mxu0 0
    %2127 = vmatpush2.bf16.msra.mxu0 0
    %2128 = vmatprep.subr.bf16.mxu0 0
    %2129 = vmatpush2.bf16.msra.mxu0 0
    %2130 = vmatprep.mubr.bf16.mxu0 0
    %2131 = vmatmul.mubr.bf16.gmra.mxu0 %v961
    %v2132 = vpop.f32.mrf.mxu0
    %v2133 = vadd.f32 0.0, %v2132
    %v2134 = vpop.f32.mrf.mxu0
    %v2135 = vpop.f32.mrf.mxu0
    %v2136 = vadd.f32 0.0, %v2135
    %v2137 = vpop.f32.mrf.mxu0
    %2138 = vmatprep.mubr.bf16.mxu0 0
    %2139 = vmatmul.mubr.bf16.gmra.mxu0 %v962
    %v2140 = vpop.f32.mrf.mxu0
    %v2141 = vadd.f32 0.0, %v2140
    %v2142 = vpop.f32.mrf.mxu0
    %v2143 = vpop.f32.mrf.mxu0
    %v2144 = vadd.f32 0.0, %v2143
    %v2145 = vpop.f32.mrf.mxu0
    %2146 = vmatprep.mubr.bf16.mxu0 0
    %2147 = vmatmul.mubr.bf16.gmra.mxu0 %v963
    %v2148 = vpop.f32.mrf.mxu0
    %v2149 = vadd.f32 0.0, %v2148
    %v2150 = vpop.f32.mrf.mxu0
    %v2151 = vpop.f32.mrf.mxu0
    %v2152 = vadd.f32 0.0, %v2151
    %v2153 = vpop.f32.mrf.mxu0
    %2154 = vmatprep.mubr.bf16.mxu0 0
    %2155 = vmatmul.mubr.bf16.gmra.mxu0 %v964
    %v2156 = vpop.f32.mrf.mxu0
    %v2157 = vadd.f32 0.0, %v2156
    %v2158 = vpop.f32.mrf.mxu0
    %v2159 = vpop.f32.mrf.mxu0
    %v2160 = vadd.f32 0.0, %v2159
    %v2161 = vpop.f32.mrf.mxu0
    %2162 = vmatprep.mubr.bf16.mxu0 0
    %2163 = vmatmul.mubr.bf16.gmra.mxu0 %v965
    %v2164 = vpop.f32.mrf.mxu0
    %v2165 = vadd.f32 0.0, %v2164
    %v2166 = vpop.f32.mrf.mxu0
    %v2167 = vpop.f32.mrf.mxu0
    %v2168 = vadd.f32 0.0, %v2167
    %v2169 = vpop.f32.mrf.mxu0
    %2170 = vmatprep.mubr.bf16.mxu0 0
    %2171 = vmatmul.mubr.bf16.gmra.mxu0 %v966
    %v2172 = vpop.f32.mrf.mxu0
    %v2173 = vadd.f32 0.0, %v2172
    %v2174 = vpop.f32.mrf.mxu0
    %v2175 = vpop.f32.mrf.mxu0
    %v2176 = vadd.f32 0.0, %v2175
    %v2177 = vpop.f32.mrf.mxu0
    %2178 = vmatprep.mubr.bf16.mxu0 0
    %2179 = vmatmul.mubr.bf16.gmra.mxu0 %v967
    %v2180 = vpop.f32.mrf.mxu0
    %v2181 = vadd.f32 0.0, %v2180
    %v2182 = vpop.f32.mrf.mxu0
    %v2183 = vpop.f32.mrf.mxu0
    %v2184 = vadd.f32 0.0, %v2183
    %v2185 = vpop.f32.mrf.mxu0
    %2186 = vmatprep.mubr.bf16.mxu0 0
    %2187 = vmatmul.mubr.bf16.gmra.mxu0 %v968
    %v2188 = vpop.f32.mrf.mxu0
    %v2189 = vadd.f32 0.0, %v2188
    %v2190 = vpop.f32.mrf.mxu0
    %v2191 = vpop.f32.mrf.mxu0
    %v2192 = vadd.f32 0.0, %v2191
    %v2193 = vpop.f32.mrf.mxu0
    %2194 = vdwg.mxu0
    %v2195 = vpack.c.bf16 %v2136, %v2133
    %v2196 = vpack.c.bf16 %v2144, %v2141
    %v2197 = vpack.c.bf16 %v2152, %v2149
    %v2198 = vpack.c.bf16 %v2160, %v2157
    %v2199 = vpack.c.bf16 %v2168, %v2165
    %v2200 = vpack.c.bf16 %v2176, %v2173
    %v2201 = vpack.c.bf16 %v2184, %v2181
    %v2202 = vpack.c.bf16 %v2192, %v2189
    %2203 = vmatprep.subr.bf16.mxu0 0
    %2204 = vmatpush1.bf16.msra.mxu0 %v1125
    %2205 = vmatprep.subr.bf16.mxu0 0
    %2206 = vmatpush1.bf16.msra.mxu0 %v1124
    %2207 = vmatprep.subr.bf16.mxu0 0
    %2208 = vmatpush1.bf16.msra.mxu0 %v1123
    %2209 = vmatprep.subr.bf16.mxu0 0
    %2210 = vmatpush1.bf16.msra.mxu0 %v1122
    %2211 = vmatprep.subr.bf16.mxu0 0
    %2212 = vmatpush1.bf16.msra.mxu0 %v1121
    %2213 = vmatprep.subr.bf16.mxu0 0
    %2214 = vmatpush1.bf16.msra.mxu0 %v1120
    %2215 = vmatprep.subr.bf16.mxu0 0
    %2216 = vmatpush1.bf16.msra.mxu0 %v1119
    %2217 = vmatprep.subr.bf16.mxu0 0
    %2218 = vmatpush1.bf16.msra.mxu0 %v1118
    %2219 = vmatprep.subr.bf16.mxu0 0
    %2220 = vmatpush2.bf16.msra.mxu0 0
    %2221 = vmatprep.subr.bf16.mxu0 0
    %2222 = vmatpush2.bf16.msra.mxu0 0
    %2223 = vmatprep.subr.bf16.mxu0 0
    %2224 = vmatpush2.bf16.msra.mxu0 0
    %2225 = vmatprep.subr.bf16.mxu0 0
    %2226 = vmatpush2.bf16.msra.mxu0 0
    %2227 = vmatprep.subr.bf16.mxu0 0
    %2228 = vmatpush2.bf16.msra.mxu0 0
    %2229 = vmatprep.subr.bf16.mxu0 0
    %2230 = vmatpush2.bf16.msra.mxu0 0
    %2231 = vmatprep.subr.bf16.mxu0 0
    %2232 = vmatpush2.bf16.msra.mxu0 0
    %2233 = vmatprep.subr.bf16.mxu0 0
    %2234 = vmatpush2.bf16.msra.mxu0 0
    %2235 = vmatprep.mubr.bf16.mxu0 0
    %2236 = vmatmul.mubr.bf16.gmra.mxu0 %v2195
    %v2237 = vpop.f32.mrf.mxu0
    %v2238 = vadd.f32 %v1085, %v2237
    %v2239 = vpop.f32.mrf.mxu0
    %v2240 = vpop.f32.mrf.mxu0
    %v2241 = vadd.f32 %v1085, %v2240
    %v2242 = vpop.f32.mrf.mxu0
    %2243 = vmatprep.mubr.bf16.mxu0 0
    %2244 = vmatmul.mubr.bf16.gmra.mxu0 %v2196
    %v2245 = vpop.f32.mrf.mxu0
    %v2246 = vadd.f32 %v1085, %v2245
    %v2247 = vpop.f32.mrf.mxu0
    %v2248 = vpop.f32.mrf.mxu0
    %v2249 = vadd.f32 %v1085, %v2248
    %v2250 = vpop.f32.mrf.mxu0
    %2251 = vmatprep.mubr.bf16.mxu0 0
    %2252 = vmatmul.mubr.bf16.gmra.mxu0 %v2197
    %v2253 = vpop.f32.mrf.mxu0
    %v2254 = vadd.f32 %v1085, %v2253
    %v2255 = vpop.f32.mrf.mxu0
    %v2256 = vpop.f32.mrf.mxu0
    %v2257 = vadd.f32 %v1085, %v2256
    %v2258 = vpop.f32.mrf.mxu0
    %2259 = vmatprep.mubr.bf16.mxu0 0
    %2260 = vmatmul.mubr.bf16.gmra.mxu0 %v2198
    %v2261 = vpop.f32.mrf.mxu0
    %v2262 = vadd.f32 %v1085, %v2261
    %v2263 = vpop.f32.mrf.mxu0
    %v2264 = vpop.f32.mrf.mxu0
    %v2265 = vadd.f32 %v1085, %v2264
    %v2266 = vpop.f32.mrf.mxu0
    %2267 = vmatprep.mubr.bf16.mxu0 0
    %2268 = vmatmul.mubr.bf16.gmra.mxu0 %v2199
    %v2269 = vpop.f32.mrf.mxu0
    %v2270 = vadd.f32 %v1085, %v2269
    %v2271 = vpop.f32.mrf.mxu0
    %v2272 = vpop.f32.mrf.mxu0
    %v2273 = vadd.f32 %v1085, %v2272
    %v2274 = vpop.f32.mrf.mxu0
    %2275 = vmatprep.mubr.bf16.mxu0 0
    %2276 = vmatmul.mubr.bf16.gmra.mxu0 %v2200
    %v2277 = vpop.f32.mrf.mxu0
    %v2278 = vadd.f32 %v1085, %v2277
    %v2279 = vpop.f32.mrf.mxu0
    %v2280 = vpop.f32.mrf.mxu0
    %v2281 = vadd.f32 %v1085, %v2280
    %v2282 = vpop.f32.mrf.mxu0
    %2283 = vmatprep.mubr.bf16.mxu0 0
    %2284 = vmatmul.mubr.bf16.gmra.mxu0 %v2201
    %v2285 = vpop.f32.mrf.mxu0
    %v2286 = vadd.f32 %v1085, %v2285
    %v2287 = vpop.f32.mrf.mxu0
    %v2288 = vpop.f32.mrf.mxu0
    %v2289 = vadd.f32 %v1085, %v2288
    %v2290 = vpop.f32.mrf.mxu0
    %2291 = vmatprep.mubr.bf16.mxu0 0
    %2292 = vmatmul.mubr.bf16.gmra.mxu0 %v2202
    %v2293 = vpop.f32.mrf.mxu0
    %v2294 = vadd.f32 %v1085, %v2293
    %v2295 = vpop.f32.mrf.mxu0
    %v2296 = vpop.f32.mrf.mxu0
    %v2297 = vadd.f32 %v1085, %v2296
    %v2298 = vpop.f32.mrf.mxu0
    %2299 = vdwg.mxu0
    %v2300 = vmax.f32 %v2238, 0.0
    %v2301 = vmax.f32 %v2241, 0.0
    %v2302 = vmax.f32 %v2246, 0.0
    %v2303 = vmax.f32 %v2249, 0.0
    %v2304 = vmax.f32 %v2254, 0.0
    %v2305 = vmax.f32 %v2257, 0.0
    %v2306 = vmax.f32 %v2262, 0.0
    %v2307 = vmax.f32 %v2265, 0.0
    %v2308 = vmax.f32 %v2270, 0.0
    %v2309 = vmax.f32 %v2273, 0.0
    %v2310 = vmax.f32 %v2278, 0.0
    %v2311 = vmax.f32 %v2281, 0.0
    %v2312 = vmax.f32 %v2286, 0.0
    %v2313 = vmax.f32 %v2289, 0.0
    %v2314 = vmax.f32 %v2294, 0.0
    %v2315 = vmax.f32 %v2297, 0.0
    %v2316 = vpack.c.bf16 %v2301, %v2300
    %v2317 = vpack.c.bf16 %v2303, %v2302
    %v2318 = vpack.c.bf16 %v2305, %v2304
    %v2319 = vpack.c.bf16 %v2307, %v2306
    %v2320 = vpack.c.bf16 %v2309, %v2308
    %v2321 = vpack.c.bf16 %v2311, %v2310
    %v2322 = vpack.c.bf16 %v2313, %v2312
    %v2323 = vpack.c.bf16 %v2315, %v2314
    %2324 = vmatprep.subr.bf16.mxu0 0
    %2325 = vmatpush1.bf16.msra.mxu0 %v1298
    %2326 = vmatprep.subr.bf16.mxu0 0
    %2327 = vmatpush1.bf16.msra.mxu0 %v1297
    %2328 = vmatprep.subr.bf16.mxu0 0
    %2329 = vmatpush1.bf16.msra.mxu0 %v1296
    %2330 = vmatprep.subr.bf16.mxu0 0
    %2331 = vmatpush1.bf16.msra.mxu0 %v1295
    %2332 = vmatprep.subr.bf16.mxu0 0
    %2333 = vmatpush1.bf16.msra.mxu0 %v1294
    %2334 = vmatprep.subr.bf16.mxu0 0
    %2335 = vmatpush1.bf16.msra.mxu0 %v1293
    %2336 = vmatprep.subr.bf16.mxu0 0
    %2337 = vmatpush1.bf16.msra.mxu0 %v1292
    %2338 = vmatprep.subr.bf16.mxu0 0
    %2339 = vmatpush1.bf16.msra.mxu0 %v1291
    %2340 = vmatprep.subr.bf16.mxu0 0
    %2341 = vmatpush2.bf16.msra.mxu0 0
    %2342 = vmatprep.subr.bf16.mxu0 0
    %2343 = vmatpush2.bf16.msra.mxu0 0
    %2344 = vmatprep.subr.bf16.mxu0 0
    %2345 = vmatpush2.bf16.msra.mxu0 0
    %2346 = vmatprep.subr.bf16.mxu0 0
    %2347 = vmatpush2.bf16.msra.mxu0 0
    %2348 = vmatprep.subr.bf16.mxu0 0
    %2349 = vmatpush2.bf16.msra.mxu0 0
    %2350 = vmatprep.subr.bf16.mxu0 0
    %2351 = vmatpush2.bf16.msra.mxu0 0
    %2352 = vmatprep.subr.bf16.mxu0 0
    %2353 = vmatpush2.bf16.msra.mxu0 0
    %2354 = vmatprep.subr.bf16.mxu0 0
    %2355 = vmatpush2.bf16.msra.mxu0 0
    %2356 = vmatprep.mubr.bf16.mxu0 0
    %2357 = vmatmul.mubr.bf16.gmra.mxu0 %v2316
    %v2358 = vpop.f32.mrf.mxu0
    %v2359 = vadd.f32 %v1258, %v2358
    %v2360 = vpop.f32.mrf.mxu0
    %v2361 = vpop.f32.mrf.mxu0
    %v2362 = vadd.f32 %v1258, %v2361
    %v2363 = vpop.f32.mrf.mxu0
    %2364 = vmatprep.mubr.bf16.mxu0 0
    %2365 = vmatmul.mubr.bf16.gmra.mxu0 %v2317
    %v2366 = vpop.f32.mrf.mxu0
    %v2367 = vadd.f32 %v1258, %v2366
    %v2368 = vpop.f32.mrf.mxu0
    %v2369 = vpop.f32.mrf.mxu0
    %v2370 = vadd.f32 %v1258, %v2369
    %v2371 = vpop.f32.mrf.mxu0
    %2372 = vmatprep.mubr.bf16.mxu0 0
    %2373 = vmatmul.mubr.bf16.gmra.mxu0 %v2318
    %v2374 = vpop.f32.mrf.mxu0
    %v2375 = vadd.f32 %v1258, %v2374
    %v2376 = vpop.f32.mrf.mxu0
    %v2377 = vpop.f32.mrf.mxu0
    %v2378 = vadd.f32 %v1258, %v2377
    %v2379 = vpop.f32.mrf.mxu0
    %2380 = vmatprep.mubr.bf16.mxu0 0
    %2381 = vmatmul.mubr.bf16.gmra.mxu0 %v2319
    %v2382 = vpop.f32.mrf.mxu0
    %v2383 = vadd.f32 %v1258, %v2382
    %v2384 = vpop.f32.mrf.mxu0
    %v2385 = vpop.f32.mrf.mxu0
    %v2386 = vadd.f32 %v1258, %v2385
    %v2387 = vpop.f32.mrf.mxu0
    %2388 = vmatprep.mubr.bf16.mxu0 0
    %2389 = vmatmul.mubr.bf16.gmra.mxu0 %v2320
    %v2390 = vpop.f32.mrf.mxu0
    %v2391 = vadd.f32 %v1258, %v2390
    %v2392 = vpop.f32.mrf.mxu0
    %v2393 = vpop.f32.mrf.mxu0
    %v2394 = vadd.f32 %v1258, %v2393
    %v2395 = vpop.f32.mrf.mxu0
    %2396 = vmatprep.mubr.bf16.mxu0 0
    %2397 = vmatmul.mubr.bf16.gmra.mxu0 %v2321
    %v2398 = vpop.f32.mrf.mxu0
    %v2399 = vadd.f32 %v1258, %v2398
    %v2400 = vpop.f32.mrf.mxu0
    %v2401 = vpop.f32.mrf.mxu0
    %v2402 = vadd.f32 %v1258, %v2401
    %v2403 = vpop.f32.mrf.mxu0
    %2404 = vmatprep.mubr.bf16.mxu0 0
    %2405 = vmatmul.mubr.bf16.gmra.mxu0 %v2322
    %v2406 = vpop.f32.mrf.mxu0
    %v2407 = vadd.f32 %v1258, %v2406
    %v2408 = vpop.f32.mrf.mxu0
    %v2409 = vpop.f32.mrf.mxu0
    %v2410 = vadd.f32 %v1258, %v2409
    %v2411 = vpop.f32.mrf.mxu0
    %2412 = vmatprep.mubr.bf16.mxu0 0
    %2413 = vmatmul.mubr.bf16.gmra.mxu0 %v2323
    %v2414 = vpop.f32.mrf.mxu0
    %v2415 = vadd.f32 %v1258, %v2414
    %v2416 = vpop.f32.mrf.mxu0
    %v2417 = vpop.f32.mrf.mxu0
    %v2418 = vadd.f32 %v1258, %v2417
    %v2419 = vpop.f32.mrf.mxu0
    %2420 = vdwg.mxu0
    %v2421 = vmul.f32 %v1641, 0.1
    %v2422 = vmul.f32 %v1642, 0.1
    %v2423 = vmul.f32 %v1643, 0.1
    %v2424 = vmul.f32 %v1644, 0.1
    %v2425 = vmul.f32 %v1645, 0.1
    %v2426 = vmul.f32 %v1646, 0.1
    %v2427 = vmul.f32 %v1647, 0.1
    %v2428 = vmul.f32 %v1648, 0.1
    %v2429 = vmul.f32 %v1649, 0.1
    %v2430 = vmul.f32 %v1650, 0.1
    %v2431 = vmul.f32 %v1651, 0.1
    %v2432 = vmul.f32 %v1652, 0.1
    %v2433 = vmul.f32 %v1653, 0.1
    %v2434 = vmul.f32 %v1654, 0.1
    %v2435 = vmul.f32 %v1655, 0.1
    %v2436 = vmul.f32 %v1656, 0.1
    %v2437 = vadd.f32 %v2359, %v2421
    %v2438 = vadd.f32 %v2362, %v2422
    %v2439 = vadd.f32 %v2367, %v2423
    %v2440 = vadd.f32 %v2370, %v2424
    %v2441 = vadd.f32 %v2375, %v2425
    %v2442 = vadd.f32 %v2378, %v2426
    %v2443 = vadd.f32 %v2383, %v2427
    %v2444 = vadd.f32 %v2386, %v2428
    %v2445 = vadd.f32 %v2391, %v2429
    %v2446 = vadd.f32 %v2394, %v2430
    %v2447 = vadd.f32 %v2399, %v2431
    %v2448 = vadd.f32 %v2402, %v2432
    %v2449 = vadd.f32 %v2407, %v2433
    %v2450 = vadd.f32 %v2410, %v2434
    %v2451 = vadd.f32 %v2415, %v2435
    %v2452 = vadd.f32 %v2418, %v2436
    %2453 = vadd.xlane.f32.xlu0 %v2437
    %v2454 = vpop.xlane.xlu0 %2453
    %2455 = vadd.xlane.f32.xlu0 %v2438
    %v2456 = vpop.xlane.xlu0 %2455
    %2457 = vadd.xlane.f32.xlu0 %v2439
    %v2458 = vpop.xlane.xlu0 %2457
    %2459 = vadd.xlane.f32.xlu0 %v2440
    %v2460 = vpop.xlane.xlu0 %2459
    %2461 = vadd.xlane.f32.xlu0 %v2441
    %v2462 = vpop.xlane.xlu0 %2461
    %2463 = vadd.xlane.f32.xlu0 %v2442
    %v2464 = vpop.xlane.xlu0 %2463
    %2465 = vadd.xlane.f32.xlu0 %v2443
    %v2466 = vpop.xlane.xlu0 %2465
    %2467 = vadd.xlane.f32.xlu0 %v2444
    %v2468 = vpop.xlane.xlu0 %2467
    %2469 = vadd.xlane.f32.xlu0 %v2445
    %v2470 = vpop.xlane.xlu0 %2469
    %2471 = vadd.xlane.f32.xlu0 %v2446
    %v2472 = vpop.xlane.xlu0 %2471
    %2473 = vadd.xlane.f32.xlu0 %v2447
    %v2474 = vpop.xlane.xlu0 %2473
    %2475 = vadd.xlane.f32.xlu0 %v2448
    %v2476 = vpop.xlane.xlu0 %2475
    %2477 = vadd.xlane.f32.xlu0 %v2449
    %v2478 = vpop.xlane.xlu0 %2477
    %2479 = vadd.xlane.f32.xlu0 %v2450
    %v2480 = vpop.xlane.xlu0 %2479
    %2481 = vadd.xlane.f32.xlu0 %v2451
    %v2482 = vpop.xlane.xlu0 %2481
    %2483 = vadd.xlane.f32.xlu0 %v2452
    %v2484 = vpop.xlane.xlu0 %2483
    %v2485 = vmul.f32 %v2454, 0.0625
    %v2486 = vmul.f32 %v2456, 0.0625
    %v2487 = vmul.f32 %v2458, 0.0625
    %v2488 = vmul.f32 %v2460, 0.0625
    %v2489 = vmul.f32 %v2462, 0.0625
    %v2490 = vmul.f32 %v2464, 0.0625
    %v2491 = vmul.f32 %v2466, 0.0625
    %v2492 = vmul.f32 %v2468, 0.0625
    %v2493 = vmul.f32 %v2470, 0.0625
    %v2494 = vmul.f32 %v2472, 0.0625
    %v2495 = vmul.f32 %v2474, 0.0625
    %v2496 = vmul.f32 %v2476, 0.0625
    %v2497 = vmul.f32 %v2478, 0.0625
    %v2498 = vmul.f32 %v2480, 0.0625
    %v2499 = vmul.f32 %v2482, 0.0625
    %v2500 = vmul.f32 %v2484, 0.0625
    %v2501 = vsub.f32 %v2437, %v2485
    %v2502 = vsub.f32 %v2438, %v2486
    %v2503 = vsub.f32 %v2439, %v2487
    %v2504 = vsub.f32 %v2440, %v2488
    %v2505 = vsub.f32 %v2441, %v2489
    %v2506 = vsub.f32 %v2442, %v2490
    %v2507 = vsub.f32 %v2443, %v2491
    %v2508 = vsub.f32 %v2444, %v2492
    %v2509 = vsub.f32 %v2445, %v2493
    %v2510 = vsub.f32 %v2446, %v2494
    %v2511 = vsub.f32 %v2447, %v2495
    %v2512 = vsub.f32 %v2448, %v2496
    %v2513 = vsub.f32 %v2449, %v2497
    %v2514 = vsub.f32 %v2450, %v2498
    %v2515 = vsub.f32 %v2451, %v2499
    %v2516 = vsub.f32 %v2452, %v2500
    %v2517 = vmul.f32 %v2501, %v1488
    %v2518 = vmul.f32 %v2502, %v1488
    %v2519 = vmul.f32 %v2503, %v1488
    %v2520 = vmul.f32 %v2504, %v1488
    %v2521 = vmul.f32 %v2505, %v1488
    %v2522 = vmul.f32 %v2506, %v1488
    %v2523 = vmul.f32 %v2507, %v1488
    %v2524 = vmul.f32 %v2508, %v1488
    %v2525 = vmul.f32 %v2509, %v1488
    %v2526 = vmul.f32 %v2510, %v1488
    %v2527 = vmul.f32 %v2511, %v1488
    %v2528 = vmul.f32 %v2512, %v1488
    %v2529 = vmul.f32 %v2513, %v1488
    %v2530 = vmul.f32 %v2514, %v1488
    %v2531 = vmul.f32 %v2515, %v1488
    %v2532 = vmul.f32 %v2516, %v1488
    %v2533 = vmul.f32 %v2517, %v2517
    %v2534 = vmul.f32 %v2518, %v2518
    %v2535 = vmul.f32 %v2519, %v2519
    %v2536 = vmul.f32 %v2520, %v2520
    %v2537 = vmul.f32 %v2521, %v2521
    %v2538 = vmul.f32 %v2522, %v2522
    %v2539 = vmul.f32 %v2523, %v2523
    %v2540 = vmul.f32 %v2524, %v2524
    %v2541 = vmul.f32 %v2525, %v2525
    %v2542 = vmul.f32 %v2526, %v2526
    %v2543 = vmul.f32 %v2527, %v2527
    %v2544 = vmul.f32 %v2528, %v2528
    %v2545 = vmul.f32 %v2529, %v2529
    %v2546 = vmul.f32 %v2530, %v2530
    %v2547 = vmul.f32 %v2531, %v2531
    %v2548 = vmul.f32 %v2532, %v2532
    %2549 = vadd.xlane.f32.xlu0 %v2533
    %v2550 = vpop.xlane.xlu0 %2549
    %2551 = vadd.xlane.f32.xlu0 %v2534
    %v2552 = vpop.xlane.xlu0 %2551
    %2553 = vadd.xlane.f32.xlu0 %v2535
    %v2554 = vpop.xlane.xlu0 %2553
    %2555 = vadd.xlane.f32.xlu0 %v2536
    %v2556 = vpop.xlane.xlu0 %2555
    %2557 = vadd.xlane.f32.xlu0 %v2537
    %v2558 = vpop.xlane.xlu0 %2557
    %2559 = vadd.xlane.f32.xlu0 %v2538
    %v2560 = vpop.xlane.xlu0 %2559
    %2561 = vadd.xlane.f32.xlu0 %v2539
    %v2562 = vpop.xlane.xlu0 %2561
    %2563 = vadd.xlane.f32.xlu0 %v2540
    %v2564 = vpop.xlane.xlu0 %2563
    %2565 = vadd.xlane.f32.xlu0 %v2541
    %v2566 = vpop.xlane.xlu0 %2565
    %2567 = vadd.xlane.f32.xlu0 %v2542
    %v2568 = vpop.xlane.xlu0 %2567
    %2569 = vadd.xlane.f32.xlu0 %v2543
    %v2570 = vpop.xlane.xlu0 %2569
    %2571 = vadd.xlane.f32.xlu0 %v2544
    %v2572 = vpop.xlane.xlu0 %2571
    %2573 = vadd.xlane.f32.xlu0 %v2545
    %v2574 = vpop.xlane.xlu0 %2573
    %2575 = vadd.xlane.f32.xlu0 %v2546
    %v2576 = vpop.xlane.xlu0 %2575
    %2577 = vadd.xlane.f32.xlu0 %v2547
    %v2578 = vpop.xlane.xlu0 %2577
    %2579 = vadd.xlane.f32.xlu0 %v2548
    %v2580 = vpop.xlane.xlu0 %2579
    %v2581 = vmul.f32 %v2550, 0.0625
    %v2582 = vmul.f32 %v2552, 0.0625
    %v2583 = vmul.f32 %v2554, 0.0625
    %v2584 = vmul.f32 %v2556, 0.0625
    %v2585 = vmul.f32 %v2558, 0.0625
    %v2586 = vmul.f32 %v2560, 0.0625
    %v2587 = vmul.f32 %v2562, 0.0625
    %v2588 = vmul.f32 %v2564, 0.0625
    %v2589 = vmul.f32 %v2566, 0.0625
    %v2590 = vmul.f32 %v2568, 0.0625
    %v2591 = vmul.f32 %v2570, 0.0625
    %v2592 = vmul.f32 %v2572, 0.0625
    %v2593 = vmul.f32 %v2574, 0.0625
    %v2594 = vmul.f32 %v2576, 0.0625
    %v2595 = vmul.f32 %v2578, 0.0625
    %v2596 = vmul.f32 %v2580, 0.0625
    %v2597 = vadd.f32 %v2581, 1e-05
    %v2598 = vadd.f32 %v2582, 1e-05
    %v2599 = vadd.f32 %v2583, 1e-05
    %v2600 = vadd.f32 %v2584, 1e-05
    %v2601 = vadd.f32 %v2585, 1e-05
    %v2602 = vadd.f32 %v2586, 1e-05
    %v2603 = vadd.f32 %v2587, 1e-05
    %v2604 = vadd.f32 %v2588, 1e-05
    %v2605 = vadd.f32 %v2589, 1e-05
    %v2606 = vadd.f32 %v2590, 1e-05
    %v2607 = vadd.f32 %v2591, 1e-05
    %v2608 = vadd.f32 %v2592, 1e-05
    %v2609 = vadd.f32 %v2593, 1e-05
    %v2610 = vadd.f32 %v2594, 1e-05
    %v2611 = vadd.f32 %v2595, 1e-05
    %v2612 = vadd.f32 %v2596, 1e-05
    %v2613 = vrsqrt.pop %v2597
    %v2614 = vrsqrt.pop %v2598
    %v2615 = vrsqrt.pop %v2599
    %v2616 = vrsqrt.pop %v2600
    %v2617 = vrsqrt.pop %v2601
    %v2618 = vrsqrt.pop %v2602
    %v2619 = vrsqrt.pop %v2603
    %v2620 = vrsqrt.pop %v2604
    %v2621 = vrsqrt.pop %v2605
    %v2622 = vrsqrt.pop %v2606
    %v2623 = vrsqrt.pop %v2607
    %v2624 = vrsqrt.pop %v2608
    %v2625 = vrsqrt.pop %v2609
    %v2626 = vrsqrt.pop %v2610
    %v2627 = vrsqrt.pop %v2611
    %v2628 = vrsqrt.pop %v2612
    %v2629 = vmul.f32 %v2517, %v2613
    %v2630 = vmul.f32 %v2518, %v2614
    %v2631 = vmul.f32 %v2519, %v2615
    %v2632 = vmul.f32 %v2520, %v2616
    %v2633 = vmul.f32 %v2521, %v2617
    %v2634 = vmul.f32 %v2522, %v2618
    %v2635 = vmul.f32 %v2523, %v2619
    %v2636 = vmul.f32 %v2524, %v2620
    %v2637 = vmul.f32 %v2525, %v2621
    %v2638 = vmul.f32 %v2526, %v2622
    %v2639 = vmul.f32 %v2527, %v2623
    %v2640 = vmul.f32 %v2528, %v2624
    %v2641 = vmul.f32 %v2529, %v2625
    %v2642 = vmul.f32 %v2530, %v2626
    %v2643 = vmul.f32 %v2531, %v2627
    %v2644 = vmul.f32 %v2532, %v2628
    %v2645 = vmul.f32 %v2629, %v1620
    %v2646 = vmul.f32 %v2630, %v1620
    %v2647 = vmul.f32 %v2631, %v1620
    %v2648 = vmul.f32 %v2632, %v1620
    %v2649 = vmul.f32 %v2633, %v1620
    %v2650 = vmul.f32 %v2634, %v1620
    %v2651 = vmul.f32 %v2635, %v1620
    %v2652 = vmul.f32 %v2636, %v1620
    %v2653 = vmul.f32 %v2637, %v1620
    %v2654 = vmul.f32 %v2638, %v1620
    %v2655 = vmul.f32 %v2639, %v1620
    %v2656 = vmul.f32 %v2640, %v1620
    %v2657 = vmul.f32 %v2641, %v1620
    %v2658 = vmul.f32 %v2642, %v1620
    %v2659 = vmul.f32 %v2643, %v1620
    %v2660 = vmul.f32 %v2644, %v1620
    %v2661 = vadd.f32 %v2645, %v1640
    %v2662 = vadd.f32 %v2646, %v1640
    %v2663 = vadd.f32 %v2647, %v1640
    %v2664 = vadd.f32 %v2648, %v1640
    %v2665 = vadd.f32 %v2649, %v1640
    %v2666 = vadd.f32 %v2650, %v1640
    %v2667 = vadd.f32 %v2651, %v1640
    %v2668 = vadd.f32 %v2652, %v1640
    %v2669 = vadd.f32 %v2653, %v1640
    %v2670 = vadd.f32 %v2654, %v1640
    %v2671 = vadd.f32 %v2655, %v1640
    %v2672 = vadd.f32 %v2656, %v1640
    %v2673 = vadd.f32 %v2657, %v1640
    %v2674 = vadd.f32 %v2658, %v1640
    %v2675 = vadd.f32 %v2659, %v1640
    %v2676 = vadd.f32 %v2660, %v1640
    %v2677 = vpack.c.bf16 %v2662, %v2661
    %v2678 = vpack.c.bf16 %v2664, %v2663
    %v2679 = vpack.c.bf16 %v2666, %v2665
    %v2680 = vpack.c.bf16 %v2668, %v2667
    %v2681 = vpack.c.bf16 %v2670, %v2669
    %v2682 = vpack.c.bf16 %v2672, %v2671
    %v2683 = vpack.c.bf16 %v2674, %v2673
    %v2684 = vpack.c.bf16 %v2676, %v2675
    %v2685 = vlaneseq
    %v2686 = vshrl.u32 %v2685, 7
    %v2687 = vsub.s32 5, %v2686
    %v2688 = vrot.slane %v122, %v2687
    %v2721 = vunpack.c.l.b16 %v157
    %v2722 = vunpack.c.l.b16 %v158
    %v2723 = vunpack.c.l.b16 %v159
    %v2724 = vunpack.c.l.b16 %v160
    %v2725 = vunpack.c.l.b16 %v161
    %v2726 = vunpack.c.l.b16 %v162
    %v2727 = vunpack.c.l.b16 %v163
    %v2728 = vunpack.c.l.b16 %v164
    %v2729 = vunpack.c.l.b16 %v165
    %v2730 = vunpack.c.l.b16 %v166
    %v2731 = vunpack.c.l.b16 %v167
    %v2732 = vunpack.c.l.b16 %v168
    %v2733 = vunpack.c.l.b16 %v169
    %v2734 = vunpack.c.l.b16 %v170
    %v2735 = vunpack.c.l.b16 %v171
    %v2736 = vunpack.c.l.b16 %v172
    %v2737 = vunpack.c.l.b16 %v173
    %v2738 = vunpack.c.l.b16 %v174
    %v2739 = vunpack.c.l.b16 %v175
    %v2740 = vunpack.c.l.b16 %v176
    %v2741 = vunpack.c.l.b16 %v177
    %v2742 = vunpack.c.l.b16 %v178
    %v2743 = vunpack.c.l.b16 %v179
    %v2744 = vunpack.c.l.b16 %v180
    %v2745 = vunpack.c.l.b16 %v181
    %v2746 = vunpack.c.l.b16 %v182
    %v2747 = vunpack.c.l.b16 %v183
    %v2748 = vunpack.c.l.b16 %v184
    %v2749 = vunpack.c.l.b16 %v185
    %v2750 = vunpack.c.l.b16 %v186
    %v2751 = vunpack.c.l.b16 %v187
    %v2752 = vunpack.c.l.b16 %v188
    %v2753 = vpack.c.b16 %v2722, %v2721
    %v2754 = vpack.c.b16 %v2724, %v2723
    %v2755 = vpack.c.b16 %v2726, %v2725
    %v2756 = vpack.c.b16 %v2728, %v2727
    %v2757 = vpack.c.b16 %v2730, %v2729
    %v2758 = vpack.c.b16 %v2732, %v2731
    %v2759 = vpack.c.b16 %v2734, %v2733
    %v2760 = vpack.c.b16 %v2736, %v2735
    %v2761 = vpack.c.b16 %v2738, %v2737
    %v2762 = vpack.c.b16 %v2740, %v2739
    %v2763 = vpack.c.b16 %v2742, %v2741
    %v2764 = vpack.c.b16 %v2744, %v2743
    %v2765 = vpack.c.b16 %v2746, %v2745
    %v2766 = vpack.c.b16 %v2748, %v2747
    %v2767 = vpack.c.b16 %v2750, %v2749
    %v2768 = vpack.c.b16 %v2752, %v2751
    %2785 = vmatprep.subr.bf16.mxu0 0
    %2786 = vmatpush1.bf16.msra.mxu0 %v2760
    %2787 = vmatprep.subr.bf16.mxu0 0
    %2788 = vmatpush1.bf16.msra.mxu0 %v2759
    %2789 = vmatprep.subr.bf16.mxu0 0
    %2790 = vmatpush1.bf16.msra.mxu0 %v2758
    %2791 = vmatprep.subr.bf16.mxu0 0
    %2792 = vmatpush1.bf16.msra.mxu0 %v2757
    %2793 = vmatprep.subr.bf16.mxu0 0
    %2794 = vmatpush1.bf16.msra.mxu0 %v2756
    %2795 = vmatprep.subr.bf16.mxu0 0
    %2796 = vmatpush1.bf16.msra.mxu0 %v2755
    %2797 = vmatprep.subr.bf16.mxu0 0
    %2798 = vmatpush1.bf16.msra.mxu0 %v2754
    %2799 = vmatprep.subr.bf16.mxu0 0
    %2800 = vmatpush1.bf16.msra.mxu0 %v2753
    %2801 = vmatprep.subr.bf16.mxu0 0
    %2802 = vmatpush2.bf16.msra.mxu0 %v2768
    %2803 = vmatprep.subr.bf16.mxu0 0
    %2804 = vmatpush2.bf16.msra.mxu0 %v2767
    %2805 = vmatprep.subr.bf16.mxu0 0
    %2806 = vmatpush2.bf16.msra.mxu0 %v2766
    %2807 = vmatprep.subr.bf16.mxu0 0
    %2808 = vmatpush2.bf16.msra.mxu0 %v2765
    %2809 = vmatprep.subr.bf16.mxu0 0
    %2810 = vmatpush2.bf16.msra.mxu0 %v2764
    %2811 = vmatprep.subr.bf16.mxu0 0
    %2812 = vmatpush2.bf16.msra.mxu0 %v2763
    %2813 = vmatprep.subr.bf16.mxu0 0
    %2814 = vmatpush2.bf16.msra.mxu0 %v2762
    %2815 = vmatprep.subr.bf16.mxu0 0
    %2816 = vmatpush2.bf16.msra.mxu0 %v2761
    %2817 = vmatprep.mubr.bf16.mxu0 %v2681
    %2818 = vmatmul.mubr.bf16.gmra.mxu0 %v2677
    %v2819 = vpop.f32.mrf.mxu0
    %v2820 = vadd.f32 %v2688, %v2819
    %v2821 = vpop.f32.mrf.mxu0
    %v2822 = vpop.f32.mrf.mxu0
    %v2823 = vadd.f32 %v2688, %v2822
    %v2824 = vpop.f32.mrf.mxu0
    %2825 = vmatprep.mubr.bf16.mxu0 %v2682
    %2826 = vmatmul.mubr.bf16.gmra.mxu0 %v2678
    %v2827 = vpop.f32.mrf.mxu0
    %v2828 = vadd.f32 %v2688, %v2827
    %v2829 = vpop.f32.mrf.mxu0
    %v2830 = vpop.f32.mrf.mxu0
    %v2831 = vadd.f32 %v2688, %v2830
    %v2832 = vpop.f32.mrf.mxu0
    %2833 = vmatprep.mubr.bf16.mxu0 %v2683
    %2834 = vmatmul.mubr.bf16.gmra.mxu0 %v2679
    %v2835 = vpop.f32.mrf.mxu0
    %v2836 = vadd.f32 %v2688, %v2835
    %v2837 = vpop.f32.mrf.mxu0
    %v2838 = vpop.f32.mrf.mxu0
    %v2839 = vadd.f32 %v2688, %v2838
    %v2840 = vpop.f32.mrf.mxu0
    %2841 = vmatprep.mubr.bf16.mxu0 %v2684
    %2842 = vmatmul.mubr.bf16.gmra.mxu0 %v2680
    %v2843 = vpop.f32.mrf.mxu0
    %v2844 = vadd.f32 %v2688, %v2843
    %v2845 = vpop.f32.mrf.mxu0
    %v2846 = vpop.f32.mrf.mxu0
    %v2847 = vadd.f32 %v2688, %v2846
    %v2848 = vpop.f32.mrf.mxu0
    %2849 = vdwg.mxu0
    %v2850 = vmax.f32 %v2820, 0.0
    %v2851 = vmax.f32 %v2823, 0.0
    %v2852 = vmax.f32 %v2828, 0.0
    %v2853 = vmax.f32 %v2831, 0.0
    %v2854 = vmax.f32 %v2836, 0.0
    %v2855 = vmax.f32 %v2839, 0.0
    %v2856 = vmax.f32 %v2844, 0.0
    %v2857 = vmax.f32 %v2847, 0.0
    %v2858 = vpack.c.bf16 %v2851, %v2850
    %v2859 = vpack.c.bf16 %v2853, %v2852
    %v2860 = vpack.c.bf16 %v2855, %v2854
    %v2861 = vpack.c.bf16 %v2857, %v2856
    %v2862 = vlaneseq
    %v2863 = vshrl.u32 %v2862, 7
    %v2864 = vsub.s32 6, %v2863
    %v2865 = vrot.slane %v122, %v2864
    %v2882 = vunpack.c.l.b16 %v240
    %v2883 = vunpack.c.l.b16 %v241
    %v2884 = vunpack.c.l.b16 %v242
    %v2885 = vunpack.c.l.b16 %v243
    %v2886 = vunpack.c.l.b16 %v244
    %v2887 = vunpack.c.l.b16 %v245
    %v2888 = vunpack.c.l.b16 %v246
    %v2889 = vunpack.c.l.b16 %v247
    %v2890 = vunpack.c.l.b16 %v248
    %v2891 = vunpack.c.l.b16 %v249
    %v2892 = vunpack.c.l.b16 %v250
    %v2893 = vunpack.c.l.b16 %v251
    %v2894 = vunpack.c.l.b16 %v252
    %v2895 = vunpack.c.l.b16 %v253
    %v2896 = vunpack.c.l.b16 %v254
    %v2897 = vunpack.c.l.b16 %v255
    %v2898 = vpack.c.b16 %v2883, %v2882
    %v2899 = vpack.c.b16 %v2885, %v2884
    %v2900 = vpack.c.b16 %v2887, %v2886
    %v2901 = vpack.c.b16 %v2889, %v2888
    %v2902 = vpack.c.b16 %v2891, %v2890
    %v2903 = vpack.c.b16 %v2893, %v2892
    %v2904 = vpack.c.b16 %v2895, %v2894
    %v2905 = vpack.c.b16 %v2897, %v2896
    %2914 = vmatprep.subr.bf16.mxu0 0
    %2915 = vmatpush1.bf16.msra.mxu0 %v2905
    %2916 = vmatprep.subr.bf16.mxu0 0
    %2917 = vmatpush1.bf16.msra.mxu0 %v2904
    %2918 = vmatprep.subr.bf16.mxu0 0
    %2919 = vmatpush1.bf16.msra.mxu0 %v2903
    %2920 = vmatprep.subr.bf16.mxu0 0
    %2921 = vmatpush1.bf16.msra.mxu0 %v2902
    %2922 = vmatprep.subr.bf16.mxu0 0
    %2923 = vmatpush1.bf16.msra.mxu0 %v2901
    %2924 = vmatprep.subr.bf16.mxu0 0
    %2925 = vmatpush1.bf16.msra.mxu0 %v2900
    %2926 = vmatprep.subr.bf16.mxu0 0
    %2927 = vmatpush1.bf16.msra.mxu0 %v2899
    %2928 = vmatprep.subr.bf16.mxu0 0
    %2929 = vmatpush1.bf16.msra.mxu0 %v2898
    %2930 = vmatprep.subr.bf16.mxu0 0
    %2931 = vmatpush2.bf16.msra.mxu0 0
    %2932 = vmatprep.subr.bf16.mxu0 0
    %2933 = vmatpush2.bf16.msra.mxu0 0
    %2934 = vmatprep.subr.bf16.mxu0 0
    %2935 = vmatpush2.bf16.msra.mxu0 0
    %2936 = vmatprep.subr.bf16.mxu0 0
    %2937 = vmatpush2.bf16.msra.mxu0 0
    %2938 = vmatprep.subr.bf16.mxu0 0
    %2939 = vmatpush2.bf16.msra.mxu0 0
    %2940 = vmatprep.subr.bf16.mxu0 0
    %2941 = vmatpush2.bf16.msra.mxu0 0
    %2942 = vmatprep.subr.bf16.mxu0 0
    %2943 = vmatpush2.bf16.msra.mxu0 0
    %2944 = vmatprep.subr.bf16.mxu0 0
    %2945 = vmatpush2.bf16.msra.mxu0 0
    %2946 = vmatprep.mubr.bf16.mxu0 0
    %2947 = vmatmul.mubr.bf16.gmra.mxu0 %v2858
    %v2948 = vpop.f32.mrf.mxu0
    %v2949 = vadd.f32 %v2865, %v2948
    %v2950 = vpop.f32.mrf.mxu0
    %v2951 = vpop.f32.mrf.mxu0
    %v2952 = vadd.f32 %v2865, %v2951
    %v2953 = vpop.f32.mrf.mxu0
    %2954 = vmatprep.mubr.bf16.mxu0 0
    %2955 = vmatmul.mubr.bf16.gmra.mxu0 %v2859
    %v2956 = vpop.f32.mrf.mxu0
    %v2957 = vadd.f32 %v2865, %v2956
    %v2958 = vpop.f32.mrf.mxu0
    %v2959 = vpop.f32.mrf.mxu0
    %v2960 = vadd.f32 %v2865, %v2959
    %v2961 = vpop.f32.mrf.mxu0
    %2962 = vmatprep.mubr.bf16.mxu0 0
    %2963 = vmatmul.mubr.bf16.gmra.mxu0 %v2860
    %v2964 = vpop.f32.mrf.mxu0
    %v2965 = vadd.f32 %v2865, %v2964
    %v2966 = vpop.f32.mrf.mxu0
    %v2967 = vpop.f32.mrf.mxu0
    %v2968 = vadd.f32 %v2865, %v2967
    %v2969 = vpop.f32.mrf.mxu0
    %2970 = vmatprep.mubr.bf16.mxu0 0
    %2971 = vmatmul.mubr.bf16.gmra.mxu0 %v2861
    %v2972 = vpop.f32.mrf.mxu0
    %v2973 = vadd.f32 %v2865, %v2972
    %v2974 = vpop.f32.mrf.mxu0
    %v2975 = vpop.f32.mrf.mxu0
    %v2976 = vadd.f32 %v2865, %v2975
    %v2977 = vpop.f32.mrf.mxu0
    %2978 = vdwg.mxu0
    %v2979 = vlaneseq
    %v2980 = vshrl.u32 %v2979, 7
    %v2981 = vsub.s32 7, %v2980
    %v2982 = vrot.slane %v122, %v2981
    %v2999 = vunpack.c.l.b16 %v257
    %v3000 = vunpack.c.l.b16 %v258
    %v3001 = vunpack.c.l.b16 %v259
    %v3002 = vunpack.c.l.b16 %v260
    %v3003 = vunpack.c.l.b16 %v261
    %v3004 = vunpack.c.l.b16 %v262
    %v3005 = vunpack.c.l.b16 %v263
    %v3006 = vunpack.c.l.b16 %v264
    %v3007 = vunpack.c.l.b16 %v265
    %v3008 = vunpack.c.l.b16 %v266
    %v3009 = vunpack.c.l.b16 %v267
    %v3010 = vunpack.c.l.b16 %v268
    %v3011 = vunpack.c.l.b16 %v269
    %v3012 = vunpack.c.l.b16 %v270
    %v3013 = vunpack.c.l.b16 %v271
    %v3014 = vunpack.c.l.b16 %v272
    %v3015 = vpack.c.b16 %v3000, %v2999
    %v3016 = vpack.c.b16 %v3002, %v3001
    %v3017 = vpack.c.b16 %v3004, %v3003
    %v3018 = vpack.c.b16 %v3006, %v3005
    %v3019 = vpack.c.b16 %v3008, %v3007
    %v3020 = vpack.c.b16 %v3010, %v3009
    %v3021 = vpack.c.b16 %v3012, %v3011
    %v3022 = vpack.c.b16 %v3014, %v3013
    %3031 = vmatprep.subr.bf16.mxu0 0
    %3032 = vmatpush1.bf16.msra.mxu0 %v3022
    %3033 = vmatprep.subr.bf16.mxu0 0
    %3034 = vmatpush1.bf16.msra.mxu0 %v3021
    %3035 = vmatprep.subr.bf16.mxu0 0
    %3036 = vmatpush1.bf16.msra.mxu0 %v3020
    %3037 = vmatprep.subr.bf16.mxu0 0
    %3038 = vmatpush1.bf16.msra.mxu0 %v3019
    %3039 = vmatprep.subr.bf16.mxu0 0
    %3040 = vmatpush1.bf16.msra.mxu0 %v3018
    %3041 = vmatprep.subr.bf16.mxu0 0
    %3042 = vmatpush1.bf16.msra.mxu0 %v3017
    %3043 = vmatprep.subr.bf16.mxu0 0
    %3044 = vmatpush1.bf16.msra.mxu0 %v3016
    %3045 = vmatprep.subr.bf16.mxu0 0
    %3046 = vmatpush1.bf16.msra.mxu0 %v3015
    %3047 = vmatprep.subr.bf16.mxu0 0
    %3048 = vmatpush2.bf16.msra.mxu0 0
    %3049 = vmatprep.subr.bf16.mxu0 0
    %3050 = vmatpush2.bf16.msra.mxu0 0
    %3051 = vmatprep.subr.bf16.mxu0 0
    %3052 = vmatpush2.bf16.msra.mxu0 0
    %3053 = vmatprep.subr.bf16.mxu0 0
    %3054 = vmatpush2.bf16.msra.mxu0 0
    %3055 = vmatprep.subr.bf16.mxu0 0
    %3056 = vmatpush2.bf16.msra.mxu0 0
    %3057 = vmatprep.subr.bf16.mxu0 0
    %3058 = vmatpush2.bf16.msra.mxu0 0
    %3059 = vmatprep.subr.bf16.mxu0 0
    %3060 = vmatpush2.bf16.msra.mxu0 0
    %3061 = vmatprep.subr.bf16.mxu0 0
    %3062 = vmatpush2.bf16.msra.mxu0 0
    %3063 = vmatprep.mubr.bf16.mxu0 0
    %3064 = vmatmul.mubr.bf16.gmra.mxu0 %v2090
    %v3065 = vpop.f32.mrf.mxu0
    %v3066 = vadd.f32 %v2982, %v3065
    %v3067 = vpop.f32.mrf.mxu0
    %v3068 = vpop.f32.mrf.mxu0
    %v3069 = vadd.f32 %v2982, %v3068
    %v3070 = vpop.f32.mrf.mxu0
    %3071 = vmatprep.mubr.bf16.mxu0 0
    %3072 = vmatmul.mubr.bf16.gmra.mxu0 %v2091
    %v3073 = vpop.f32.mrf.mxu0
    %v3074 = vadd.f32 %v2982, %v3073
    %v3075 = vpop.f32.mrf.mxu0
    %v3076 = vpop.f32.mrf.mxu0
    %v3077 = vadd.f32 %v2982, %v3076
    %v3078 = vpop.f32.mrf.mxu0
    %3079 = vmatprep.mubr.bf16.mxu0 0
    %3080 = vmatmul.mubr.bf16.gmra.mxu0 %v2092
    %v3081 = vpop.f32.mrf.mxu0
    %v3082 = vadd.f32 %v2982, %v3081
    %v3083 = vpop.f32.mrf.mxu0
    %v3084 = vpop.f32.mrf.mxu0
    %v3085 = vadd.f32 %v2982, %v3084
    %v3086 = vpop.f32.mrf.mxu0
    %3087 = vmatprep.mubr.bf16.mxu0 0
    %3088 = vmatmul.mubr.bf16.gmra.mxu0 %v2093
    %v3089 = vpop.f32.mrf.mxu0
    %v3090 = vadd.f32 %v2982, %v3089
    %v3091 = vpop.f32.mrf.mxu0
    %v3092 = vpop.f32.mrf.mxu0
    %v3093 = vadd.f32 %v2982, %v3092
    %v3094 = vpop.f32.mrf.mxu0
    %3095 = vmatprep.mubr.bf16.mxu0 0
    %3096 = vmatmul.mubr.bf16.gmra.mxu0 %v2094
    %v3097 = vpop.f32.mrf.mxu0
    %v3098 = vadd.f32 %v2982, %v3097
    %v3099 = vpop.f32.mrf.mxu0
    %v3100 = vpop.f32.mrf.mxu0
    %v3101 = vadd.f32 %v2982, %v3100
    %v3102 = vpop.f32.mrf.mxu0
    %3103 = vmatprep.mubr.bf16.mxu0 0
    %3104 = vmatmul.mubr.bf16.gmra.mxu0 %v2095
    %v3105 = vpop.f32.mrf.mxu0
    %v3106 = vadd.f32 %v2982, %v3105
    %v3107 = vpop.f32.mrf.mxu0
    %v3108 = vpop.f32.mrf.mxu0
    %v3109 = vadd.f32 %v2982, %v3108
    %v3110 = vpop.f32.mrf.mxu0
    %3111 = vmatprep.mubr.bf16.mxu0 0
    %3112 = vmatmul.mubr.bf16.gmra.mxu0 %v2096
    %v3113 = vpop.f32.mrf.mxu0
    %v3114 = vadd.f32 %v2982, %v3113
    %v3115 = vpop.f32.mrf.mxu0
    %v3116 = vpop.f32.mrf.mxu0
    %v3117 = vadd.f32 %v2982, %v3116
    %v3118 = vpop.f32.mrf.mxu0
    %3119 = vmatprep.mubr.bf16.mxu0 0
    %3120 = vmatmul.mubr.bf16.gmra.mxu0 %v2097
    %v3121 = vpop.f32.mrf.mxu0
    %v3122 = vadd.f32 %v2982, %v3121
    %v3123 = vpop.f32.mrf.mxu0
    %v3124 = vpop.f32.mrf.mxu0
    %v3125 = vadd.f32 %v2982, %v3124
    %v3126 = vpop.f32.mrf.mxu0
    %3127 = vdwg.mxu0
    %v3128 = vmax.f32 %v3066, 0.0
    %v3129 = vmax.f32 %v3069, 0.0
    %v3130 = vmax.f32 %v3074, 0.0
    %v3131 = vmax.f32 %v3077, 0.0
    %v3132 = vmax.f32 %v3082, 0.0
    %v3133 = vmax.f32 %v3085, 0.0
    %v3134 = vmax.f32 %v3090, 0.0
    %v3135 = vmax.f32 %v3093, 0.0
    %v3136 = vmax.f32 %v3098, 0.0
    %v3137 = vmax.f32 %v3101, 0.0
    %v3138 = vmax.f32 %v3106, 0.0
    %v3139 = vmax.f32 %v3109, 0.0
    %v3140 = vmax.f32 %v3114, 0.0
    %v3141 = vmax.f32 %v3117, 0.0
    %v3142 = vmax.f32 %v3122, 0.0
    %v3143 = vmax.f32 %v3125, 0.0
    %v3144 = vpack.c.bf16 %v3129, %v3128
    %v3145 = vpack.c.bf16 %v3131, %v3130
    %v3146 = vpack.c.bf16 %v3133, %v3132
    %v3147 = vpack.c.bf16 %v3135, %v3134
    %v3148 = vpack.c.bf16 %v3137, %v3136
    %v3149 = vpack.c.bf16 %v3139, %v3138
    %v3150 = vpack.c.bf16 %v3141, %v3140
    %v3151 = vpack.c.bf16 %v3143, %v3142
    %v3152 = vlaneseq
    %v3153 = vshrl.u32 %v3152, 7
    %v3154 = vsub.s32 0, %v3153
    %v3155 = vrot.slane %v123, %v3154
    %v3172 = vunpack.c.l.b16 %v274
    %v3173 = vunpack.c.l.b16 %v275
    %v3174 = vunpack.c.l.b16 %v276
    %v3175 = vunpack.c.l.b16 %v277
    %v3176 = vunpack.c.l.b16 %v278
    %v3177 = vunpack.c.l.b16 %v279
    %v3178 = vunpack.c.l.b16 %v280
    %v3179 = vunpack.c.l.b16 %v281
    %v3180 = vunpack.c.l.b16 %v282
    %v3181 = vunpack.c.l.b16 %v283
    %v3182 = vunpack.c.l.b16 %v284
    %v3183 = vunpack.c.l.b16 %v285
    %v3184 = vunpack.c.l.b16 %v286
    %v3185 = vunpack.c.l.b16 %v287
    %v3186 = vunpack.c.l.b16 %v288
    %v3187 = vunpack.c.l.b16 %v289
    %v3188 = vpack.c.b16 %v3173, %v3172
    %v3189 = vpack.c.b16 %v3175, %v3174
    %v3190 = vpack.c.b16 %v3177, %v3176
    %v3191 = vpack.c.b16 %v3179, %v3178
    %v3192 = vpack.c.b16 %v3181, %v3180
    %v3193 = vpack.c.b16 %v3183, %v3182
    %v3194 = vpack.c.b16 %v3185, %v3184
    %v3195 = vpack.c.b16 %v3187, %v3186
    %3204 = vmatprep.subr.bf16.mxu0 0
    %3205 = vmatpush1.bf16.msra.mxu0 %v3195
    %3206 = vmatprep.subr.bf16.mxu0 0
    %3207 = vmatpush1.bf16.msra.mxu0 %v3194
    %3208 = vmatprep.subr.bf16.mxu0 0
    %3209 = vmatpush1.bf16.msra.mxu0 %v3193
    %3210 = vmatprep.subr.bf16.mxu0 0
    %3211 = vmatpush1.bf16.msra.mxu0 %v3192
    %3212 = vmatprep.subr.bf16.mxu0 0
    %3213 = vmatpush1.bf16.msra.mxu0 %v3191
    %3214 = vmatprep.subr.bf16.mxu0 0
    %3215 = vmatpush1.bf16.msra.mxu0 %v3190
    %3216 = vmatprep.subr.bf16.mxu0 0
    %3217 = vmatpush1.bf16.msra.mxu0 %v3189
    %3218 = vmatprep.subr.bf16.mxu0 0
    %3219 = vmatpush1.bf16.msra.mxu0 %v3188
    %3220 = vmatprep.subr.bf16.mxu0 0
    %3221 = vmatpush2.bf16.msra.mxu0 0
    %3222 = vmatprep.subr.bf16.mxu0 0
    %3223 = vmatpush2.bf16.msra.mxu0 0
    %3224 = vmatprep.subr.bf16.mxu0 0
    %3225 = vmatpush2.bf16.msra.mxu0 0
    %3226 = vmatprep.subr.bf16.mxu0 0
    %3227 = vmatpush2.bf16.msra.mxu0 0
    %3228 = vmatprep.subr.bf16.mxu0 0
    %3229 = vmatpush2.bf16.msra.mxu0 0
    %3230 = vmatprep.subr.bf16.mxu0 0
    %3231 = vmatpush2.bf16.msra.mxu0 0
    %3232 = vmatprep.subr.bf16.mxu0 0
    %3233 = vmatpush2.bf16.msra.mxu0 0
    %3234 = vmatprep.subr.bf16.mxu0 0
    %3235 = vmatpush2.bf16.msra.mxu0 0
    %3236 = vmatprep.mubr.bf16.mxu0 0
    %3237 = vmatmul.mubr.bf16.gmra.mxu0 %v3144
    %v3238 = vpop.f32.mrf.mxu0
    %v3239 = vadd.f32 %v3155, %v3238
    %v3240 = vpop.f32.mrf.mxu0
    %v3241 = vpop.f32.mrf.mxu0
    %v3242 = vadd.f32 %v3155, %v3241
    %v3243 = vpop.f32.mrf.mxu0
    %3244 = vmatprep.mubr.bf16.mxu0 0
    %3245 = vmatmul.mubr.bf16.gmra.mxu0 %v3145
    %v3246 = vpop.f32.mrf.mxu0
    %v3247 = vadd.f32 %v3155, %v3246
    %v3248 = vpop.f32.mrf.mxu0
    %v3249 = vpop.f32.mrf.mxu0
    %v3250 = vadd.f32 %v3155, %v3249
    %v3251 = vpop.f32.mrf.mxu0
    %3252 = vmatprep.mubr.bf16.mxu0 0
    %3253 = vmatmul.mubr.bf16.gmra.mxu0 %v3146
    %v3254 = vpop.f32.mrf.mxu0
    %v3255 = vadd.f32 %v3155, %v3254
    %v3256 = vpop.f32.mrf.mxu0
    %v3257 = vpop.f32.mrf.mxu0
    %v3258 = vadd.f32 %v3155, %v3257
    %v3259 = vpop.f32.mrf.mxu0
    %3260 = vmatprep.mubr.bf16.mxu0 0
    %3261 = vmatmul.mubr.bf16.gmra.mxu0 %v3147
    %v3262 = vpop.f32.mrf.mxu0
    %v3263 = vadd.f32 %v3155, %v3262
    %v3264 = vpop.f32.mrf.mxu0
    %v3265 = vpop.f32.mrf.mxu0
    %v3266 = vadd.f32 %v3155, %v3265
    %v3267 = vpop.f32.mrf.mxu0
    %3268 = vmatprep.mubr.bf16.mxu0 0
    %3269 = vmatmul.mubr.bf16.gmra.mxu0 %v3148
    %v3270 = vpop.f32.mrf.mxu0
    %v3271 = vadd.f32 %v3155, %v3270
    %v3272 = vpop.f32.mrf.mxu0
    %v3273 = vpop.f32.mrf.mxu0
    %v3274 = vadd.f32 %v3155, %v3273
    %v3275 = vpop.f32.mrf.mxu0
    %3276 = vmatprep.mubr.bf16.mxu0 0
    %3277 = vmatmul.mubr.bf16.gmra.mxu0 %v3149
    %v3278 = vpop.f32.mrf.mxu0
    %v3279 = vadd.f32 %v3155, %v3278
    %v3280 = vpop.f32.mrf.mxu0
    %v3281 = vpop.f32.mrf.mxu0
    %v3282 = vadd.f32 %v3155, %v3281
    %v3283 = vpop.f32.mrf.mxu0
    %3284 = vmatprep.mubr.bf16.mxu0 0
    %3285 = vmatmul.mubr.bf16.gmra.mxu0 %v3150
    %v3286 = vpop.f32.mrf.mxu0
    %v3287 = vadd.f32 %v3155, %v3286
    %v3288 = vpop.f32.mrf.mxu0
    %v3289 = vpop.f32.mrf.mxu0
    %v3290 = vadd.f32 %v3155, %v3289
    %v3291 = vpop.f32.mrf.mxu0
    %3292 = vmatprep.mubr.bf16.mxu0 0
    %3293 = vmatmul.mubr.bf16.gmra.mxu0 %v3151
    %v3294 = vpop.f32.mrf.mxu0
    %v3295 = vadd.f32 %v3155, %v3294
    %v3296 = vpop.f32.mrf.mxu0
    %v3297 = vpop.f32.mrf.mxu0
    %v3298 = vadd.f32 %v3155, %v3297
    %v3299 = vpop.f32.mrf.mxu0
    %3300 = vdwg.mxu0
    %3301 = vst [vmem:[#allocation11] sm:$0xff] %v2949
    %3302 = vst [vmem:[#allocation11 + $0x8] sm:$0xff] %v2952
    %3303 = vst [vmem:[#allocation11 + $0x10] sm:$0xff] %v2957
    %3304 = vst [vmem:[#allocation11 + $0x18] sm:$0xff] %v2960
    %3305 = vst [vmem:[#allocation11 + $0x20] sm:$0xff] %v2965
    %3306 = vst [vmem:[#allocation11 + $0x28] sm:$0xff] %v2968
    %3307 = vst [vmem:[#allocation11 + $0x30] sm:$0xff] %v2973
    %3308 = vst [vmem:[#allocation11 + $0x38] sm:$0xff] %v2976
    %3309 = vst [vmem:[#allocation11 + $0x40] sm:$0xff] %v3239
    %3310 = vst [vmem:[#allocation11 + $0x48] sm:$0xff] %v3242
    %3311 = vst [vmem:[#allocation11 + $0x50] sm:$0xff] %v3247
    %3312 = vst [vmem:[#allocation11 + $0x58] sm:$0xff] %v3250
    %3313 = vst [vmem:[#allocation11 + $0x60] sm:$0xff] %v3255
    %3314 = vst [vmem:[#allocation11 + $0x68] sm:$0xff] %v3258
    %3315 = vst [vmem:[#allocation11 + $0x70] sm:$0xff] %v3263
    %3316 = vst [vmem:[#allocation11 + $0x78] sm:$0xff] %v3266
    %3317 = vst [vmem:[#allocation11 + $0x80] sm:$0xff] %v3271
    %3318 = vst [vmem:[#allocation11 + $0x88] sm:$0xff] %v3274
    %3319 = vst [vmem:[#allocation11 + $0x90] sm:$0xff] %v3279
    %3320 = vst [vmem:[#allocation11 + $0x98] sm:$0xff] %v3282
    %3321 = vst [vmem:[#allocation11 + $0xa0] sm:$0xff] %v3287
    %3322 = vst [vmem:[#allocation11 + $0xa8] sm:$0xff] %v3290
    %3323 = vst [vmem:[#allocation11 + $0xb0] sm:$0xff] %v3295
    %3324 = vst [vmem:[#allocation11 + $0xb8] sm:$0xff] %v3298
    // Predicated region
    $region42: #{tpu_custom_call.1} parent=1 // pred_check
      _
    $region43: #{tpu_custom_call.1} parent=1 // pred_check_branch
      %3326 = sbr.rel (0) target = $region45
    $region44: #{tpu_custom_call.1} parent=1 // pred_region
      %s3328 = ssub.s32 3072, 3072
      %3329 = vsyncadd [#allocation4], %s3328
      %s3330 = sshll.u32 [#allocation11], 4
      %s3331 = int_to_ptr.vmem [resolvable:$true] %s3330
      %3336 = dma.vmem_to_hbm [thread:$0]  %s3331, 3072, %s5, [#allocation4], 128, 128, 8
    $region45: #{tpu_custom_call.1} parent=1 // pred_fallthru
      _
    // Predicated region
    $region46: #{tpu_custom_call.1} parent=1 // pred_check
      _
    $region47: #{tpu_custom_call.1} parent=1 // pred_check_branch
      %3338 = sbr.rel (0) target = $region49
    $region48: #{tpu_custom_call.1} parent=1 // pred_region
      %3339 = dma.done [#allocation4], 3072
    $region49: #{tpu_custom_call.1} parent=1 // pred_fallthru
      _
    %3340 = vsyncpa [#allocation3], 1
    %3341 = vsyncpa [#allocation6], 1
    %3342 = vsyncpa [#allocation9], 1
    %3343 = vsyncpa [#allocation4], 1

</llo_original>
